<compile_context>
chip_gen: v7x
topology: tpu7x:2x2x1
jax: 0.10.0
libtpu: 0.0.40
codegen_flags: <defaults>
</compile_context>

<pallas_src>
import functools

import jax
import jax.numpy as jnp
from jax.experimental import pallas as pl
from jax.experimental.pallas import tpu as pltpu

LR_SLOPE = 0.2
BN_EPS = 1e-5
CIN_PAD = 8                      # pad the 2 input channels to one full sublane tile
_FUSE_DY = (True, True, False, False)   # conv1/conv2: one K=9*Cin dot; conv3/conv4: 3 dots


def _conv_layer(a, w_ref, b, *, ws, slope, fuse_dy, chunk, out_ref=None):
    """One fused conv3x3(VALID) + folded-BN-shift + leaky-relu layer.

    a:      (Cin, P_total) f32 activations; flattened 16x16 pixel canvases of all
            images concatenated on the lane axis.
    w_ref:  fuse_dy=True : (Cout, 9*Cin)    bf16, col = (dy*3+dx)*Cin + ci
            fuse_dy=False: (3, Cout, 3*Cin) bf16, w_ref[dy] col = dx*Cin + ci
    b:      (Cout, 1) f32 folded BN shift (zeros when the layer has no BN).
    chunk:  lane-chunk size (multiple of 128) used to bound vreg pressure.
    out_ref: if given, f32 chunk results are stored directly (final layer).
    """
    cin, total = a.shape
    n_chunks = total // chunk
    outs = []
    for c_i in range(n_chunks):
        off = c_i * chunk

        def tap(s, _off=off):
            # shifted[c, p] == a[c, (p + s) % total]; wraparound only ever lands
            # in garbage rows/cols that valid downstream pixels never read.
            r = a if s == 0 else pltpu.roll(a, total - s, 1)
            return r if chunk == total else r[:, _off:_off + chunk]

        if fuse_dy:
            taps = [tap(dy * ws + dx) for dy in range(3) for dx in range(3)]
            patches = jnp.concatenate(taps, axis=0).astype(jnp.bfloat16)
            y = jnp.dot(w_ref[...], patches, preferred_element_type=jnp.float32)
        else:
            y = None
            for dy in range(3):
                taps = [tap(dy * ws + dx) for dx in range(3)]
                patches = jnp.concatenate(taps, axis=0).astype(jnp.bfloat16)
                part = jnp.dot(w_ref[dy], patches,
                               preferred_element_type=jnp.float32)
                y = part if y is None else y + part
        y = y + b                                        # folded BN shift (f32)
        y = jnp.where(y >= 0.0, y, slope * y)            # leaky relu (f32)
        if out_ref is not None:
            out_ref[:, off:off + chunk] = y
        else:
            outs.append(y)
    if out_ref is not None:
        return None
    return outs[0] if n_chunks == 1 else jnp.concatenate(outs, axis=1)


def _latent4lsnd_kernel(x_ref, w1, b1, w2, b2, w3, b3, w4, b4, o_ref,
                        *, ws, pb, slope):
    total = x_ref.shape[1]
    a = x_ref[...]                                       # (8, N*pb) f32
    # conv1 / conv2: small Cin -> single K=9*Cin MXU dot over the full lane width.
    a = _conv_layer(a, w1, b1[...], ws=ws, slope=slope, fuse_dy=True, chunk=total)
    a = _conv_layer(a, w2, b2[...], ws=ws, slope=slope, fuse_dy=True, chunk=total)
    # conv3 / conv4: 3 dots (K=3*Cin) per 256-lane chunk to stay inside the vreg file.
    a = _conv_layer(a, w3, b3[...], ws=ws, slope=slope, fuse_dy=False, chunk=pb)
    _conv_layer(a, w4, b4[...], ws=ws, slope=slope, fuse_dy=False, chunk=pb,
                out_ref=o_ref)


def prepare_params(params):
    """One-time prep (hoisted out of the forward path).

    Folds the eval-mode BN scale into the conv weights, pads conv1's Cin to 8,
    reorders to the kernel layout and casts the matmul operands to bf16.
    Returns a list of (weight, shift) pairs, one per layer.
    """
    prepped = []
    for idx, fuse in zip(range(1, 5), _FUSE_DY):
        w, scale, shift = params[f"conv{idx}"]
        kh, kw, cin, cout = w.shape
        wf = (w * scale).astype(jnp.float32)             # fold eval-mode BN scale
        if idx == 1 and cin < CIN_PAD:
            wf = jnp.concatenate(
                [wf, jnp.zeros((kh, kw, CIN_PAD - cin, cout), jnp.float32)], axis=2)
            cin = CIN_PAD
        if fuse:
            # [dy, dx, ci, co] -> (Cout, 9*Cin), col = (dy*3+dx)*Cin + ci
            wk = jnp.transpose(wf, (3, 0, 1, 2)).reshape(cout, kh * kw * cin)
        else:
            # [dy, dx, ci, co] -> (3, Cout, 3*Cin), col = dx*Cin + ci
            wk = jnp.transpose(wf, (0, 3, 1, 2)).reshape(kh, cout, kw * cin)
        prepped.append((wk.astype(jnp.bfloat16),
                        shift.reshape(-1, 1).astype(jnp.float32)))
    return prepped


def latent4lsnd_forward(x_nchw, prepped):
    """Mirrors Latent4LSND.forward (eval mode); NCHW in / NCHW out."""
    n, c, h, w = x_nchw.shape
    pb = h * w                               # per-image flattened pixel block
    total = n * pb
    ho, wo = h - 8, w - 8                    # spatial size after 4 valid 3x3 convs
    cout_final = prepped[-1][1].shape[0]
    cin0 = max(c, CIN_PAD)

    # Channel-major layout; per-image row-major pixels concatenated on the lane
    # axis (global flat index = img*pb + r*w + col).  Pad Cin -> 8 with zeros.
    x2d = jnp.transpose(x_nchw, (1, 0, 2, 3)).reshape(c, total)
    if c < cin0:
        x2d = jnp.concatenate(
            [x2d, jnp.zeros((cin0 - c, total), x2d.dtype)], axis=0)

    operands = [x2d]
    for wk, bk in prepped:
        operands += [wk, bk]

    kernel = functools.partial(_latent4lsnd_kernel, ws=w, pb=pb, slope=LR_SLOPE)
    # No grid: single step, all operands (~0.2 MiB) fully resident in VMEM.
    out2d = pl.pallas_call(
        kernel,
        out_shape=jax.ShapeDtypeStruct((cout_final, total), jnp.float32),
    )(*operands)

    # Crop the valid (ho, wo) window of each image block and go back to NCHW.
    out = out2d.reshape(cout_final, n, h, w)[:, :, :ho, :wo]
    return jnp.transpose(out, (1, 0, 2, 3))


def init_params(key):
    """Deterministic synthetic parameters matching the module's shapes."""
    layer_channels = [(2, 8), (8, 16), (16, 32), (32, 64)]
    params = {}
    for i, (cin, cout) in enumerate(layer_channels, start=1):
        key, kw, kg, kb, km, kv = jax.random.split(key, 6)
        fan_in = cin * 9
        w = jax.random.normal(kw, (3, 3, cin, cout), jnp.float32) * (1.0 / fan_in) ** 0.5
        if i < 4:
            # conv1..3 have a BatchNorm2d; fold eval-mode BN into scale/shift.
            gamma = 1.0 + 0.1 * jax.random.normal(kg, (cout,), jnp.float32)
            beta = 0.1 * jax.random.normal(kb, (cout,), jnp.float32)
            running_mean = 0.05 * jax.random.normal(km, (cout,), jnp.float32)
            running_var = 1.0 + 0.1 * jax.random.uniform(kv, (cout,), jnp.float32)
            scale = gamma / jnp.sqrt(running_var + BN_EPS)
            shift = beta - running_mean * scale
        else:
            # conv4 has no BN: identity affine.
            scale = jnp.ones((cout,), jnp.float32)
            shift = jnp.zeros((cout,), jnp.float32)
        params[f"conv{i}"] = (w, scale, shift)
    return params


def reference_forward(x_nchw, params):
    """Pure-JAX full-f32 reference (the module's semantics)."""
    x = jnp.transpose(x_nchw, (0, 2, 3, 1))
    dn = ("NHWC", "HWIO", "NHWC")
    for i in range(1, 5):
        w, scale, shift = params[f"conv{i}"]
        y = jax.lax.conv_general_dilated(
            x, w, (1, 1), "VALID", dimension_numbers=dn,
            precision=jax.lax.Precision.HIGHEST)
        y = y * scale + shift
        x = jnp.where(y >= 0, y, LR_SLOPE * y)
    return jnp.transpose(x, (0, 3, 1, 2))


def reference_forward_bf16(x_nchw, params):
    """Precision-matched reference: same bf16 operand rounding, f32 accumulate,
    f32 bias/leaky-relu — mirrors the kernel's numerics."""
    x = jnp.transpose(x_nchw, (0, 2, 3, 1))
    dn = ("NHWC", "HWIO", "NHWC")
    for i in range(1, 5):
        w, scale, shift = params[f"conv{i}"]
        wb = (w * scale).astype(jnp.float32).astype(jnp.bfloat16)
        y = jax.lax.conv_general_dilated(
            x.astype(jnp.bfloat16), wb, (1, 1), "VALID", dimension_numbers=dn,
            preferred_element_type=jnp.float32)
        y = y + shift
        x = jnp.where(y >= 0, y, LR_SLOPE * y)
    return jnp.transpose(x, (0, 3, 1, 2))


if __name__ == "__main__":
    key = jax.random.PRNGKey(0)
    kx, kp = jax.random.split(key)

    # PyTorch-style input: NCHW with 2 input channels.
    x = jax.random.normal(kx, (2, 2, 16, 16), jnp.float32)
    params = init_params(kp)

    # One-time weight prep (hoisted); jitted forward wrapper.
    prepped = prepare_params(params)
    fwd = jax.jit(latent4lsnd_forward)

    out = jax.block_until_ready(fwd(x, prepped))

    # 16 -> 14 -> 12 -> 10 -> 8 spatial, 64 output channels.
    assert out.shape == (2, 64, 8, 8), out.shape

    # Exact-structure check against a precision-matched (bf16-operand) reference.
    ref_b = reference_forward_bf16(x, params)
    err_b = float(jnp.max(jnp.abs(out - ref_b)))
    assert jnp.allclose(out, ref_b, atol=2e-3, rtol=2e-3), err_b

    # Loose sanity check against the full-f32 reference (bf16 rounding only).
    ref_f = reference_forward(x, params)
    err_f = float(jnp.max(jnp.abs(out - ref_f)))
    assert jnp.allclose(out, ref_f, atol=1e-1, rtol=1e-1), err_f

    print("KERNEL_OK")
</pallas_src>

<mosaic_0001>
module attributes {stable_mosaic.version = 11 : i64} {
  func.func @_latent4lsnd_kernel(%arg0: memref<8x512xf32, #tpu.memory_space<vmem>>, %arg1: memref<8x72xbf16, #tpu.memory_space<vmem>>, %arg2: memref<8x1xf32, #tpu.memory_space<vmem>>, %arg3: memref<16x72xbf16, #tpu.memory_space<vmem>>, %arg4: memref<16x1xf32, #tpu.memory_space<vmem>>, %arg5: memref<3x32x48xbf16, #tpu.memory_space<vmem>>, %arg6: memref<32x1xf32, #tpu.memory_space<vmem>>, %arg7: memref<3x64x96xbf16, #tpu.memory_space<vmem>>, %arg8: memref<64x1xf32, #tpu.memory_space<vmem>>, %arg9: memref<64x512xf32, #tpu.memory_space<vmem>>) attributes {dimension_semantics = [], scalar_prefetch = 0 : i64, scratch_operands = 0 : i64, tpu.core_type = #tpu.core_type<tc>} {
    %c0 = arith.constant 0 : index
    %c0_0 = arith.constant 0 : index
    %0 = vector.load %arg0[%c0, %c0_0] : memref<8x512xf32, #tpu.memory_space<vmem>>, vector<8x512xf32>
    %c0_1 = arith.constant 0 : index
    %c0_2 = arith.constant 0 : index
    %1 = vector.load %arg2[%c0_1, %c0_2] : memref<8x1xf32, #tpu.memory_space<vmem>>, vector<8x1xf32>
    %c511_i32 = arith.constant 511 : i32
    %2 = tpu.dynamic_rotate %0 by %c511_i32 dim 1 : vector<8x512xf32>, i32 -> vector<8x512xf32>
    %c510_i32 = arith.constant 510 : i32
    %3 = tpu.dynamic_rotate %0 by %c510_i32 dim 1 : vector<8x512xf32>, i32 -> vector<8x512xf32>
    %c496_i32 = arith.constant 496 : i32
    %4 = tpu.dynamic_rotate %0 by %c496_i32 dim 1 : vector<8x512xf32>, i32 -> vector<8x512xf32>
    %c495_i32 = arith.constant 495 : i32
    %5 = tpu.dynamic_rotate %0 by %c495_i32 dim 1 : vector<8x512xf32>, i32 -> vector<8x512xf32>
    %c494_i32 = arith.constant 494 : i32
    %6 = tpu.dynamic_rotate %0 by %c494_i32 dim 1 : vector<8x512xf32>, i32 -> vector<8x512xf32>
    %c480_i32 = arith.constant 480 : i32
    %7 = tpu.dynamic_rotate %0 by %c480_i32 dim 1 : vector<8x512xf32>, i32 -> vector<8x512xf32>
    %c479_i32 = arith.constant 479 : i32
    %8 = tpu.dynamic_rotate %0 by %c479_i32 dim 1 : vector<8x512xf32>, i32 -> vector<8x512xf32>
    %c478_i32 = arith.constant 478 : i32
    %9 = tpu.dynamic_rotate %0 by %c478_i32 dim 1 : vector<8x512xf32>, i32 -> vector<8x512xf32>
    %10 = tpu.concatenate %0, %2, %3, %4, %5, %6, %7, %8, %9 in 0 : vector<8x512xf32>, vector<8x512xf32>, vector<8x512xf32>, vector<8x512xf32>, vector<8x512xf32>, vector<8x512xf32>, vector<8x512xf32>, vector<8x512xf32>, vector<8x512xf32> -> vector<72x512xf32>
    %11 = arith.truncf %10 : vector<72x512xf32> to vector<72x512xbf16>
    %c0_3 = arith.constant 0 : index
    %c0_4 = arith.constant 0 : index
    %12 = vector.load %arg1[%c0_3, %c0_4] : memref<8x72xbf16, #tpu.memory_space<vmem>>, vector<8x72xbf16>
    %cst = arith.constant dense<0.000000e+00> : vector<8x512xf32>
    %13 = tpu.matmul %12, %11, %cst {dimension_numbers = #tpu.dot_dimension_numbers<[1], [0], [0], [1], [0, 0, 1, 1], [], []>} : vector<8x72xbf16>, vector<72x512xbf16>, vector<8x512xf32> -> vector<8x512xf32>
    %14 = vector.broadcast %1 : vector<8x1xf32> to vector<8x512xf32>
    %15 = arith.addf %13, %14 : vector<8x512xf32>
    %cst_5 = arith.constant 0.000000e+00 : f32
    %16 = vector.broadcast %cst_5 : f32 to vector<8x512xf32>
    %17 = arith.cmpf oge, %15, %16 : vector<8x512xf32>
    %cst_6 = arith.constant 2.000000e-01 : f32
    %18 = vector.broadcast %cst_6 : f32 to vector<8x512xf32>
    %19 = arith.mulf %18, %15 : vector<8x512xf32>
    %20 = arith.select %17, %15, %19 : vector<8x512xi1>, vector<8x512xf32>
    %c0_7 = arith.constant 0 : index
    %c0_8 = arith.constant 0 : index
    %21 = vector.load %arg4[%c0_7, %c0_8] : memref<16x1xf32, #tpu.memory_space<vmem>>, vector<16x1xf32>
    %c511_i32_9 = arith.constant 511 : i32
    %22 = tpu.dynamic_rotate %20 by %c511_i32_9 dim 1 : vector<8x512xf32>, i32 -> vector<8x512xf32>
    %c510_i32_10 = arith.constant 510 : i32
    %23 = tpu.dynamic_rotate %20 by %c510_i32_10 dim 1 : vector<8x512xf32>, i32 -> vector<8x512xf32>
    %c496_i32_11 = arith.constant 496 : i32
    %24 = tpu.dynamic_rotate %20 by %c496_i32_11 dim 1 : vector<8x512xf32>, i32 -> vector<8x512xf32>
    %c495_i32_12 = arith.constant 495 : i32
    %25 = tpu.dynamic_rotate %20 by %c495_i32_12 dim 1 : vector<8x512xf32>, i32 -> vector<8x512xf32>
    %c494_i32_13 = arith.constant 494 : i32
    %26 = tpu.dynamic_rotate %20 by %c494_i32_13 dim 1 : vector<8x512xf32>, i32 -> vector<8x512xf32>
    %c480_i32_14 = arith.constant 480 : i32
    %27 = tpu.dynamic_rotate %20 by %c480_i32_14 dim 1 : vector<8x512xf32>, i32 -> vector<8x512xf32>
    %c479_i32_15 = arith.constant 479 : i32
    %28 = tpu.dynamic_rotate %20 by %c479_i32_15 dim 1 : vector<8x512xf32>, i32 -> vector<8x512xf32>
    %c478_i32_16 = arith.constant 478 : i32
    %29 = tpu.dynamic_rotate %20 by %c478_i32_16 dim 1 : vector<8x512xf32>, i32 -> vector<8x512xf32>
    %30 = tpu.concatenate %20, %22, %23, %24, %25, %26, %27, %28, %29 in 0 : vector<8x512xf32>, vector<8x512xf32>, vector<8x512xf32>, vector<8x512xf32>, vector<8x512xf32>, vector<8x512xf32>, vector<8x512xf32>, vector<8x512xf32>, vector<8x512xf32> -> vector<72x512xf32>
    %31 = arith.truncf %30 : vector<72x512xf32> to vector<72x512xbf16>
    %c0_17 = arith.constant 0 : index
    %c0_18 = arith.constant 0 : index
    %32 = vector.load %arg3[%c0_17, %c0_18] : memref<16x72xbf16, #tpu.memory_space<vmem>>, vector<16x72xbf16>
    %cst_19 = arith.constant dense<0.000000e+00> : vector<16x512xf32>
    %33 = tpu.matmul %32, %31, %cst_19 {dimension_numbers = #tpu.dot_dimension_numbers<[1], [0], [0], [1], [0, 0, 1, 1], [], []>} : vector<16x72xbf16>, vector<72x512xbf16>, vector<16x512xf32> -> vector<16x512xf32>
    %34 = vector.broadcast %21 : vector<16x1xf32> to vector<16x512xf32>
    %35 = arith.addf %33, %34 : vector<16x512xf32>
    %cst_20 = arith.constant 0.000000e+00 : f32
    %36 = vector.broadcast %cst_20 : f32 to vector<16x512xf32>
    %37 = arith.cmpf oge, %35, %36 : vector<16x512xf32>
    %cst_21 = arith.constant 2.000000e-01 : f32
    %38 = vector.broadcast %cst_21 : f32 to vector<16x512xf32>
    %39 = arith.mulf %38, %35 : vector<16x512xf32>
    %40 = arith.select %37, %35, %39 : vector<16x512xi1>, vector<16x512xf32>
    %c0_22 = arith.constant 0 : index
    %c0_23 = arith.constant 0 : index
    %41 = vector.load %arg6[%c0_22, %c0_23] : memref<32x1xf32, #tpu.memory_space<vmem>>, vector<32x1xf32>
    %42 = vector.extract_strided_slice %40 {offsets = [0, 0], sizes = [16, 256], strides = [1, 1]} : vector<16x512xf32> to vector<16x256xf32>
    %c511_i32_24 = arith.constant 511 : i32
    %43 = tpu.dynamic_rotate %40 by %c511_i32_24 dim 1 : vector<16x512xf32>, i32 -> vector<16x512xf32>
    %44 = vector.extract_strided_slice %43 {offsets = [0, 0], sizes = [16, 256], strides = [1, 1]} : vector<16x512xf32> to vector<16x256xf32>
    %c510_i32_25 = arith.constant 510 : i32
    %45 = tpu.dynamic_rotate %40 by %c510_i32_25 dim 1 : vector<16x512xf32>, i32 -> vector<16x512xf32>
    %46 = vector.extract_strided_slice %45 {offsets = [0, 0], sizes = [16, 256], strides = [1, 1]} : vector<16x512xf32> to vector<16x256xf32>
    %47 = tpu.concatenate %42, %44, %46 in 0 : vector<16x256xf32>, vector<16x256xf32>, vector<16x256xf32> -> vector<48x256xf32>
    %48 = arith.truncf %47 : vector<48x256xf32> to vector<48x256xbf16>
    %c0_26 = arith.constant 0 : index
    %c0_27 = arith.constant 0 : index
    %c0_28 = arith.constant 0 : index
    %49 = vector.load %arg5[%c0_26, %c0_27, %c0_28] : memref<3x32x48xbf16, #tpu.memory_space<vmem>>, vector<1x32x48xbf16>
    %50 = vector.shape_cast %49 : vector<1x32x48xbf16> to vector<32x48xbf16>
    %cst_29 = arith.constant dense<0.000000e+00> : vector<32x256xf32>
    %51 = tpu.matmul %50, %48, %cst_29 {dimension_numbers = #tpu.dot_dimension_numbers<[1], [0], [0], [1], [0, 0, 1, 1], [], []>} : vector<32x48xbf16>, vector<48x256xbf16>, vector<32x256xf32> -> vector<32x256xf32>
    %c496_i32_30 = arith.constant 496 : i32
    %52 = tpu.dynamic_rotate %40 by %c496_i32_30 dim 1 : vector<16x512xf32>, i32 -> vector<16x512xf32>
    %53 = vector.extract_strided_slice %52 {offsets = [0, 0], sizes = [16, 256], strides = [1, 1]} : vector<16x512xf32> to vector<16x256xf32>
    %c495_i32_31 = arith.constant 495 : i32
    %54 = tpu.dynamic_rotate %40 by %c495_i32_31 dim 1 : vector<16x512xf32>, i32 -> vector<16x512xf32>
    %55 = vector.extract_strided_slice %54 {offsets = [0, 0], sizes = [16, 256], strides = [1, 1]} : vector<16x512xf32> to vector<16x256xf32>
    %c494_i32_32 = arith.constant 494 : i32
    %56 = tpu.dynamic_rotate %40 by %c494_i32_32 dim 1 : vector<16x512xf32>, i32 -> vector<16x512xf32>
    %57 = vector.extract_strided_slice %56 {offsets = [0, 0], sizes = [16, 256], strides = [1, 1]} : vector<16x512xf32> to vector<16x256xf32>
    %58 = tpu.concatenate %53, %55, %57 in 0 : vector<16x256xf32>, vector<16x256xf32>, vector<16x256xf32> -> vector<48x256xf32>
    %59 = arith.truncf %58 : vector<48x256xf32> to vector<48x256xbf16>
    %c1 = arith.constant 1 : index
    %c0_33 = arith.constant 0 : index
    %c0_34 = arith.constant 0 : index
    %60 = vector.load %arg5[%c1, %c0_33, %c0_34] : memref<3x32x48xbf16, #tpu.memory_space<vmem>>, vector<1x32x48xbf16>
    %61 = vector.shape_cast %60 : vector<1x32x48xbf16> to vector<32x48xbf16>
    %cst_35 = arith.constant dense<0.000000e+00> : vector<32x256xf32>
    %62 = tpu.matmul %61, %59, %cst_35 {dimension_numbers = #tpu.dot_dimension_numbers<[1], [0], [0], [1], [0, 0, 1, 1], [], []>} : vector<32x48xbf16>, vector<48x256xbf16>, vector<32x256xf32> -> vector<32x256xf32>
    %63 = arith.addf %51, %62 : vector<32x256xf32>
    %c480_i32_36 = arith.constant 480 : i32
    %64 = tpu.dynamic_rotate %40 by %c480_i32_36 dim 1 : vector<16x512xf32>, i32 -> vector<16x512xf32>
    %65 = vector.extract_strided_slice %64 {offsets = [0, 0], sizes = [16, 256], strides = [1, 1]} : vector<16x512xf32> to vector<16x256xf32>
    %c479_i32_37 = arith.constant 479 : i32
    %66 = tpu.dynamic_rotate %40 by %c479_i32_37 dim 1 : vector<16x512xf32>, i32 -> vector<16x512xf32>
    %67 = vector.extract_strided_slice %66 {offsets = [0, 0], sizes = [16, 256], strides = [1, 1]} : vector<16x512xf32> to vector<16x256xf32>
    %c478_i32_38 = arith.constant 478 : i32
    %68 = tpu.dynamic_rotate %40 by %c478_i32_38 dim 1 : vector<16x512xf32>, i32 -> vector<16x512xf32>
    %69 = vector.extract_strided_slice %68 {offsets = [0, 0], sizes = [16, 256], strides = [1, 1]} : vector<16x512xf32> to vector<16x256xf32>
    %70 = tpu.concatenate %65, %67, %69 in 0 : vector<16x256xf32>, vector<16x256xf32>, vector<16x256xf32> -> vector<48x256xf32>
    %71 = arith.truncf %70 : vector<48x256xf32> to vector<48x256xbf16>
    %c2 = arith.constant 2 : index
    %c0_39 = arith.constant 0 : index
    %c0_40 = arith.constant 0 : index
    %72 = vector.load %arg5[%c2, %c0_39, %c0_40] : memref<3x32x48xbf16, #tpu.memory_space<vmem>>, vector<1x32x48xbf16>
    %73 = vector.shape_cast %72 : vector<1x32x48xbf16> to vector<32x48xbf16>
    %cst_41 = arith.constant dense<0.000000e+00> : vector<32x256xf32>
    %74 = tpu.matmul %73, %71, %cst_41 {dimension_numbers = #tpu.dot_dimension_numbers<[1], [0], [0], [1], [0, 0, 1, 1], [], []>} : vector<32x48xbf16>, vector<48x256xbf16>, vector<32x256xf32> -> vector<32x256xf32>
    %75 = arith.addf %63, %74 : vector<32x256xf32>
    %76 = vector.broadcast %41 : vector<32x1xf32> to vector<32x256xf32>
    %77 = arith.addf %75, %76 : vector<32x256xf32>
    %cst_42 = arith.constant 0.000000e+00 : f32
    %78 = vector.broadcast %cst_42 : f32 to vector<32x256xf32>
    %79 = arith.cmpf oge, %77, %78 : vector<32x256xf32>
    %cst_43 = arith.constant 2.000000e-01 : f32
    %80 = vector.broadcast %cst_43 : f32 to vector<32x256xf32>
    %81 = arith.mulf %80, %77 : vector<32x256xf32>
    %82 = arith.select %79, %77, %81 : vector<32x256xi1>, vector<32x256xf32>
    %83 = vector.extract_strided_slice %40 {offsets = [0, 256], sizes = [16, 256], strides = [1, 1]} : vector<16x512xf32> to vector<16x256xf32>
    %c511_i32_44 = arith.constant 511 : i32
    %84 = tpu.dynamic_rotate %40 by %c511_i32_44 dim 1 : vector<16x512xf32>, i32 -> vector<16x512xf32>
    %85 = vector.extract_strided_slice %84 {offsets = [0, 256], sizes = [16, 256], strides = [1, 1]} : vector<16x512xf32> to vector<16x256xf32>
    %c510_i32_45 = arith.constant 510 : i32
    %86 = tpu.dynamic_rotate %40 by %c510_i32_45 dim 1 : vector<16x512xf32>, i32 -> vector<16x512xf32>
    %87 = vector.extract_strided_slice %86 {offsets = [0, 256], sizes = [16, 256], strides = [1, 1]} : vector<16x512xf32> to vector<16x256xf32>
    %88 = tpu.concatenate %83, %85, %87 in 0 : vector<16x256xf32>, vector<16x256xf32>, vector<16x256xf32> -> vector<48x256xf32>
    %89 = arith.truncf %88 : vector<48x256xf32> to vector<48x256xbf16>
    %c0_46 = arith.constant 0 : index
    %c0_47 = arith.constant 0 : index
    %c0_48 = arith.constant 0 : index
    %90 = vector.load %arg5[%c0_46, %c0_47, %c0_48] : memref<3x32x48xbf16, #tpu.memory_space<vmem>>, vector<1x32x48xbf16>
    %91 = vector.shape_cast %90 : vector<1x32x48xbf16> to vector<32x48xbf16>
    %cst_49 = arith.constant dense<0.000000e+00> : vector<32x256xf32>
    %92 = tpu.matmul %91, %89, %cst_49 {dimension_numbers = #tpu.dot_dimension_numbers<[1], [0], [0], [1], [0, 0, 1, 1], [], []>} : vector<32x48xbf16>, vector<48x256xbf16>, vector<32x256xf32> -> vector<32x256xf32>
    %c496_i32_50 = arith.constant 496 : i32
    %93 = tpu.dynamic_rotate %40 by %c496_i32_50 dim 1 : vector<16x512xf32>, i32 -> vector<16x512xf32>
    %94 = vector.extract_strided_slice %93 {offsets = [0, 256], sizes = [16, 256], strides = [1, 1]} : vector<16x512xf32> to vector<16x256xf32>
    %c495_i32_51 = arith.constant 495 : i32
    %95 = tpu.dynamic_rotate %40 by %c495_i32_51 dim 1 : vector<16x512xf32>, i32 -> vector<16x512xf32>
    %96 = vector.extract_strided_slice %95 {offsets = [0, 256], sizes = [16, 256], strides = [1, 1]} : vector<16x512xf32> to vector<16x256xf32>
    %c494_i32_52 = arith.constant 494 : i32
    %97 = tpu.dynamic_rotate %40 by %c494_i32_52 dim 1 : vector<16x512xf32>, i32 -> vector<16x512xf32>
    %98 = vector.extract_strided_slice %97 {offsets = [0, 256], sizes = [16, 256], strides = [1, 1]} : vector<16x512xf32> to vector<16x256xf32>
    %99 = tpu.concatenate %94, %96, %98 in 0 : vector<16x256xf32>, vector<16x256xf32>, vector<16x256xf32> -> vector<48x256xf32>
    %100 = arith.truncf %99 : vector<48x256xf32> to vector<48x256xbf16>
    %c1_53 = arith.constant 1 : index
    %c0_54 = arith.constant 0 : index
    %c0_55 = arith.constant 0 : index
    %101 = vector.load %arg5[%c1_53, %c0_54, %c0_55] : memref<3x32x48xbf16, #tpu.memory_space<vmem>>, vector<1x32x48xbf16>
    %102 = vector.shape_cast %101 : vector<1x32x48xbf16> to vector<32x48xbf16>
    %cst_56 = arith.constant dense<0.000000e+00> : vector<32x256xf32>
    %103 = tpu.matmul %102, %100, %cst_56 {dimension_numbers = #tpu.dot_dimension_numbers<[1], [0], [0], [1], [0, 0, 1, 1], [], []>} : vector<32x48xbf16>, vector<48x256xbf16>, vector<32x256xf32> -> vector<32x256xf32>
    %104 = arith.addf %92, %103 : vector<32x256xf32>
    %c480_i32_57 = arith.constant 480 : i32
    %105 = tpu.dynamic_rotate %40 by %c480_i32_57 dim 1 : vector<16x512xf32>, i32 -> vector<16x512xf32>
    %106 = vector.extract_strided_slice %105 {offsets = [0, 256], sizes = [16, 256], strides = [1, 1]} : vector<16x512xf32> to vector<16x256xf32>
    %c479_i32_58 = arith.constant 479 : i32
    %107 = tpu.dynamic_rotate %40 by %c479_i32_58 dim 1 : vector<16x512xf32>, i32 -> vector<16x512xf32>
    %108 = vector.extract_strided_slice %107 {offsets = [0, 256], sizes = [16, 256], strides = [1, 1]} : vector<16x512xf32> to vector<16x256xf32>
    %c478_i32_59 = arith.constant 478 : i32
    %109 = tpu.dynamic_rotate %40 by %c478_i32_59 dim 1 : vector<16x512xf32>, i32 -> vector<16x512xf32>
    %110 = vector.extract_strided_slice %109 {offsets = [0, 256], sizes = [16, 256], strides = [1, 1]} : vector<16x512xf32> to vector<16x256xf32>
    %111 = tpu.concatenate %106, %108, %110 in 0 : vector<16x256xf32>, vector<16x256xf32>, vector<16x256xf32> -> vector<48x256xf32>
    %112 = arith.truncf %111 : vector<48x256xf32> to vector<48x256xbf16>
    %c2_60 = arith.constant 2 : index
    %c0_61 = arith.constant 0 : index
    %c0_62 = arith.constant 0 : index
    %113 = vector.load %arg5[%c2_60, %c0_61, %c0_62] : memref<3x32x48xbf16, #tpu.memory_space<vmem>>, vector<1x32x48xbf16>
    %114 = vector.shape_cast %113 : vector<1x32x48xbf16> to vector<32x48xbf16>
    %cst_63 = arith.constant dense<0.000000e+00> : vector<32x256xf32>
    %115 = tpu.matmul %114, %112, %cst_63 {dimension_numbers = #tpu.dot_dimension_numbers<[1], [0], [0], [1], [0, 0, 1, 1], [], []>} : vector<32x48xbf16>, vector<48x256xbf16>, vector<32x256xf32> -> vector<32x256xf32>
    %116 = arith.addf %104, %115 : vector<32x256xf32>
    %117 = vector.broadcast %41 : vector<32x1xf32> to vector<32x256xf32>
    %118 = arith.addf %116, %117 : vector<32x256xf32>
    %cst_64 = arith.constant 0.000000e+00 : f32
    %119 = vector.broadcast %cst_64 : f32 to vector<32x256xf32>
    %120 = arith.cmpf oge, %118, %119 : vector<32x256xf32>
    %cst_65 = arith.constant 2.000000e-01 : f32
    %121 = vector.broadcast %cst_65 : f32 to vector<32x256xf32>
    %122 = arith.mulf %121, %118 : vector<32x256xf32>
    %123 = arith.select %120, %118, %122 : vector<32x256xi1>, vector<32x256xf32>
    %124 = tpu.concatenate %82, %123 in 1 : vector<32x256xf32>, vector<32x256xf32> -> vector<32x512xf32>
    %c0_66 = arith.constant 0 : index
    %c0_67 = arith.constant 0 : index
    %125 = vector.load %arg8[%c0_66, %c0_67] : memref<64x1xf32, #tpu.memory_space<vmem>>, vector<64x1xf32>
    %126 = vector.extract_strided_slice %124 {offsets = [0, 0], sizes = [32, 256], strides = [1, 1]} : vector<32x512xf32> to vector<32x256xf32>
    %c511_i32_68 = arith.constant 511 : i32
    %127 = tpu.dynamic_rotate %124 by %c511_i32_68 dim 1 : vector<32x512xf32>, i32 -> vector<32x512xf32>
    %128 = vector.extract_strided_slice %127 {offsets = [0, 0], sizes = [32, 256], strides = [1, 1]} : vector<32x512xf32> to vector<32x256xf32>
    %c510_i32_69 = arith.constant 510 : i32
    %129 = tpu.dynamic_rotate %124 by %c510_i32_69 dim 1 : vector<32x512xf32>, i32 -> vector<32x512xf32>
    %130 = vector.extract_strided_slice %129 {offsets = [0, 0], sizes = [32, 256], strides = [1, 1]} : vector<32x512xf32> to vector<32x256xf32>
    %131 = tpu.concatenate %126, %128, %130 in 0 : vector<32x256xf32>, vector<32x256xf32>, vector<32x256xf32> -> vector<96x256xf32>
    %132 = arith.truncf %131 : vector<96x256xf32> to vector<96x256xbf16>
    %c0_70 = arith.constant 0 : index
    %c0_71 = arith.constant 0 : index
    %c0_72 = arith.constant 0 : index
    %133 = vector.load %arg7[%c0_70, %c0_71, %c0_72] : memref<3x64x96xbf16, #tpu.memory_space<vmem>>, vector<1x64x96xbf16>
    %134 = vector.shape_cast %133 : vector<1x64x96xbf16> to vector<64x96xbf16>
    %cst_73 = arith.constant dense<0.000000e+00> : vector<64x256xf32>
    %135 = tpu.matmul %134, %132, %cst_73 {dimension_numbers = #tpu.dot_dimension_numbers<[1], [0], [0], [1], [0, 0, 1, 1], [], []>} : vector<64x96xbf16>, vector<96x256xbf16>, vector<64x256xf32> -> vector<64x256xf32>
    %c496_i32_74 = arith.constant 496 : i32
    %136 = tpu.dynamic_rotate %124 by %c496_i32_74 dim 1 : vector<32x512xf32>, i32 -> vector<32x512xf32>
    %137 = vector.extract_strided_slice %136 {offsets = [0, 0], sizes = [32, 256], strides = [1, 1]} : vector<32x512xf32> to vector<32x256xf32>
    %c495_i32_75 = arith.constant 495 : i32
    %138 = tpu.dynamic_rotate %124 by %c495_i32_75 dim 1 : vector<32x512xf32>, i32 -> vector<32x512xf32>
    %139 = vector.extract_strided_slice %138 {offsets = [0, 0], sizes = [32, 256], strides = [1, 1]} : vector<32x512xf32> to vector<32x256xf32>
    %c494_i32_76 = arith.constant 494 : i32
    %140 = tpu.dynamic_rotate %124 by %c494_i32_76 dim 1 : vector<32x512xf32>, i32 -> vector<32x512xf32>
    %141 = vector.extract_strided_slice %140 {offsets = [0, 0], sizes = [32, 256], strides = [1, 1]} : vector<32x512xf32> to vector<32x256xf32>
    %142 = tpu.concatenate %137, %139, %141 in 0 : vector<32x256xf32>, vector<32x256xf32>, vector<32x256xf32> -> vector<96x256xf32>
    %143 = arith.truncf %142 : vector<96x256xf32> to vector<96x256xbf16>
    %c1_77 = arith.constant 1 : index
    %c0_78 = arith.constant 0 : index
    %c0_79 = arith.constant 0 : index
    %144 = vector.load %arg7[%c1_77, %c0_78, %c0_79] : memref<3x64x96xbf16, #tpu.memory_space<vmem>>, vector<1x64x96xbf16>
    %145 = vector.shape_cast %144 : vector<1x64x96xbf16> to vector<64x96xbf16>
    %cst_80 = arith.constant dense<0.000000e+00> : vector<64x256xf32>
    %146 = tpu.matmul %145, %143, %cst_80 {dimension_numbers = #tpu.dot_dimension_numbers<[1], [0], [0], [1], [0, 0, 1, 1], [], []>} : vector<64x96xbf16>, vector<96x256xbf16>, vector<64x256xf32> -> vector<64x256xf32>
    %147 = arith.addf %135, %146 : vector<64x256xf32>
    %c480_i32_81 = arith.constant 480 : i32
    %148 = tpu.dynamic_rotate %124 by %c480_i32_81 dim 1 : vector<32x512xf32>, i32 -> vector<32x512xf32>
    %149 = vector.extract_strided_slice %148 {offsets = [0, 0], sizes = [32, 256], strides = [1, 1]} : vector<32x512xf32> to vector<32x256xf32>
    %c479_i32_82 = arith.constant 479 : i32
    %150 = tpu.dynamic_rotate %124 by %c479_i32_82 dim 1 : vector<32x512xf32>, i32 -> vector<32x512xf32>
    %151 = vector.extract_strided_slice %150 {offsets = [0, 0], sizes = [32, 256], strides = [1, 1]} : vector<32x512xf32> to vector<32x256xf32>
    %c478_i32_83 = arith.constant 478 : i32
    %152 = tpu.dynamic_rotate %124 by %c478_i32_83 dim 1 : vector<32x512xf32>, i32 -> vector<32x512xf32>
    %153 = vector.extract_strided_slice %152 {offsets = [0, 0], sizes = [32, 256], strides = [1, 1]} : vector<32x512xf32> to vector<32x256xf32>
    %154 = tpu.concatenate %149, %151, %153 in 0 : vector<32x256xf32>, vector<32x256xf32>, vector<32x256xf32> -> vector<96x256xf32>
    %155 = arith.truncf %154 : vector<96x256xf32> to vector<96x256xbf16>
    %c2_84 = arith.constant 2 : index
    %c0_85 = arith.constant 0 : index
    %c0_86 = arith.constant 0 : index
    %156 = vector.load %arg7[%c2_84, %c0_85, %c0_86] : memref<3x64x96xbf16, #tpu.memory_space<vmem>>, vector<1x64x96xbf16>
    %157 = vector.shape_cast %156 : vector<1x64x96xbf16> to vector<64x96xbf16>
    %cst_87 = arith.constant dense<0.000000e+00> : vector<64x256xf32>
    %158 = tpu.matmul %157, %155, %cst_87 {dimension_numbers = #tpu.dot_dimension_numbers<[1], [0], [0], [1], [0, 0, 1, 1], [], []>} : vector<64x96xbf16>, vector<96x256xbf16>, vector<64x256xf32> -> vector<64x256xf32>
    %159 = arith.addf %147, %158 : vector<64x256xf32>
    %160 = vector.broadcast %125 : vector<64x1xf32> to vector<64x256xf32>
    %161 = arith.addf %159, %160 : vector<64x256xf32>
    %cst_88 = arith.constant 0.000000e+00 : f32
    %162 = vector.broadcast %cst_88 : f32 to vector<64x256xf32>
    %163 = arith.cmpf oge, %161, %162 : vector<64x256xf32>
    %cst_89 = arith.constant 2.000000e-01 : f32
    %164 = vector.broadcast %cst_89 : f32 to vector<64x256xf32>
    %165 = arith.mulf %164, %161 : vector<64x256xf32>
    %166 = arith.select %163, %161, %165 : vector<64x256xi1>, vector<64x256xf32>
    %c0_90 = arith.constant 0 : index
    %c0_91 = arith.constant 0 : index
    %167 = vector.load %arg9[%c0_90, %c0_91] : memref<64x512xf32, #tpu.memory_space<vmem>>, vector<64x256xf32>
    tpu.vector_store %arg9[%c0_90, %c0_91], %166 {strides = array<i32>} : memref<64x512xf32, #tpu.memory_space<vmem>>, vector<64x256xf32>,
    %168 = vector.extract_strided_slice %124 {offsets = [0, 256], sizes = [32, 256], strides = [1, 1]} : vector<32x512xf32> to vector<32x256xf32>
    %c511_i32_92 = arith.constant 511 : i32
    %169 = tpu.dynamic_rotate %124 by %c511_i32_92 dim 1 : vector<32x512xf32>, i32 -> vector<32x512xf32>
    %170 = vector.extract_strided_slice %169 {offsets = [0, 256], sizes = [32, 256], strides = [1, 1]} : vector<32x512xf32> to vector<32x256xf32>
    %c510_i32_93 = arith.constant 510 : i32
    %171 = tpu.dynamic_rotate %124 by %c510_i32_93 dim 1 : vector<32x512xf32>, i32 -> vector<32x512xf32>
    %172 = vector.extract_strided_slice %171 {offsets = [0, 256], sizes = [32, 256], strides = [1, 1]} : vector<32x512xf32> to vector<32x256xf32>
    %173 = tpu.concatenate %168, %170, %172 in 0 : vector<32x256xf32>, vector<32x256xf32>, vector<32x256xf32> -> vector<96x256xf32>
    %174 = arith.truncf %173 : vector<96x256xf32> to vector<96x256xbf16>
    %c0_94 = arith.constant 0 : index
    %c0_95 = arith.constant 0 : index
    %c0_96 = arith.constant 0 : index
    %175 = vector.load %arg7[%c0_94, %c0_95, %c0_96] : memref<3x64x96xbf16, #tpu.memory_space<vmem>>, vector<1x64x96xbf16>
    %176 = vector.shape_cast %175 : vector<1x64x96xbf16> to vector<64x96xbf16>
    %cst_97 = arith.constant dense<0.000000e+00> : vector<64x256xf32>
    %177 = tpu.matmul %176, %174, %cst_97 {dimension_numbers = #tpu.dot_dimension_numbers<[1], [0], [0], [1], [0, 0, 1, 1], [], []>} : vector<64x96xbf16>, vector<96x256xbf16>, vector<64x256xf32> -> vector<64x256xf32>
    %c496_i32_98 = arith.constant 496 : i32
    %178 = tpu.dynamic_rotate %124 by %c496_i32_98 dim 1 : vector<32x512xf32>, i32 -> vector<32x512xf32>
    %179 = vector.extract_strided_slice %178 {offsets = [0, 256], sizes = [32, 256], strides = [1, 1]} : vector<32x512xf32> to vector<32x256xf32>
    %c495_i32_99 = arith.constant 495 : i32
    %180 = tpu.dynamic_rotate %124 by %c495_i32_99 dim 1 : vector<32x512xf32>, i32 -> vector<32x512xf32>
    %181 = vector.extract_strided_slice %180 {offsets = [0, 256], sizes = [32, 256], strides = [1, 1]} : vector<32x512xf32> to vector<32x256xf32>
    %c494_i32_100 = arith.constant 494 : i32
    %182 = tpu.dynamic_rotate %124 by %c494_i32_100 dim 1 : vector<32x512xf32>, i32 -> vector<32x512xf32>
    %183 = vector.extract_strided_slice %182 {offsets = [0, 256], sizes = [32, 256], strides = [1, 1]} : vector<32x512xf32> to vector<32x256xf32>
    %184 = tpu.concatenate %179, %181, %183 in 0 : vector<32x256xf32>, vector<32x256xf32>, vector<32x256xf32> -> vector<96x256xf32>
    %185 = arith.truncf %184 : vector<96x256xf32> to vector<96x256xbf16>
    %c1_101 = arith.constant 1 : index
    %c0_102 = arith.constant 0 : index
    %c0_103 = arith.constant 0 : index
    %186 = vector.load %arg7[%c1_101, %c0_102, %c0_103] : memref<3x64x96xbf16, #tpu.memory_space<vmem>>, vector<1x64x96xbf16>
    %187 = vector.shape_cast %186 : vector<1x64x96xbf16> to vector<64x96xbf16>
    %cst_104 = arith.constant dense<0.000000e+00> : vector<64x256xf32>
    %188 = tpu.matmul %187, %185, %cst_104 {dimension_numbers = #tpu.dot_dimension_numbers<[1], [0], [0], [1], [0, 0, 1, 1], [], []>} : vector<64x96xbf16>, vector<96x256xbf16>, vector<64x256xf32> -> vector<64x256xf32>
    %189 = arith.addf %177, %188 : vector<64x256xf32>
    %c480_i32_105 = arith.constant 480 : i32
    %190 = tpu.dynamic_rotate %124 by %c480_i32_105 dim 1 : vector<32x512xf32>, i32 -> vector<32x512xf32>
    %191 = vector.extract_strided_slice %190 {offsets = [0, 256], sizes = [32, 256], strides = [1, 1]} : vector<32x512xf32> to vector<32x256xf32>
    %c479_i32_106 = arith.constant 479 : i32
    %192 = tpu.dynamic_rotate %124 by %c479_i32_106 dim 1 : vector<32x512xf32>, i32 -> vector<32x512xf32>
    %193 = vector.extract_strided_slice %192 {offsets = [0, 256], sizes = [32, 256], strides = [1, 1]} : vector<32x512xf32> to vector<32x256xf32>
    %c478_i32_107 = arith.constant 478 : i32
    %194 = tpu.dynamic_rotate %124 by %c478_i32_107 dim 1 : vector<32x512xf32>, i32 -> vector<32x512xf32>
    %195 = vector.extract_strided_slice %194 {offsets = [0, 256], sizes = [32, 256], strides = [1, 1]} : vector<32x512xf32> to vector<32x256xf32>
    %196 = tpu.concatenate %191, %193, %195 in 0 : vector<32x256xf32>, vector<32x256xf32>, vector<32x256xf32> -> vector<96x256xf32>
    %197 = arith.truncf %196 : vector<96x256xf32> to vector<96x256xbf16>
    %c2_108 = arith.constant 2 : index
    %c0_109 = arith.constant 0 : index
    %c0_110 = arith.constant 0 : index
    %198 = vector.load %arg7[%c2_108, %c0_109, %c0_110] : memref<3x64x96xbf16, #tpu.memory_space<vmem>>, vector<1x64x96xbf16>
    %199 = vector.shape_cast %198 : vector<1x64x96xbf16> to vector<64x96xbf16>
    %cst_111 = arith.constant dense<0.000000e+00> : vector<64x256xf32>
    %200 = tpu.matmul %199, %197, %cst_111 {dimension_numbers = #tpu.dot_dimension_numbers<[1], [0], [0], [1], [0, 0, 1, 1], [], []>} : vector<64x96xbf16>, vector<96x256xbf16>, vector<64x256xf32> -> vector<64x256xf32>
    %201 = arith.addf %189, %200 : vector<64x256xf32>
    %202 = vector.broadcast %125 : vector<64x1xf32> to vector<64x256xf32>
    %203 = arith.addf %201, %202 : vector<64x256xf32>
    %cst_112 = arith.constant 0.000000e+00 : f32
    %204 = vector.broadcast %cst_112 : f32 to vector<64x256xf32>
    %205 = arith.cmpf oge, %203, %204 : vector<64x256xf32>
    %cst_113 = arith.constant 2.000000e-01 : f32
    %206 = vector.broadcast %cst_113 : f32 to vector<64x256xf32>
    %207 = arith.mulf %206, %203 : vector<64x256xf32>
    %208 = arith.select %205, %203, %207 : vector<64x256xi1>, vector<64x256xf32>
    %c0_114 = arith.constant 0 : index
    %c256 = arith.constant 256 : index
    %209 = vector.load %arg9[%c0_114, %c256] : memref<64x512xf32, #tpu.memory_space<vmem>>, vector<64x256xf32>
    tpu.vector_store %arg9[%c0_114, %c256], %208 {strides = array<i32>} : memref<64x512xf32, #tpu.memory_space<vmem>>, vector<64x256xf32>,
    return
  }
}

</mosaic_0001>

<llo_original>
// kernel: latent4lsnd_forward.1
$region0: #{latent4lsnd_forward.1}
  #allocation0 [shape = 'u32[]', space=smem, size = 0x4, offset = 0x4, fixed_abs, tag = 'smem constant byte address 0x4 - core index']
  #allocation1 [shape = 'u32[144,128]{1,0:T(1,128)}', space=vmem, size = 0x12000, scoped, tag = 'internal scratch']
  %s0 = inlined_call_operand.vmem [shape: f32[8,512], index: 0, kind: input, shape index: {}]
  %s1 = inlined_call_operand.vmem [shape: bf16[8,72], index: 1, kind: input, shape index: {}]
  %s2 = inlined_call_operand.vmem [shape: f32[8,1], index: 2, kind: input, shape index: {}]
  %s3 = inlined_call_operand.vmem [shape: bf16[16,72], index: 3, kind: input, shape index: {}]
  %s4 = inlined_call_operand.vmem [shape: f32[16,1], index: 4, kind: input, shape index: {}]
  %s5 = inlined_call_operand.vmem [shape: bf16[3,32,48], index: 5, kind: input, shape index: {}]
  %s6 = inlined_call_operand.vmem [shape: f32[32,1], index: 6, kind: input, shape index: {}]
  %s7 = inlined_call_operand.vmem [shape: bf16[3,64,96], index: 7, kind: input, shape index: {}]
  %s8 = inlined_call_operand.vmem [shape: f32[64,1], index: 8, kind: input, shape index: {}]
  %s9 = inlined_call_operand.vmem [shape: f32[64,512], index: 9, kind: output, shape index: {}]
  %s10 = sld [smem:[#allocation0]]
  $region46: #{latent4lsnd_forward.1} parent=0
    _
  %s12 = ssub.s32 1, %s10
  %s13 = scalar_select 0, %s12, %s10
  // Predicated region
  $region2: #{latent4lsnd_forward.1} parent=0 // pred_check
    _
  $region3: #{latent4lsnd_forward.1} parent=0 // pred_check_branch
    %15 = sbr.rel (0) target = $region5
  $region4: #{latent4lsnd_forward.1} parent=0 // pred_region
    _
  $region5: #{latent4lsnd_forward.1} parent=0 // pred_fallthru
    _
  // Predicated region
  $region6: #{latent4lsnd_forward.1} parent=0 // pred_check
    _
  $region7: #{latent4lsnd_forward.1} parent=0 // pred_check_branch
    %17 = sbr.rel (0) target = $region9
  $region8: #{latent4lsnd_forward.1} parent=0 // pred_region
    _
  $region9: #{latent4lsnd_forward.1} parent=0 // pred_fallthru
    _
  // Predicated region
  $region10: #{latent4lsnd_forward.1} parent=0 // pred_check
    _
  $region11: #{latent4lsnd_forward.1} parent=0 // pred_check_branch
    %19 = sbr.rel (0) target = $region13
  $region12: #{latent4lsnd_forward.1} parent=0 // pred_region
    _
  $region13: #{latent4lsnd_forward.1} parent=0 // pred_fallthru
    _
  // Predicated region
  $region14: #{latent4lsnd_forward.1} parent=0 // pred_check
    _
  $region15: #{latent4lsnd_forward.1} parent=0 // pred_check_branch
    %21 = sbr.rel (0) target = $region17
  $region16: #{latent4lsnd_forward.1} parent=0 // pred_region
    _
  $region17: #{latent4lsnd_forward.1} parent=0 // pred_fallthru
    _
  // Predicated region
  $region18: #{latent4lsnd_forward.1} parent=0 // pred_check
    _
  $region19: #{latent4lsnd_forward.1} parent=0 // pred_check_branch
    %23 = sbr.rel (0) target = $region21
  $region20: #{latent4lsnd_forward.1} parent=0 // pred_region
    _
  $region21: #{latent4lsnd_forward.1} parent=0 // pred_fallthru
    _
  // Predicated region
  $region22: #{latent4lsnd_forward.1} parent=0 // pred_check
    _
  $region23: #{latent4lsnd_forward.1} parent=0 // pred_check_branch
    %25 = sbr.rel (0) target = $region25
  $region24: #{latent4lsnd_forward.1} parent=0 // pred_region
    _
  $region25: #{latent4lsnd_forward.1} parent=0 // pred_fallthru
    _
  // Predicated region
  $region26: #{latent4lsnd_forward.1} parent=0 // pred_check
    _
  $region27: #{latent4lsnd_forward.1} parent=0 // pred_check_branch
    %27 = sbr.rel (0) target = $region29
  $region28: #{latent4lsnd_forward.1} parent=0 // pred_region
    _
  $region29: #{latent4lsnd_forward.1} parent=0 // pred_fallthru
    _
  // Predicated region
  $region30: #{latent4lsnd_forward.1} parent=0 // pred_check
    _
  $region31: #{latent4lsnd_forward.1} parent=0 // pred_check_branch
    %29 = sbr.rel (0) target = $region33
  $region32: #{latent4lsnd_forward.1} parent=0 // pred_region
    _
  $region33: #{latent4lsnd_forward.1} parent=0 // pred_fallthru
    _
  // Predicated region
  $region34: #{latent4lsnd_forward.1} parent=0 // pred_check
    _
  $region35: #{latent4lsnd_forward.1} parent=0 // pred_check_branch
    %31 = sbr.rel (0) target = $region37
  $region36: #{latent4lsnd_forward.1} parent=0 // pred_region
    _
  $region37: #{latent4lsnd_forward.1} parent=0 // pred_fallthru
    _
  %v33 = vld [vmem:[%s0] sm:$0xff]
  %v34 = vld [vmem:[%s0 + $0x8] sm:$0xff]
  %v35 = vld [vmem:[%s0 + $0x10] sm:$0xff]
  %v36 = vld [vmem:[%s0 + $0x18] sm:$0xff]
  %v37 = vld [vmem:[%s2] sm:$0xff]
  %38 = vrot.lane.b32.xlu0 %v33, 127
  %v39 = vpop.permute.xlu0 %38
  %40 = vrot.lane.b32.xlu0 %v34, 127
  %v41 = vpop.permute.xlu0 %40
  %42 = vrot.lane.b32.xlu0 %v35, 127
  %v43 = vpop.permute.xlu0 %42
  %44 = vrot.lane.b32.xlu0 %v36, 127
  %v45 = vpop.permute.xlu0 %44
  %v46 = vlaneseq
  %v47 = vand.u32 %v46, 127
  %vm48 = vcmp.lt.s32.totalorder %v47, 127
  %v49 = vsel %vm48, %v43, %v45
  %v50 = vsel %vm48, %v41, %v43
  %v51 = vsel %vm48, %v39, %v41
  %v52 = vsel %vm48, %v45, %v39
  %53 = vrot.lane.b32.xlu0 %v33, 126
  %v54 = vpop.permute.xlu0 %53
  %55 = vrot.lane.b32.xlu0 %v34, 126
  %v56 = vpop.permute.xlu0 %55
  %57 = vrot.lane.b32.xlu0 %v35, 126
  %v58 = vpop.permute.xlu0 %57
  %59 = vrot.lane.b32.xlu0 %v36, 126
  %v60 = vpop.permute.xlu0 %59
  %vm61 = vcmp.lt.s32.totalorder %v47, 126
  %v62 = vsel %vm61, %v58, %v60
  %v63 = vsel %vm61, %v56, %v58
  %v64 = vsel %vm61, %v54, %v56
  %v65 = vsel %vm61, %v60, %v54
  %66 = vrot.lane.b32.xlu0 %v33, 112
  %v67 = vpop.permute.xlu0 %66
  %68 = vrot.lane.b32.xlu0 %v34, 112
  %v69 = vpop.permute.xlu0 %68
  %70 = vrot.lane.b32.xlu0 %v35, 112
  %v71 = vpop.permute.xlu0 %70
  %72 = vrot.lane.b32.xlu0 %v36, 112
  %v73 = vpop.permute.xlu0 %72
  %vm74 = vcmp.lt.s32.totalorder %v47, 112
  %v75 = vsel %vm74, %v71, %v73
  %v76 = vsel %vm74, %v69, %v71
  %v77 = vsel %vm74, %v67, %v69
  %v78 = vsel %vm74, %v73, %v67
  %79 = vrot.lane.b32.xlu0 %v33, 111
  %v80 = vpop.permute.xlu0 %79
  %81 = vrot.lane.b32.xlu0 %v34, 111
  %v82 = vpop.permute.xlu0 %81
  %83 = vrot.lane.b32.xlu0 %v35, 111
  %v84 = vpop.permute.xlu0 %83
  %85 = vrot.lane.b32.xlu0 %v36, 111
  %v86 = vpop.permute.xlu0 %85
  %vm87 = vcmp.lt.s32.totalorder %v47, 111
  %v88 = vsel %vm87, %v84, %v86
  %v89 = vsel %vm87, %v82, %v84
  %v90 = vsel %vm87, %v80, %v82
  %v91 = vsel %vm87, %v86, %v80
  %92 = vrot.lane.b32.xlu0 %v33, 110
  %v93 = vpop.permute.xlu0 %92
  %94 = vrot.lane.b32.xlu0 %v34, 110
  %v95 = vpop.permute.xlu0 %94
  %96 = vrot.lane.b32.xlu0 %v35, 110
  %v97 = vpop.permute.xlu0 %96
  %98 = vrot.lane.b32.xlu0 %v36, 110
  %v99 = vpop.permute.xlu0 %98
  %vm100 = vcmp.lt.s32.totalorder %v47, 110
  %v101 = vsel %vm100, %v97, %v99
  %v102 = vsel %vm100, %v95, %v97
  %v103 = vsel %vm100, %v93, %v95
  %v104 = vsel %vm100, %v99, %v93
  %105 = vrot.lane.b32.xlu0 %v33, 96
  %v106 = vpop.permute.xlu0 %105
  %107 = vrot.lane.b32.xlu0 %v34, 96
  %v108 = vpop.permute.xlu0 %107
  %109 = vrot.lane.b32.xlu0 %v35, 96
  %v110 = vpop.permute.xlu0 %109
  %111 = vrot.lane.b32.xlu0 %v36, 96
  %v112 = vpop.permute.xlu0 %111
  %vm113 = vcmp.lt.s32.totalorder %v47, 96
  %v114 = vsel %vm113, %v110, %v112
  %v115 = vsel %vm113, %v108, %v110
  %v116 = vsel %vm113, %v106, %v108
  %v117 = vsel %vm113, %v112, %v106
  %118 = vrot.lane.b32.xlu0 %v33, 95
  %v119 = vpop.permute.xlu0 %118
  %120 = vrot.lane.b32.xlu0 %v34, 95
  %v121 = vpop.permute.xlu0 %120
  %122 = vrot.lane.b32.xlu0 %v35, 95
  %v123 = vpop.permute.xlu0 %122
  %124 = vrot.lane.b32.xlu0 %v36, 95
  %v125 = vpop.permute.xlu0 %124
  %vm126 = vcmp.lt.s32.totalorder %v47, 95
  %v127 = vsel %vm126, %v123, %v125
  %v128 = vsel %vm126, %v121, %v123
  %v129 = vsel %vm126, %v119, %v121
  %v130 = vsel %vm126, %v125, %v119
  %131 = vrot.lane.b32.xlu0 %v33, 94
  %v132 = vpop.permute.xlu0 %131
  %133 = vrot.lane.b32.xlu0 %v34, 94
  %v134 = vpop.permute.xlu0 %133
  %135 = vrot.lane.b32.xlu0 %v35, 94
  %v136 = vpop.permute.xlu0 %135
  %137 = vrot.lane.b32.xlu0 %v36, 94
  %v138 = vpop.permute.xlu0 %137
  %vm139 = vcmp.lt.s32.totalorder %v47, 94
  %v140 = vsel %vm139, %v136, %v138
  %v141 = vsel %vm139, %v134, %v136
  %v142 = vsel %vm139, %v132, %v134
  %v143 = vsel %vm139, %v138, %v132
  %v144 = vpack.c.bf16 %v51, %v33
  %v145 = vpack.c.bf16 %v50, %v34
  %v146 = vpack.c.bf16 %v49, %v35
  %v147 = vpack.c.bf16 %v52, %v36
  %v148 = vpack.c.bf16 %v77, %v64
  %v149 = vpack.c.bf16 %v76, %v63
  %v150 = vpack.c.bf16 %v75, %v62
  %v151 = vpack.c.bf16 %v78, %v65
  %v152 = vpack.c.bf16 %v103, %v90
  %v153 = vpack.c.bf16 %v102, %v89
  %v154 = vpack.c.bf16 %v101, %v88
  %v155 = vpack.c.bf16 %v104, %v91
  %v156 = vpack.c.bf16 %v129, %v116
  %v157 = vpack.c.bf16 %v128, %v115
  %v158 = vpack.c.bf16 %v127, %v114
  %v159 = vpack.c.bf16 %v130, %v117
  %v160 = vpack.c.bf16 %v142, %v142
  %v161 = vpack.c.bf16 %v141, %v141
  %v162 = vpack.c.bf16 %v140, %v140
  %v163 = vpack.c.bf16 %v143, %v143
  %v164 = vld [vmem:[%s1] sm:$0xf]
  %166 = vset.pattern.permute.xlu0 0
  %167 = vperm.xlu0 %166, %v37
  %v168 = vpop.permute.xlu0 %167
  %vm170 = vcmask 588800
  %v172 = vsel %vm170, %v164, 0
  %vm174 = vcmask 1043456
  %v176 = vsel %vm174, %v160, 0
  %v179 = vsel %vm174, %v161, 0
  %v182 = vsel %vm174, %v162, 0
  %v185 = vsel %vm174, %v163, 0
  %187 = vmatprep.subr.bf16.mxu0 %v145
  %188 = vmatpush1.bf16.msra.mxu0 %v144
  %189 = vmatprep.subr.bf16.mxu0 %v149
  %190 = vmatpush1.bf16.msra.mxu0 %v148
  %191 = vmatprep.subr.bf16.mxu0 %v153
  %192 = vmatpush1.bf16.msra.mxu0 %v152
  %193 = vmatprep.subr.bf16.mxu0 %v157
  %194 = vmatpush1.bf16.msra.mxu0 %v156
  %195 = vmatprep.subr.bf16.mxu0 %v179
  %196 = vmatpush1.bf16.msra.mxu0 %v176
  %197 = vmatprep.subr.bf16.mxu0 0
  %198 = vmatpush1.bf16.msra.mxu0 0
  %199 = vmatprep.subr.bf16.mxu0 0
  %200 = vmatpush1.bf16.msra.mxu0 0
  %201 = vmatprep.subr.bf16.mxu0 0
  %202 = vmatpush1.bf16.msra.mxu0 0
  %203 = vmatprep.subr.bf16.mxu0 0
  %204 = vmatpush1.bf16.msra.mxu0 0
  %205 = vmatprep.subr.bf16.mxu0 0
  %206 = vmatpush1.bf16.msra.mxu0 0
  %207 = vmatprep.subr.bf16.mxu0 0
  %208 = vmatpush1.bf16.msra.mxu0 0
  %209 = vmatprep.subr.bf16.mxu0 0
  %210 = vmatpush1.bf16.msra.mxu0 0
  %211 = vmatprep.subr.bf16.mxu0 0
  %212 = vmatpush1.bf16.msra.mxu0 0
  %213 = vmatprep.subr.bf16.mxu0 0
  %214 = vmatpush1.bf16.msra.mxu0 0
  %215 = vmatprep.subr.bf16.mxu0 0
  %216 = vmatpush1.bf16.msra.mxu0 0
  %217 = vmatprep.subr.bf16.mxu0 0
  %218 = vmatpush1.bf16.msra.mxu0 0
  %219 = vmatprep.mubr.bf16.mxu0 0
  %220 = vmatmul.mubr.bf16.gmra.mrb[0].mxu0 %v172
  %v221 = vpop.f32.mrb[0].mxu0
  %v222 = vadd.f32 %v168, %v221
  %v223 = vpop.f32.mrb[0].mxu0
  %v224 = vadd.f32 %v168, %v223
  %v225 = vpop.f32.mrb[0].mxu0
  %v226 = vpop.f32.mrb[0].mxu0
  %227 = vdwg.mxu0
  %228 = vmatprep.subr.bf16.mxu0 %v147
  %229 = vmatpush1.bf16.msra.mxu0 %v146
  %230 = vmatprep.subr.bf16.mxu0 %v151
  %231 = vmatpush1.bf16.msra.mxu0 %v150
  %232 = vmatprep.subr.bf16.mxu0 %v155
  %233 = vmatpush1.bf16.msra.mxu0 %v154
  %234 = vmatprep.subr.bf16.mxu0 %v159
  %235 = vmatpush1.bf16.msra.mxu0 %v158
  %236 = vmatprep.subr.bf16.mxu0 %v185
  %237 = vmatpush1.bf16.msra.mxu0 %v182
  %238 = vmatprep.subr.bf16.mxu0 0
  %239 = vmatpush1.bf16.msra.mxu0 0
  %240 = vmatprep.subr.bf16.mxu0 0
  %241 = vmatpush1.bf16.msra.mxu0 0
  %242 = vmatprep.subr.bf16.mxu0 0
  %243 = vmatpush1.bf16.msra.mxu0 0
  %244 = vmatprep.subr.bf16.mxu0 0
  %245 = vmatpush1.bf16.msra.mxu0 0
  %246 = vmatprep.subr.bf16.mxu0 0
  %247 = vmatpush1.bf16.msra.mxu0 0
  %248 = vmatprep.subr.bf16.mxu0 0
  %249 = vmatpush1.bf16.msra.mxu0 0
  %250 = vmatprep.subr.bf16.mxu0 0
  %251 = vmatpush1.bf16.msra.mxu0 0
  %252 = vmatprep.subr.bf16.mxu0 0
  %253 = vmatpush1.bf16.msra.mxu0 0
  %254 = vmatprep.subr.bf16.mxu0 0
  %255 = vmatpush1.bf16.msra.mxu0 0
  %256 = vmatprep.subr.bf16.mxu0 0
  %257 = vmatpush1.bf16.msra.mxu0 0
  %258 = vmatprep.subr.bf16.mxu0 0
  %259 = vmatpush1.bf16.msra.mxu0 0
  %260 = vmatprep.mubr.bf16.mxu0 0
  %261 = vmatmul.mubr.bf16.gmra.mrb[0].mxu0 %v172
  %v262 = vpop.f32.mrb[0].mxu0
  %v263 = vadd.f32 %v168, %v262
  %v264 = vpop.f32.mrb[0].mxu0
  %v265 = vadd.f32 %v168, %v264
  %v266 = vpop.f32.mrb[0].mxu0
  %v267 = vpop.f32.mrb[0].mxu0
  %268 = vdwg.mxu0
  %vm269 = vcmp.ge.f32.partialorder %v222, 0.0
  %vm270 = vcmp.ge.f32.partialorder %v224, 0.0
  %vm271 = vcmp.ge.f32.partialorder %v263, 0.0
  %vm272 = vcmp.ge.f32.partialorder %v265, 0.0
  %v273 = vmul.f32 %v222, 0.2
  %v274 = vmul.f32 %v224, 0.2
  %v275 = vmul.f32 %v263, 0.2
  %v276 = vmul.f32 %v265, 0.2
  %v277 = vsel %vm269, %v222, %v273
  %v278 = vsel %vm270, %v224, %v274
  %v279 = vsel %vm271, %v263, %v275
  %v280 = vsel %vm272, %v265, %v276
  %v281 = vld [vmem:[%s4] sm:$0xff]
  %v282 = vld [vmem:[%s4 + $0x8] sm:$0xff]
  %283 = vrot.lane.b32.xlu0 %v277, 127
  %v284 = vpop.permute.xlu0 %283
  %285 = vrot.lane.b32.xlu0 %v278, 127
  %v286 = vpop.permute.xlu0 %285
  %287 = vrot.lane.b32.xlu0 %v279, 127
  %v288 = vpop.permute.xlu0 %287
  %289 = vrot.lane.b32.xlu0 %v280, 127
  %v290 = vpop.permute.xlu0 %289
  %v291 = vsel %vm48, %v288, %v290
  %v292 = vsel %vm48, %v286, %v288
  %v293 = vsel %vm48, %v284, %v286
  %v294 = vsel %vm48, %v290, %v284
  %295 = vrot.lane.b32.xlu0 %v277, 126
  %v296 = vpop.permute.xlu0 %295
  %297 = vrot.lane.b32.xlu0 %v278, 126
  %v298 = vpop.permute.xlu0 %297
  %299 = vrot.lane.b32.xlu0 %v279, 126
  %v300 = vpop.permute.xlu0 %299
  %301 = vrot.lane.b32.xlu0 %v280, 126
  %v302 = vpop.permute.xlu0 %301
  %v303 = vsel %vm61, %v300, %v302
  %v304 = vsel %vm61, %v298, %v300
  %v305 = vsel %vm61, %v296, %v298
  %v306 = vsel %vm61, %v302, %v296
  %307 = vrot.lane.b32.xlu0 %v277, 112
  %v308 = vpop.permute.xlu0 %307
  %309 = vrot.lane.b32.xlu0 %v278, 112
  %v310 = vpop.permute.xlu0 %309
  %311 = vrot.lane.b32.xlu0 %v279, 112
  %v312 = vpop.permute.xlu0 %311
  %313 = vrot.lane.b32.xlu0 %v280, 112
  %v314 = vpop.permute.xlu0 %313
  %v315 = vsel %vm74, %v312, %v314
  %v316 = vsel %vm74, %v310, %v312
  %v317 = vsel %vm74, %v308, %v310
  %v318 = vsel %vm74, %v314, %v308
  %319 = vrot.lane.b32.xlu0 %v277, 111
  %v320 = vpop.permute.xlu0 %319
  %321 = vrot.lane.b32.xlu0 %v278, 111
  %v322 = vpop.permute.xlu0 %321
  %323 = vrot.lane.b32.xlu0 %v279, 111
  %v324 = vpop.permute.xlu0 %323
  %325 = vrot.lane.b32.xlu0 %v280, 111
  %v326 = vpop.permute.xlu0 %325
  %v327 = vsel %vm87, %v324, %v326
  %v328 = vsel %vm87, %v322, %v324
  %v329 = vsel %vm87, %v320, %v322
  %v330 = vsel %vm87, %v326, %v320
  %331 = vrot.lane.b32.xlu0 %v277, 110
  %v332 = vpop.permute.xlu0 %331
  %333 = vrot.lane.b32.xlu0 %v278, 110
  %v334 = vpop.permute.xlu0 %333
  %335 = vrot.lane.b32.xlu0 %v279, 110
  %v336 = vpop.permute.xlu0 %335
  %337 = vrot.lane.b32.xlu0 %v280, 110
  %v338 = vpop.permute.xlu0 %337
  %v339 = vsel %vm100, %v336, %v338
  %v340 = vsel %vm100, %v334, %v336
  %v341 = vsel %vm100, %v332, %v334
  %v342 = vsel %vm100, %v338, %v332
  %343 = vrot.lane.b32.xlu0 %v277, 96
  %v344 = vpop.permute.xlu0 %343
  %345 = vrot.lane.b32.xlu0 %v278, 96
  %v346 = vpop.permute.xlu0 %345
  %347 = vrot.lane.b32.xlu0 %v279, 96
  %v348 = vpop.permute.xlu0 %347
  %349 = vrot.lane.b32.xlu0 %v280, 96
  %v350 = vpop.permute.xlu0 %349
  %v351 = vsel %vm113, %v348, %v350
  %v352 = vsel %vm113, %v346, %v348
  %v353 = vsel %vm113, %v344, %v346
  %v354 = vsel %vm113, %v350, %v344
  %355 = vrot.lane.b32.xlu0 %v277, 95
  %v356 = vpop.permute.xlu0 %355
  %357 = vrot.lane.b32.xlu0 %v278, 95
  %v358 = vpop.permute.xlu0 %357
  %359 = vrot.lane.b32.xlu0 %v279, 95
  %v360 = vpop.permute.xlu0 %359
  %361 = vrot.lane.b32.xlu0 %v280, 95
  %v362 = vpop.permute.xlu0 %361
  %v363 = vsel %vm126, %v360, %v362
  %v364 = vsel %vm126, %v358, %v360
  %v365 = vsel %vm126, %v356, %v358
  %v366 = vsel %vm126, %v362, %v356
  %367 = vrot.lane.b32.xlu0 %v277, 94
  %v368 = vpop.permute.xlu0 %367
  %369 = vrot.lane.b32.xlu0 %v278, 94
  %v370 = vpop.permute.xlu0 %369
  %371 = vrot.lane.b32.xlu0 %v279, 94
  %v372 = vpop.permute.xlu0 %371
  %373 = vrot.lane.b32.xlu0 %v280, 94
  %v374 = vpop.permute.xlu0 %373
  %v375 = vsel %vm139, %v372, %v374
  %v376 = vsel %vm139, %v370, %v372
  %v377 = vsel %vm139, %v368, %v370
  %v378 = vsel %vm139, %v374, %v368
  %v379 = vpack.c.bf16 %v293, %v277
  %v380 = vpack.c.bf16 %v292, %v278
  %v381 = vpack.c.bf16 %v291, %v279
  %v382 = vpack.c.bf16 %v294, %v280
  %v383 = vpack.c.bf16 %v317, %v305
  %v384 = vpack.c.bf16 %v316, %v304
  %v385 = vpack.c.bf16 %v315, %v303
  %v386 = vpack.c.bf16 %v318, %v306
  %v387 = vpack.c.bf16 %v341, %v329
  %v388 = vpack.c.bf16 %v340, %v328
  %v389 = vpack.c.bf16 %v339, %v327
  %v390 = vpack.c.bf16 %v342, %v330
  %v391 = vpack.c.bf16 %v365, %v353
  %v392 = vpack.c.bf16 %v364, %v352
  %v393 = vpack.c.bf16 %v363, %v351
  %v394 = vpack.c.bf16 %v366, %v354
  %v395 = vpack.c.bf16 %v377, %v377
  %v396 = vpack.c.bf16 %v376, %v376
  %v397 = vpack.c.bf16 %v375, %v375
  %v398 = vpack.c.bf16 %v378, %v378
  %v399 = vld [vmem:[%s3] sm:$0xf]
  %v400 = vld [vmem:[%s3 + $0x4] sm:$0xf]
  %402 = vset.pattern.permute.xlu0 0
  %403 = vperm.xlu0 %402, %v281
  %v404 = vpop.permute.xlu0 %403
  %407 = vset.pattern.permute.xlu0 0
  %408 = vperm.xlu0 %407, %v282
  %v409 = vpop.permute.xlu0 %408
  %v413 = vunpack.c.l.b16 %v399
  %v414 = vunpack.c.l.b16 %v400
  %v415 = vpack.c.b16 %v414, %v413
  %v417 = vsel %vm170, %v415, 0
  %v420 = vsel %vm174, %v395, 0
  %v423 = vsel %vm174, %v396, 0
  %v426 = vsel %vm174, %v397, 0
  %v429 = vsel %vm174, %v398, 0
  %431 = vmatprep.subr.bf16.mxu0 %v380
  %432 = vmatpush1.bf16.msra.mxu0 %v379
  %433 = vmatprep.subr.bf16.mxu0 %v384
  %434 = vmatpush1.bf16.msra.mxu0 %v383
  %435 = vmatprep.subr.bf16.mxu0 %v388
  %436 = vmatpush1.bf16.msra.mxu0 %v387
  %437 = vmatprep.subr.bf16.mxu0 %v392
  %438 = vmatpush1.bf16.msra.mxu0 %v391
  %439 = vmatprep.subr.bf16.mxu0 %v423
  %440 = vmatpush1.bf16.msra.mxu0 %v420
  %441 = vmatprep.subr.bf16.mxu0 0
  %442 = vmatpush1.bf16.msra.mxu0 0
  %443 = vmatprep.subr.bf16.mxu0 0
  %444 = vmatpush1.bf16.msra.mxu0 0
  %445 = vmatprep.subr.bf16.mxu0 0
  %446 = vmatpush1.bf16.msra.mxu0 0
  %447 = vmatprep.subr.bf16.mxu0 0
  %448 = vmatpush1.bf16.msra.mxu0 0
  %449 = vmatprep.subr.bf16.mxu0 0
  %450 = vmatpush1.bf16.msra.mxu0 0
  %451 = vmatprep.subr.bf16.mxu0 0
  %452 = vmatpush1.bf16.msra.mxu0 0
  %453 = vmatprep.subr.bf16.mxu0 0
  %454 = vmatpush1.bf16.msra.mxu0 0
  %455 = vmatprep.subr.bf16.mxu0 0
  %456 = vmatpush1.bf16.msra.mxu0 0
  %457 = vmatprep.subr.bf16.mxu0 0
  %458 = vmatpush1.bf16.msra.mxu0 0
  %459 = vmatprep.subr.bf16.mxu0 0
  %460 = vmatpush1.bf16.msra.mxu0 0
  %461 = vmatprep.subr.bf16.mxu0 0
  %462 = vmatpush1.bf16.msra.mxu0 0
  %463 = vmatprep.mubr.bf16.mxu0 0
  %464 = vmatmul.mubr.bf16.gmra.mrb[0].mxu0 %v417
  %v465 = vpop.f32.mrb[0].mxu0
  %v466 = vadd.f32 %v404, %v465
  %v467 = vpop.f32.mrb[0].mxu0
  %v468 = vadd.f32 %v404, %v467
  %v469 = vpop.f32.mrb[0].mxu0
  %v470 = vadd.f32 %v409, %v469
  %v471 = vpop.f32.mrb[0].mxu0
  %v472 = vadd.f32 %v409, %v471
  %473 = vdwg.mxu0
  %474 = vmatprep.subr.bf16.mxu0 %v382
  %475 = vmatpush1.bf16.msra.mxu0 %v381
  %476 = vmatprep.subr.bf16.mxu0 %v386
  %477 = vmatpush1.bf16.msra.mxu0 %v385
  %478 = vmatprep.subr.bf16.mxu0 %v390
  %479 = vmatpush1.bf16.msra.mxu0 %v389
  %480 = vmatprep.subr.bf16.mxu0 %v394
  %481 = vmatpush1.bf16.msra.mxu0 %v393
  %482 = vmatprep.subr.bf16.mxu0 %v429
  %483 = vmatpush1.bf16.msra.mxu0 %v426
  %484 = vmatprep.subr.bf16.mxu0 0
  %485 = vmatpush1.bf16.msra.mxu0 0
  %486 = vmatprep.subr.bf16.mxu0 0
  %487 = vmatpush1.bf16.msra.mxu0 0
  %488 = vmatprep.subr.bf16.mxu0 0
  %489 = vmatpush1.bf16.msra.mxu0 0
  %490 = vmatprep.subr.bf16.mxu0 0
  %491 = vmatpush1.bf16.msra.mxu0 0
  %492 = vmatprep.subr.bf16.mxu0 0
  %493 = vmatpush1.bf16.msra.mxu0 0
  %494 = vmatprep.subr.bf16.mxu0 0
  %495 = vmatpush1.bf16.msra.mxu0 0
  %496 = vmatprep.subr.bf16.mxu0 0
  %497 = vmatpush1.bf16.msra.mxu0 0
  %498 = vmatprep.subr.bf16.mxu0 0
  %499 = vmatpush1.bf16.msra.mxu0 0
  %500 = vmatprep.subr.bf16.mxu0 0
  %501 = vmatpush1.bf16.msra.mxu0 0
  %502 = vmatprep.subr.bf16.mxu0 0
  %503 = vmatpush1.bf16.msra.mxu0 0
  %504 = vmatprep.subr.bf16.mxu0 0
  %505 = vmatpush1.bf16.msra.mxu0 0
  %506 = vmatprep.mubr.bf16.mxu0 0
  %507 = vmatmul.mubr.bf16.gmra.mrb[0].mxu0 %v417
  %v508 = vpop.f32.mrb[0].mxu0
  %v509 = vadd.f32 %v404, %v508
  %v510 = vpop.f32.mrb[0].mxu0
  %v511 = vadd.f32 %v404, %v510
  %v512 = vpop.f32.mrb[0].mxu0
  %v513 = vadd.f32 %v409, %v512
  %v514 = vpop.f32.mrb[0].mxu0
  %v515 = vadd.f32 %v409, %v514
  %516 = vdwg.mxu0
  %vm517 = vcmp.ge.f32.partialorder %v466, 0.0
  %vm518 = vcmp.ge.f32.partialorder %v468, 0.0
  %vm519 = vcmp.ge.f32.partialorder %v509, 0.0
  %vm520 = vcmp.ge.f32.partialorder %v511, 0.0
  %vm521 = vcmp.ge.f32.partialorder %v470, 0.0
  %vm522 = vcmp.ge.f32.partialorder %v472, 0.0
  %vm523 = vcmp.ge.f32.partialorder %v513, 0.0
  %vm524 = vcmp.ge.f32.partialorder %v515, 0.0
  %v525 = vmul.f32 %v466, 0.2
  %v526 = vmul.f32 %v468, 0.2
  %v527 = vmul.f32 %v509, 0.2
  %v528 = vmul.f32 %v511, 0.2
  %v529 = vmul.f32 %v470, 0.2
  %v530 = vmul.f32 %v472, 0.2
  %v531 = vmul.f32 %v513, 0.2
  %v532 = vmul.f32 %v515, 0.2
  %v533 = vsel %vm517, %v466, %v525
  %v534 = vsel %vm518, %v468, %v526
  %v535 = vsel %vm519, %v509, %v527
  %v536 = vsel %vm520, %v511, %v528
  %v537 = vsel %vm521, %v470, %v529
  %v538 = vsel %vm522, %v472, %v530
  %v539 = vsel %vm523, %v513, %v531
  %v540 = vsel %vm524, %v515, %v532
  %v541 = vld [vmem:[%s6] sm:$0xff]
  %v542 = vld [vmem:[%s6 + $0x8] sm:$0xff]
  %v543 = vld [vmem:[%s6 + $0x10] sm:$0xff]
  %v544 = vld [vmem:[%s6 + $0x18] sm:$0xff]
  %545 = vrot.lane.b32.xlu0 %v533, 127
  %v546 = vpop.permute.xlu0 %545
  %547 = vrot.lane.b32.xlu0 %v537, 127
  %v548 = vpop.permute.xlu0 %547
  %549 = vrot.lane.b32.xlu0 %v534, 127
  %v550 = vpop.permute.xlu0 %549
  %551 = vrot.lane.b32.xlu0 %v538, 127
  %v552 = vpop.permute.xlu0 %551
  %553 = vrot.lane.b32.xlu0 %v535, 127
  %v554 = vpop.permute.xlu0 %553
  %555 = vrot.lane.b32.xlu0 %v539, 127
  %v556 = vpop.permute.xlu0 %555
  %557 = vrot.lane.b32.xlu0 %v536, 127
  %v558 = vpop.permute.xlu0 %557
  %559 = vrot.lane.b32.xlu0 %v540, 127
  %v560 = vpop.permute.xlu0 %559
  %v561 = vsel %vm48, %v554, %v558
  %v562 = vsel %vm48, %v556, %v560
  %v563 = vsel %vm48, %v550, %v554
  %v564 = vsel %vm48, %v552, %v556
  %v565 = vsel %vm48, %v546, %v550
  %v566 = vsel %vm48, %v548, %v552
  %v567 = vsel %vm48, %v558, %v546
  %v568 = vsel %vm48, %v560, %v548
  %569 = vrot.lane.b32.xlu0 %v533, 126
  %v570 = vpop.permute.xlu0 %569
  %571 = vrot.lane.b32.xlu0 %v537, 126
  %v572 = vpop.permute.xlu0 %571
  %573 = vrot.lane.b32.xlu0 %v534, 126
  %v574 = vpop.permute.xlu0 %573
  %575 = vrot.lane.b32.xlu0 %v538, 126
  %v576 = vpop.permute.xlu0 %575
  %577 = vrot.lane.b32.xlu0 %v535, 126
  %v578 = vpop.permute.xlu0 %577
  %579 = vrot.lane.b32.xlu0 %v539, 126
  %v580 = vpop.permute.xlu0 %579
  %581 = vrot.lane.b32.xlu0 %v536, 126
  %v582 = vpop.permute.xlu0 %581
  %583 = vrot.lane.b32.xlu0 %v540, 126
  %v584 = vpop.permute.xlu0 %583
  %v585 = vsel %vm61, %v578, %v582
  %v586 = vsel %vm61, %v580, %v584
  %v587 = vsel %vm61, %v574, %v578
  %v588 = vsel %vm61, %v576, %v580
  %v589 = vsel %vm61, %v570, %v574
  %v590 = vsel %vm61, %v572, %v576
  %v591 = vsel %vm61, %v582, %v570
  %v592 = vsel %vm61, %v584, %v572
  %v593 = vpack.c.bf16 %v537, %v533
  %v594 = vpack.c.bf16 %v538, %v534
  %v595 = vpack.c.bf16 %v566, %v565
  %v596 = vpack.c.bf16 %v564, %v563
  %v597 = vpack.c.bf16 %v590, %v589
  %v598 = vpack.c.bf16 %v588, %v587
  %v599 = vld [vmem:[%s5] sm:$0xf]
  %v600 = vld [vmem:[%s5 + $0x4] sm:$0xf]
  %v601 = vld [vmem:[%s5 + $0x8] sm:$0xf]
  %v602 = vld [vmem:[%s5 + $0xc] sm:$0xf]
  %603 = vrot.lane.b32.xlu0 %v533, 112
  %v604 = vpop.permute.xlu0 %603
  %605 = vrot.lane.b32.xlu0 %v537, 112
  %v606 = vpop.permute.xlu0 %605
  %607 = vrot.lane.b32.xlu0 %v534, 112
  %v608 = vpop.permute.xlu0 %607
  %609 = vrot.lane.b32.xlu0 %v538, 112
  %v610 = vpop.permute.xlu0 %609
  %611 = vrot.lane.b32.xlu0 %v535, 112
  %v612 = vpop.permute.xlu0 %611
  %613 = vrot.lane.b32.xlu0 %v539, 112
  %v614 = vpop.permute.xlu0 %613
  %615 = vrot.lane.b32.xlu0 %v536, 112
  %v616 = vpop.permute.xlu0 %615
  %617 = vrot.lane.b32.xlu0 %v540, 112
  %v618 = vpop.permute.xlu0 %617
  %v619 = vsel %vm74, %v612, %v616
  %v620 = vsel %vm74, %v614, %v618
  %v621 = vsel %vm74, %v608, %v612
  %v622 = vsel %vm74, %v610, %v614
  %v623 = vsel %vm74, %v604, %v608
  %v624 = vsel %vm74, %v606, %v610
  %v625 = vsel %vm74, %v616, %v604
  %v626 = vsel %vm74, %v618, %v606
  %627 = vrot.lane.b32.xlu0 %v533, 111
  %v628 = vpop.permute.xlu0 %627
  %629 = vrot.lane.b32.xlu0 %v537, 111
  %v630 = vpop.permute.xlu0 %629
  %631 = vrot.lane.b32.xlu0 %v534, 111
  %v632 = vpop.permute.xlu0 %631
  %633 = vrot.lane.b32.xlu0 %v538, 111
  %v634 = vpop.permute.xlu0 %633
  %635 = vrot.lane.b32.xlu0 %v535, 111
  %v636 = vpop.permute.xlu0 %635
  %637 = vrot.lane.b32.xlu0 %v539, 111
  %v638 = vpop.permute.xlu0 %637
  %639 = vrot.lane.b32.xlu0 %v536, 111
  %v640 = vpop.permute.xlu0 %639
  %641 = vrot.lane.b32.xlu0 %v540, 111
  %v642 = vpop.permute.xlu0 %641
  %v643 = vsel %vm87, %v636, %v640
  %v644 = vsel %vm87, %v638, %v642
  %v645 = vsel %vm87, %v632, %v636
  %v646 = vsel %vm87, %v634, %v638
  %v647 = vsel %vm87, %v628, %v632
  %v648 = vsel %vm87, %v630, %v634
  %v649 = vsel %vm87, %v640, %v628
  %v650 = vsel %vm87, %v642, %v630
  %651 = vrot.lane.b32.xlu0 %v533, 110
  %v652 = vpop.permute.xlu0 %651
  %653 = vrot.lane.b32.xlu0 %v537, 110
  %v654 = vpop.permute.xlu0 %653
  %655 = vrot.lane.b32.xlu0 %v534, 110
  %v656 = vpop.permute.xlu0 %655
  %657 = vrot.lane.b32.xlu0 %v538, 110
  %v658 = vpop.permute.xlu0 %657
  %659 = vrot.lane.b32.xlu0 %v535, 110
  %v660 = vpop.permute.xlu0 %659
  %661 = vrot.lane.b32.xlu0 %v539, 110
  %v662 = vpop.permute.xlu0 %661
  %663 = vrot.lane.b32.xlu0 %v536, 110
  %v664 = vpop.permute.xlu0 %663
  %665 = vrot.lane.b32.xlu0 %v540, 110
  %v666 = vpop.permute.xlu0 %665
  %v667 = vsel %vm100, %v660, %v664
  %v668 = vsel %vm100, %v662, %v666
  %v669 = vsel %vm100, %v656, %v660
  %v670 = vsel %vm100, %v658, %v662
  %v671 = vsel %vm100, %v652, %v656
  %v672 = vsel %vm100, %v654, %v658
  %v673 = vsel %vm100, %v664, %v652
  %v674 = vsel %vm100, %v666, %v654
  %v675 = vpack.c.bf16 %v624, %v623
  %v676 = vpack.c.bf16 %v622, %v621
  %v677 = vpack.c.bf16 %v648, %v647
  %v678 = vpack.c.bf16 %v646, %v645
  %v679 = vpack.c.bf16 %v672, %v671
  %v680 = vpack.c.bf16 %v670, %v669
  %s681 = scalar_lea.vmem %s5, 16
  %v682 = vld [vmem:[%s681] sm:$0xf]
  %v683 = vld [vmem:[%s681 + $0x4] sm:$0xf]
  %v684 = vld [vmem:[%s681 + $0x8] sm:$0xf]
  %v685 = vld [vmem:[%s681 + $0xc] sm:$0xf]
  %v690 = vunpack.c.l.b16 %v682
  %v691 = vunpack.c.l.b16 %v683
  %v692 = vunpack.c.l.b16 %v684
  %v693 = vunpack.c.l.b16 %v685
  %v694 = vpack.c.b16 %v691, %v690
  %v695 = vpack.c.b16 %v693, %v692
  %vm696 = vcmask 392192
  %v698 = vsel %vm696, %v694, 0
  %v701 = vsel %vm696, %v695, 0
  %703 = vmatprep.subr.bf16.mxu0 %v676
  %704 = vmatpush1.bf16.msra.mxu0 %v675
  %705 = vmatprep.subr.bf16.mxu0 %v678
  %706 = vmatpush1.bf16.msra.mxu0 %v677
  %707 = vmatprep.subr.bf16.mxu0 %v680
  %708 = vmatpush1.bf16.msra.mxu0 %v679
  %709 = vmatprep.subr.bf16.mxu0 0
  %710 = vmatpush1.bf16.msra.mxu0 0
  %711 = vmatprep.subr.bf16.mxu0 0
  %712 = vmatpush1.bf16.msra.mxu0 0
  %713 = vmatprep.subr.bf16.mxu0 0
  %714 = vmatpush1.bf16.msra.mxu0 0
  %715 = vmatprep.subr.bf16.mxu0 0
  %716 = vmatpush1.bf16.msra.mxu0 0
  %717 = vmatprep.subr.bf16.mxu0 0
  %718 = vmatpush1.bf16.msra.mxu0 0
  %719 = vmatprep.subr.bf16.mxu0 0
  %720 = vmatpush1.bf16.msra.mxu0 0
  %721 = vmatprep.subr.bf16.mxu0 0
  %722 = vmatpush1.bf16.msra.mxu0 0
  %723 = vmatprep.subr.bf16.mxu0 0
  %724 = vmatpush1.bf16.msra.mxu0 0
  %725 = vmatprep.subr.bf16.mxu0 0
  %726 = vmatpush1.bf16.msra.mxu0 0
  %727 = vmatprep.subr.bf16.mxu0 0
  %728 = vmatpush1.bf16.msra.mxu0 0
  %729 = vmatprep.subr.bf16.mxu0 0
  %730 = vmatpush1.bf16.msra.mxu0 0
  %731 = vmatprep.subr.bf16.mxu0 0
  %732 = vmatpush1.bf16.msra.mxu0 0
  %733 = vmatprep.subr.bf16.mxu0 0
  %734 = vmatpush1.bf16.msra.mxu0 0
  %735 = vmatprep.mubr.bf16.mxu0 0
  %736 = vmatmul.mubr.bf16.gmra.mrb[0].mxu0 %v698
  %v737 = vpop.f32.mrb[0].mxu0
  %v738 = vadd.f32 0.0, %v737
  %v739 = vpop.f32.mrb[0].mxu0
  %v740 = vadd.f32 0.0, %v739
  %v741 = vpop.f32.mrb[0].mxu0
  %v742 = vadd.f32 0.0, %v741
  %v743 = vpop.f32.mrb[0].mxu0
  %v744 = vadd.f32 0.0, %v743
  %745 = vmatprep.mubr.bf16.mxu0 0
  %746 = vmatmul.mubr.bf16.gmra.mrb[0].mxu0 %v701
  %v747 = vpop.f32.mrb[0].mxu0
  %v748 = vadd.f32 0.0, %v747
  %v749 = vpop.f32.mrb[0].mxu0
  %v750 = vadd.f32 0.0, %v749
  %v751 = vpop.f32.mrb[0].mxu0
  %v752 = vadd.f32 0.0, %v751
  %v753 = vpop.f32.mrb[0].mxu0
  %v754 = vadd.f32 0.0, %v753
  %755 = vdwg.mxu0
  %v760 = vunpack.c.l.b16 %v599
  %v761 = vunpack.c.l.b16 %v600
  %v762 = vunpack.c.l.b16 %v601
  %v763 = vunpack.c.l.b16 %v602
  %v764 = vpack.c.b16 %v761, %v760
  %v765 = vpack.c.b16 %v763, %v762
  %v767 = vsel %vm696, %v764, 0
  %v770 = vsel %vm696, %v765, 0
  %772 = vmatprep.subr.bf16.mxu0 %v594
  %773 = vmatpush1.bf16.msra.mxu0 %v593
  %774 = vmatprep.subr.bf16.mxu0 %v596
  %775 = vmatpush1.bf16.msra.mxu0 %v595
  %776 = vmatprep.subr.bf16.mxu0 %v598
  %777 = vmatpush1.bf16.msra.mxu0 %v597
  %778 = vmatprep.subr.bf16.mxu0 0
  %779 = vmatpush1.bf16.msra.mxu0 0
  %780 = vmatprep.subr.bf16.mxu0 0
  %781 = vmatpush1.bf16.msra.mxu0 0
  %782 = vmatprep.subr.bf16.mxu0 0
  %783 = vmatpush1.bf16.msra.mxu0 0
  %784 = vmatprep.subr.bf16.mxu0 0
  %785 = vmatpush1.bf16.msra.mxu0 0
  %786 = vmatprep.subr.bf16.mxu0 0
  %787 = vmatpush1.bf16.msra.mxu0 0
  %788 = vmatprep.subr.bf16.mxu0 0
  %789 = vmatpush1.bf16.msra.mxu0 0
  %790 = vmatprep.subr.bf16.mxu0 0
  %791 = vmatpush1.bf16.msra.mxu0 0
  %792 = vmatprep.subr.bf16.mxu0 0
  %793 = vmatpush1.bf16.msra.mxu0 0
  %794 = vmatprep.subr.bf16.mxu0 0
  %795 = vmatpush1.bf16.msra.mxu0 0
  %796 = vmatprep.subr.bf16.mxu0 0
  %797 = vmatpush1.bf16.msra.mxu0 0
  %798 = vmatprep.subr.bf16.mxu0 0
  %799 = vmatpush1.bf16.msra.mxu0 0
  %800 = vmatprep.subr.bf16.mxu0 0
  %801 = vmatpush1.bf16.msra.mxu0 0
  %802 = vmatprep.subr.bf16.mxu0 0
  %803 = vmatpush1.bf16.msra.mxu0 0
  %804 = vmatprep.mubr.bf16.mxu0 0
  %805 = vmatmul.mubr.bf16.gmra.mrb[0].mxu0 %v767
  %v806 = vpop.f32.mrb[0].mxu0
  %v807 = vadd.f32 %v738, %v806
  %v808 = vpop.f32.mrb[0].mxu0
  %v809 = vadd.f32 %v740, %v808
  %v810 = vpop.f32.mrb[0].mxu0
  %v811 = vadd.f32 %v742, %v810
  %v812 = vpop.f32.mrb[0].mxu0
  %v813 = vadd.f32 %v744, %v812
  %814 = vmatprep.mubr.bf16.mxu0 0
  %815 = vmatmul.mubr.bf16.gmra.mrb[0].mxu0 %v770
  %v816 = vpop.f32.mrb[0].mxu0
  %v817 = vadd.f32 %v748, %v816
  %v818 = vpop.f32.mrb[0].mxu0
  %v819 = vadd.f32 %v750, %v818
  %v820 = vpop.f32.mrb[0].mxu0
  %v821 = vadd.f32 %v752, %v820
  %v822 = vpop.f32.mrb[0].mxu0
  %v823 = vadd.f32 %v754, %v822
  %824 = vdwg.mxu0
  %825 = vrot.lane.b32.xlu0 %v533, 96
  %v826 = vpop.permute.xlu0 %825
  %827 = vrot.lane.b32.xlu0 %v537, 96
  %v828 = vpop.permute.xlu0 %827
  %829 = vrot.lane.b32.xlu0 %v534, 96
  %v830 = vpop.permute.xlu0 %829
  %831 = vrot.lane.b32.xlu0 %v538, 96
  %v832 = vpop.permute.xlu0 %831
  %833 = vrot.lane.b32.xlu0 %v535, 96
  %v834 = vpop.permute.xlu0 %833
  %835 = vrot.lane.b32.xlu0 %v539, 96
  %v836 = vpop.permute.xlu0 %835
  %837 = vrot.lane.b32.xlu0 %v536, 96
  %v838 = vpop.permute.xlu0 %837
  %839 = vrot.lane.b32.xlu0 %v540, 96
  %v840 = vpop.permute.xlu0 %839
  %v841 = vsel %vm113, %v834, %v838
  %v842 = vsel %vm113, %v836, %v840
  %v843 = vsel %vm113, %v830, %v834
  %v844 = vsel %vm113, %v832, %v836
  %v845 = vsel %vm113, %v826, %v830
  %v846 = vsel %vm113, %v828, %v832
  %v847 = vsel %vm113, %v838, %v826
  %v848 = vsel %vm113, %v840, %v828
  %849 = vrot.lane.b32.xlu0 %v533, 95
  %v850 = vpop.permute.xlu0 %849
  %851 = vrot.lane.b32.xlu0 %v537, 95
  %v852 = vpop.permute.xlu0 %851
  %853 = vrot.lane.b32.xlu0 %v534, 95
  %v854 = vpop.permute.xlu0 %853
  %855 = vrot.lane.b32.xlu0 %v538, 95
  %v856 = vpop.permute.xlu0 %855
  %857 = vrot.lane.b32.xlu0 %v535, 95
  %v858 = vpop.permute.xlu0 %857
  %859 = vrot.lane.b32.xlu0 %v539, 95
  %v860 = vpop.permute.xlu0 %859
  %861 = vrot.lane.b32.xlu0 %v536, 95
  %v862 = vpop.permute.xlu0 %861
  %863 = vrot.lane.b32.xlu0 %v540, 95
  %v864 = vpop.permute.xlu0 %863
  %v865 = vsel %vm126, %v858, %v862
  %v866 = vsel %vm126, %v860, %v864
  %v867 = vsel %vm126, %v854, %v858
  %v868 = vsel %vm126, %v856, %v860
  %v869 = vsel %vm126, %v850, %v854
  %v870 = vsel %vm126, %v852, %v856
  %v871 = vsel %vm126, %v862, %v850
  %v872 = vsel %vm126, %v864, %v852
  %873 = vrot.lane.b32.xlu0 %v533, 94
  %v874 = vpop.permute.xlu0 %873
  %875 = vrot.lane.b32.xlu0 %v537, 94
  %v876 = vpop.permute.xlu0 %875
  %877 = vrot.lane.b32.xlu0 %v534, 94
  %v878 = vpop.permute.xlu0 %877
  %879 = vrot.lane.b32.xlu0 %v538, 94
  %v880 = vpop.permute.xlu0 %879
  %881 = vrot.lane.b32.xlu0 %v535, 94
  %v882 = vpop.permute.xlu0 %881
  %883 = vrot.lane.b32.xlu0 %v539, 94
  %v884 = vpop.permute.xlu0 %883
  %885 = vrot.lane.b32.xlu0 %v536, 94
  %v886 = vpop.permute.xlu0 %885
  %887 = vrot.lane.b32.xlu0 %v540, 94
  %v888 = vpop.permute.xlu0 %887
  %v889 = vsel %vm139, %v882, %v886
  %v890 = vsel %vm139, %v884, %v888
  %v891 = vsel %vm139, %v878, %v882
  %v892 = vsel %vm139, %v880, %v884
  %v893 = vsel %vm139, %v874, %v878
  %v894 = vsel %vm139, %v876, %v880
  %v895 = vsel %vm139, %v886, %v874
  %v896 = vsel %vm139, %v888, %v876
  %v897 = vpack.c.bf16 %v846, %v845
  %v898 = vpack.c.bf16 %v844, %v843
  %v899 = vpack.c.bf16 %v870, %v869
  %v900 = vpack.c.bf16 %v868, %v867
  %v901 = vpack.c.bf16 %v894, %v893
  %v902 = vpack.c.bf16 %v892, %v891
  %s903 = scalar_lea.vmem %s5, 32
  %v904 = vld [vmem:[%s903] sm:$0xf]
  %v905 = vld [vmem:[%s903 + $0x4] sm:$0xf]
  %v906 = vld [vmem:[%s903 + $0x8] sm:$0xf]
  %v907 = vld [vmem:[%s903 + $0xc] sm:$0xf]
  %v912 = vunpack.c.l.b16 %v904
  %v913 = vunpack.c.l.b16 %v905
  %v914 = vunpack.c.l.b16 %v906
  %v915 = vunpack.c.l.b16 %v907
  %v916 = vpack.c.b16 %v913, %v912
  %v917 = vpack.c.b16 %v915, %v914
  %v919 = vsel %vm696, %v916, 0
  %v922 = vsel %vm696, %v917, 0
  %924 = vmatprep.subr.bf16.mxu0 %v898
  %925 = vmatpush1.bf16.msra.mxu0 %v897
  %926 = vmatprep.subr.bf16.mxu0 %v900
  %927 = vmatpush1.bf16.msra.mxu0 %v899
  %928 = vmatprep.subr.bf16.mxu0 %v902
  %929 = vmatpush1.bf16.msra.mxu0 %v901
  %930 = vmatprep.subr.bf16.mxu0 0
  %931 = vmatpush1.bf16.msra.mxu0 0
  %932 = vmatprep.subr.bf16.mxu0 0
  %933 = vmatpush1.bf16.msra.mxu0 0
  %934 = vmatprep.subr.bf16.mxu0 0
  %935 = vmatpush1.bf16.msra.mxu0 0
  %936 = vmatprep.subr.bf16.mxu0 0
  %937 = vmatpush1.bf16.msra.mxu0 0
  %938 = vmatprep.subr.bf16.mxu0 0
  %939 = vmatpush1.bf16.msra.mxu0 0
  %940 = vmatprep.subr.bf16.mxu0 0
  %941 = vmatpush1.bf16.msra.mxu0 0
  %942 = vmatprep.subr.bf16.mxu0 0
  %943 = vmatpush1.bf16.msra.mxu0 0
  %944 = vmatprep.subr.bf16.mxu0 0
  %945 = vmatpush1.bf16.msra.mxu0 0
  %946 = vmatprep.subr.bf16.mxu0 0
  %947 = vmatpush1.bf16.msra.mxu0 0
  %948 = vmatprep.subr.bf16.mxu0 0
  %949 = vmatpush1.bf16.msra.mxu0 0
  %950 = vmatprep.subr.bf16.mxu0 0
  %951 = vmatpush1.bf16.msra.mxu0 0
  %952 = vmatprep.subr.bf16.mxu0 0
  %953 = vmatpush1.bf16.msra.mxu0 0
  %954 = vmatprep.subr.bf16.mxu0 0
  %955 = vmatpush1.bf16.msra.mxu0 0
  %956 = vmatprep.mubr.bf16.mxu0 0
  %957 = vmatmul.mubr.bf16.gmra.mrb[0].mxu0 %v919
  %v958 = vpop.f32.mrb[0].mxu0
  %v959 = vadd.f32 0.0, %v958
  %v960 = vpop.f32.mrb[0].mxu0
  %v961 = vadd.f32 0.0, %v960
  %v962 = vpop.f32.mrb[0].mxu0
  %v963 = vadd.f32 0.0, %v962
  %v964 = vpop.f32.mrb[0].mxu0
  %v965 = vadd.f32 0.0, %v964
  %966 = vmatprep.mubr.bf16.mxu0 0
  %967 = vmatmul.mubr.bf16.gmra.mrb[0].mxu0 %v922
  %v968 = vpop.f32.mrb[0].mxu0
  %v969 = vadd.f32 0.0, %v968
  %v970 = vpop.f32.mrb[0].mxu0
  %v971 = vadd.f32 0.0, %v970
  %v972 = vpop.f32.mrb[0].mxu0
  %v973 = vadd.f32 0.0, %v972
  %v974 = vpop.f32.mrb[0].mxu0
  %v975 = vadd.f32 0.0, %v974
  %976 = vdwg.mxu0
  %v977 = vadd.f32 %v807, %v959
  %v978 = vadd.f32 %v809, %v961
  %v979 = vadd.f32 %v811, %v963
  %v980 = vadd.f32 %v813, %v965
  %v981 = vadd.f32 %v817, %v969
  %v982 = vadd.f32 %v819, %v971
  %v983 = vadd.f32 %v821, %v973
  %v984 = vadd.f32 %v823, %v975
  %986 = vset.pattern.permute.xlu0 0
  %987 = vperm.xlu0 %986, %v541
  %v988 = vpop.permute.xlu0 %987
  %991 = vset.pattern.permute.xlu0 0
  %992 = vperm.xlu0 %991, %v542
  %v993 = vpop.permute.xlu0 %992
  %996 = vset.pattern.permute.xlu0 0
  %997 = vperm.xlu0 %996, %v543
  %v998 = vpop.permute.xlu0 %997
  %1001 = vset.pattern.permute.xlu0 0
  %1002 = vperm.xlu0 %1001, %v544
  %v1003 = vpop.permute.xlu0 %1002
  %v1005 = vadd.f32 %v977, %v988
  %v1006 = vadd.f32 %v978, %v988
  %v1007 = vadd.f32 %v979, %v993
  %v1008 = vadd.f32 %v980, %v993
  %v1009 = vadd.f32 %v981, %v998
  %v1010 = vadd.f32 %v982, %v998
  %v1011 = vadd.f32 %v983, %v1003
  %v1012 = vadd.f32 %v984, %v1003
  %vm1013 = vcmp.ge.f32.partialorder %v1005, 0.0
  %vm1014 = vcmp.ge.f32.partialorder %v1006, 0.0
  %vm1015 = vcmp.ge.f32.partialorder %v1007, 0.0
  %vm1016 = vcmp.ge.f32.partialorder %v1008, 0.0
  %vm1017 = vcmp.ge.f32.partialorder %v1009, 0.0
  %vm1018 = vcmp.ge.f32.partialorder %v1010, 0.0
  %vm1019 = vcmp.ge.f32.partialorder %v1011, 0.0
  %vm1020 = vcmp.ge.f32.partialorder %v1012, 0.0
  %v1021 = vmul.f32 %v1005, 0.2
  %v1022 = vmul.f32 %v1006, 0.2
  %v1023 = vmul.f32 %v1007, 0.2
  %v1024 = vmul.f32 %v1008, 0.2
  %v1025 = vmul.f32 %v1009, 0.2
  %v1026 = vmul.f32 %v1010, 0.2
  %v1027 = vmul.f32 %v1011, 0.2
  %v1028 = vmul.f32 %v1012, 0.2
  %v1029 = vsel %vm1013, %v1005, %v1021
  %v1030 = vsel %vm1014, %v1006, %v1022
  %v1031 = vsel %vm1015, %v1007, %v1023
  %v1032 = vsel %vm1016, %v1008, %v1024
  %v1033 = vsel %vm1017, %v1009, %v1025
  %v1034 = vsel %vm1018, %v1010, %v1026
  %v1035 = vsel %vm1019, %v1011, %v1027
  %v1036 = vsel %vm1020, %v1012, %v1028
  %v1037 = vpack.c.bf16 %v539, %v535
  %v1038 = vpack.c.bf16 %v540, %v536
  %v1039 = vpack.c.bf16 %v562, %v561
  %v1040 = vpack.c.bf16 %v568, %v567
  %v1041 = vpack.c.bf16 %v586, %v585
  %v1042 = vpack.c.bf16 %v592, %v591
  %v1043 = vpack.c.bf16 %v620, %v619
  %v1044 = vpack.c.bf16 %v626, %v625
  %v1045 = vpack.c.bf16 %v644, %v643
  %v1046 = vpack.c.bf16 %v650, %v649
  %v1047 = vpack.c.bf16 %v668, %v667
  %v1048 = vpack.c.bf16 %v674, %v673
  %1049 = vmatprep.subr.bf16.mxu0 %v1044
  %1050 = vmatpush1.bf16.msra.mxu0 %v1043
  %1051 = vmatprep.subr.bf16.mxu0 %v1046
  %1052 = vmatpush1.bf16.msra.mxu0 %v1045
  %1053 = vmatprep.subr.bf16.mxu0 %v1048
  %1054 = vmatpush1.bf16.msra.mxu0 %v1047
  %1055 = vmatprep.subr.bf16.mxu0 0
  %1056 = vmatpush1.bf16.msra.mxu0 0
  %1057 = vmatprep.subr.bf16.mxu0 0
  %1058 = vmatpush1.bf16.msra.mxu0 0
  %1059 = vmatprep.subr.bf16.mxu0 0
  %1060 = vmatpush1.bf16.msra.mxu0 0
  %1061 = vmatprep.subr.bf16.mxu0 0
  %1062 = vmatpush1.bf16.msra.mxu0 0
  %1063 = vmatprep.subr.bf16.mxu0 0
  %1064 = vmatpush1.bf16.msra.mxu0 0
  %1065 = vmatprep.subr.bf16.mxu0 0
  %1066 = vmatpush1.bf16.msra.mxu0 0
  %1067 = vmatprep.subr.bf16.mxu0 0
  %1068 = vmatpush1.bf16.msra.mxu0 0
  %1069 = vmatprep.subr.bf16.mxu0 0
  %1070 = vmatpush1.bf16.msra.mxu0 0
  %1071 = vmatprep.subr.bf16.mxu0 0
  %1072 = vmatpush1.bf16.msra.mxu0 0
  %1073 = vmatprep.subr.bf16.mxu0 0
  %1074 = vmatpush1.bf16.msra.mxu0 0
  %1075 = vmatprep.subr.bf16.mxu0 0
  %1076 = vmatpush1.bf16.msra.mxu0 0
  %1077 = vmatprep.subr.bf16.mxu0 0
  %1078 = vmatpush1.bf16.msra.mxu0 0
  %1079 = vmatprep.subr.bf16.mxu0 0
  %1080 = vmatpush1.bf16.msra.mxu0 0
  %1081 = vmatprep.mubr.bf16.mxu0 0
  %1082 = vmatmul.mubr.bf16.gmra.mrb[0].mxu0 %v698
  %v1083 = vpop.f32.mrb[0].mxu0
  %v1084 = vadd.f32 0.0, %v1083
  %v1085 = vpop.f32.mrb[0].mxu0
  %v1086 = vadd.f32 0.0, %v1085
  %v1087 = vpop.f32.mrb[0].mxu0
  %v1088 = vadd.f32 0.0, %v1087
  %v1089 = vpop.f32.mrb[0].mxu0
  %v1090 = vadd.f32 0.0, %v1089
  %1091 = vmatprep.mubr.bf16.mxu0 0
  %1092 = vmatmul.mubr.bf16.gmra.mrb[0].mxu0 %v701
  %v1093 = vpop.f32.mrb[0].mxu0
  %v1094 = vadd.f32 0.0, %v1093
  %v1095 = vpop.f32.mrb[0].mxu0
  %v1096 = vadd.f32 0.0, %v1095
  %v1097 = vpop.f32.mrb[0].mxu0
  %v1098 = vadd.f32 0.0, %v1097
  %v1099 = vpop.f32.mrb[0].mxu0
  %v1100 = vadd.f32 0.0, %v1099
  %1101 = vdwg.mxu0
  %1102 = vmatprep.subr.bf16.mxu0 %v1038
  %1103 = vmatpush1.bf16.msra.mxu0 %v1037
  %1104 = vmatprep.subr.bf16.mxu0 %v1040
  %1105 = vmatpush1.bf16.msra.mxu0 %v1039
  %1106 = vmatprep.subr.bf16.mxu0 %v1042
  %1107 = vmatpush1.bf16.msra.mxu0 %v1041
  %1108 = vmatprep.subr.bf16.mxu0 0
  %1109 = vmatpush1.bf16.msra.mxu0 0
  %1110 = vmatprep.subr.bf16.mxu0 0
  %1111 = vmatpush1.bf16.msra.mxu0 0
  %1112 = vmatprep.subr.bf16.mxu0 0
  %1113 = vmatpush1.bf16.msra.mxu0 0
  %1114 = vmatprep.subr.bf16.mxu0 0
  %1115 = vmatpush1.bf16.msra.mxu0 0
  %1116 = vmatprep.subr.bf16.mxu0 0
  %1117 = vmatpush1.bf16.msra.mxu0 0
  %1118 = vmatprep.subr.bf16.mxu0 0
  %1119 = vmatpush1.bf16.msra.mxu0 0
  %1120 = vmatprep.subr.bf16.mxu0 0
  %1121 = vmatpush1.bf16.msra.mxu0 0
  %1122 = vmatprep.subr.bf16.mxu0 0
  %1123 = vmatpush1.bf16.msra.mxu0 0
  %1124 = vmatprep.subr.bf16.mxu0 0
  %1125 = vmatpush1.bf16.msra.mxu0 0
  %1126 = vmatprep.subr.bf16.mxu0 0
  %1127 = vmatpush1.bf16.msra.mxu0 0
  %1128 = vmatprep.subr.bf16.mxu0 0
  %1129 = vmatpush1.bf16.msra.mxu0 0
  %1130 = vmatprep.subr.bf16.mxu0 0
  %1131 = vmatpush1.bf16.msra.mxu0 0
  %1132 = vmatprep.subr.bf16.mxu0 0
  %1133 = vmatpush1.bf16.msra.mxu0 0
  %1134 = vmatprep.mubr.bf16.mxu0 0
  %1135 = vmatmul.mubr.bf16.gmra.mrb[0].mxu0 %v767
  %v1136 = vpop.f32.mrb[0].mxu0
  %v1137 = vadd.f32 %v1084, %v1136
  %v1138 = vpop.f32.mrb[0].mxu0
  %v1139 = vadd.f32 %v1086, %v1138
  %v1140 = vpop.f32.mrb[0].mxu0
  %v1141 = vadd.f32 %v1088, %v1140
  %v1142 = vpop.f32.mrb[0].mxu0
  %v1143 = vadd.f32 %v1090, %v1142
  %1144 = vmatprep.mubr.bf16.mxu0 0
  %1145 = vmatmul.mubr.bf16.gmra.mrb[0].mxu0 %v770
  %v1146 = vpop.f32.mrb[0].mxu0
  %v1147 = vadd.f32 %v1094, %v1146
  %v1148 = vpop.f32.mrb[0].mxu0
  %v1149 = vadd.f32 %v1096, %v1148
  %v1150 = vpop.f32.mrb[0].mxu0
  %v1151 = vadd.f32 %v1098, %v1150
  %v1152 = vpop.f32.mrb[0].mxu0
  %v1153 = vadd.f32 %v1100, %v1152
  %1154 = vdwg.mxu0
  %v1155 = vpack.c.bf16 %v842, %v841
  %v1156 = vpack.c.bf16 %v848, %v847
  %v1157 = vpack.c.bf16 %v866, %v865
  %v1158 = vpack.c.bf16 %v872, %v871
  %v1159 = vpack.c.bf16 %v890, %v889
  %v1160 = vpack.c.bf16 %v896, %v895
  %1161 = vmatprep.subr.bf16.mxu0 %v1156
  %1162 = vmatpush1.bf16.msra.mxu0 %v1155
  %1163 = vmatprep.subr.bf16.mxu0 %v1158
  %1164 = vmatpush1.bf16.msra.mxu0 %v1157
  %1165 = vmatprep.subr.bf16.mxu0 %v1160
  %1166 = vmatpush1.bf16.msra.mxu0 %v1159
  %1167 = vmatprep.subr.bf16.mxu0 0
  %1168 = vmatpush1.bf16.msra.mxu0 0
  %1169 = vmatprep.subr.bf16.mxu0 0
  %1170 = vmatpush1.bf16.msra.mxu0 0
  %1171 = vmatprep.subr.bf16.mxu0 0
  %1172 = vmatpush1.bf16.msra.mxu0 0
  %1173 = vmatprep.subr.bf16.mxu0 0
  %1174 = vmatpush1.bf16.msra.mxu0 0
  %1175 = vmatprep.subr.bf16.mxu0 0
  %1176 = vmatpush1.bf16.msra.mxu0 0
  %1177 = vmatprep.subr.bf16.mxu0 0
  %1178 = vmatpush1.bf16.msra.mxu0 0
  %1179 = vmatprep.subr.bf16.mxu0 0
  %1180 = vmatpush1.bf16.msra.mxu0 0
  %1181 = vmatprep.subr.bf16.mxu0 0
  %1182 = vmatpush1.bf16.msra.mxu0 0
  %1183 = vmatprep.subr.bf16.mxu0 0
  %1184 = vmatpush1.bf16.msra.mxu0 0
  %1185 = vmatprep.subr.bf16.mxu0 0
  %1186 = vmatpush1.bf16.msra.mxu0 0
  %1187 = vmatprep.subr.bf16.mxu0 0
  %1188 = vmatpush1.bf16.msra.mxu0 0
  %1189 = vmatprep.subr.bf16.mxu0 0
  %1190 = vmatpush1.bf16.msra.mxu0 0
  %1191 = vmatprep.subr.bf16.mxu0 0
  %1192 = vmatpush1.bf16.msra.mxu0 0
  %1193 = vmatprep.mubr.bf16.mxu0 0
  %1194 = vmatmul.mubr.bf16.gmra.mrb[0].mxu0 %v919
  %v1195 = vpop.f32.mrb[0].mxu0
  %v1196 = vadd.f32 0.0, %v1195
  %v1197 = vpop.f32.mrb[0].mxu0
  %v1198 = vadd.f32 0.0, %v1197
  %v1199 = vpop.f32.mrb[0].mxu0
  %v1200 = vadd.f32 0.0, %v1199
  %v1201 = vpop.f32.mrb[0].mxu0
  %v1202 = vadd.f32 0.0, %v1201
  %1203 = vmatprep.mubr.bf16.mxu0 0
  %1204 = vmatmul.mubr.bf16.gmra.mrb[0].mxu0 %v922
  %v1205 = vpop.f32.mrb[0].mxu0
  %v1206 = vadd.f32 0.0, %v1205
  %v1207 = vpop.f32.mrb[0].mxu0
  %v1208 = vadd.f32 0.0, %v1207
  %v1209 = vpop.f32.mrb[0].mxu0
  %v1210 = vadd.f32 0.0, %v1209
  %v1211 = vpop.f32.mrb[0].mxu0
  %v1212 = vadd.f32 0.0, %v1211
  %1213 = vdwg.mxu0
  %v1214 = vadd.f32 %v1137, %v1196
  %v1215 = vadd.f32 %v1139, %v1198
  %v1216 = vadd.f32 %v1141, %v1200
  %v1217 = vadd.f32 %v1143, %v1202
  %v1218 = vadd.f32 %v1147, %v1206
  %v1219 = vadd.f32 %v1149, %v1208
  %v1220 = vadd.f32 %v1151, %v1210
  %v1221 = vadd.f32 %v1153, %v1212
  %v1222 = vadd.f32 %v1214, %v988
  %v1223 = vadd.f32 %v1215, %v988
  %v1224 = vadd.f32 %v1216, %v993
  %v1225 = vadd.f32 %v1217, %v993
  %v1226 = vadd.f32 %v1218, %v998
  %v1227 = vadd.f32 %v1219, %v998
  %v1228 = vadd.f32 %v1220, %v1003
  %v1229 = vadd.f32 %v1221, %v1003
  %vm1230 = vcmp.ge.f32.partialorder %v1222, 0.0
  %vm1231 = vcmp.ge.f32.partialorder %v1223, 0.0
  %vm1232 = vcmp.ge.f32.partialorder %v1224, 0.0
  %vm1233 = vcmp.ge.f32.partialorder %v1225, 0.0
  %vm1234 = vcmp.ge.f32.partialorder %v1226, 0.0
  %vm1235 = vcmp.ge.f32.partialorder %v1227, 0.0
  %vm1236 = vcmp.ge.f32.partialorder %v1228, 0.0
  %vm1237 = vcmp.ge.f32.partialorder %v1229, 0.0
  %v1238 = vmul.f32 %v1222, 0.2
  %v1239 = vmul.f32 %v1223, 0.2
  %v1240 = vmul.f32 %v1224, 0.2
  %v1241 = vmul.f32 %v1225, 0.2
  %v1242 = vmul.f32 %v1226, 0.2
  %v1243 = vmul.f32 %v1227, 0.2
  %v1244 = vmul.f32 %v1228, 0.2
  %v1245 = vmul.f32 %v1229, 0.2
  %v1246 = vsel %vm1230, %v1222, %v1238
  %v1247 = vsel %vm1231, %v1223, %v1239
  %v1248 = vsel %vm1232, %v1224, %v1240
  %v1249 = vsel %vm1233, %v1225, %v1241
  %v1250 = vsel %vm1234, %v1226, %v1242
  %v1251 = vsel %vm1235, %v1227, %v1243
  %v1252 = vsel %vm1236, %v1228, %v1244
  %v1253 = vsel %vm1237, %v1229, %v1245
  %v1254 = vld [vmem:[%s8] sm:$0xff]
  %v1255 = vld [vmem:[%s8 + $0x8] sm:$0xff]
  %v1256 = vld [vmem:[%s8 + $0x10] sm:$0xff]
  %v1257 = vld [vmem:[%s8 + $0x18] sm:$0xff]
  %v1258 = vld [vmem:[%s8 + $0x20] sm:$0xff]
  %v1259 = vld [vmem:[%s8 + $0x28] sm:$0xff]
  %v1260 = vld [vmem:[%s8 + $0x30] sm:$0xff]
  %v1261 = vld [vmem:[%s8 + $0x38] sm:$0xff]
  %1262 = vrot.lane.b32.xlu0 %v1029, 127
  %v1263 = vpop.permute.xlu0 %1262
  %1264 = vrot.lane.b32.xlu0 %v1031, 127
  %v1265 = vpop.permute.xlu0 %1264
  %1266 = vrot.lane.b32.xlu0 %v1033, 127
  %v1267 = vpop.permute.xlu0 %1266
  %1268 = vrot.lane.b32.xlu0 %v1035, 127
  %v1269 = vpop.permute.xlu0 %1268
  %1270 = vrot.lane.b32.xlu0 %v1030, 127
  %v1271 = vpop.permute.xlu0 %1270
  %1272 = vrot.lane.b32.xlu0 %v1032, 127
  %v1273 = vpop.permute.xlu0 %1272
  %1274 = vrot.lane.b32.xlu0 %v1034, 127
  %v1275 = vpop.permute.xlu0 %1274
  %1276 = vrot.lane.b32.xlu0 %v1036, 127
  %v1277 = vpop.permute.xlu0 %1276
  %1278 = vrot.lane.b32.xlu0 %v1246, 127
  %v1279 = vpop.permute.xlu0 %1278
  %1280 = vrot.lane.b32.xlu0 %v1248, 127
  %v1281 = vpop.permute.xlu0 %1280
  %1282 = vrot.lane.b32.xlu0 %v1250, 127
  %v1283 = vpop.permute.xlu0 %1282
  %1284 = vrot.lane.b32.xlu0 %v1252, 127
  %v1285 = vpop.permute.xlu0 %1284
  %1286 = vrot.lane.b32.xlu0 %v1247, 127
  %v1287 = vpop.permute.xlu0 %1286
  %1288 = vrot.lane.b32.xlu0 %v1249, 127
  %v1289 = vpop.permute.xlu0 %1288
  %1290 = vrot.lane.b32.xlu0 %v1251, 127
  %v1291 = vpop.permute.xlu0 %1290
  %1292 = vrot.lane.b32.xlu0 %v1253, 127
  %v1293 = vpop.permute.xlu0 %1292
  %v1294 = vsel %vm48, %v1279, %v1287
  %v1295 = vsel %vm48, %v1281, %v1289
  %v1296 = vsel %vm48, %v1283, %v1291
  %v1297 = vsel %vm48, %v1285, %v1293
  %v1298 = vsel %vm48, %v1271, %v1279
  %v1299 = vsel %vm48, %v1273, %v1281
  %v1300 = vsel %vm48, %v1275, %v1283
  %v1301 = vsel %vm48, %v1277, %v1285
  %v1302 = vsel %vm48, %v1263, %v1271
  %v1303 = vsel %vm48, %v1265, %v1273
  %v1304 = vsel %vm48, %v1267, %v1275
  %v1305 = vsel %vm48, %v1269, %v1277
  %v1306 = vsel %vm48, %v1287, %v1263
  %v1307 = vsel %vm48, %v1289, %v1265
  %v1308 = vsel %vm48, %v1291, %v1267
  %v1309 = vsel %vm48, %v1293, %v1269
  %1310 = vrot.lane.b32.xlu0 %v1029, 126
  %v1311 = vpop.permute.xlu0 %1310
  %1312 = vrot.lane.b32.xlu0 %v1031, 126
  %v1313 = vpop.permute.xlu0 %1312
  %1314 = vrot.lane.b32.xlu0 %v1033, 126
  %v1315 = vpop.permute.xlu0 %1314
  %1316 = vrot.lane.b32.xlu0 %v1035, 126
  %v1317 = vpop.permute.xlu0 %1316
  %1318 = vrot.lane.b32.xlu0 %v1030, 126
  %v1319 = vpop.permute.xlu0 %1318
  %1320 = vrot.lane.b32.xlu0 %v1032, 126
  %v1321 = vpop.permute.xlu0 %1320
  %1322 = vrot.lane.b32.xlu0 %v1034, 126
  %v1323 = vpop.permute.xlu0 %1322
  %1324 = vrot.lane.b32.xlu0 %v1036, 126
  %v1325 = vpop.permute.xlu0 %1324
  %1326 = vrot.lane.b32.xlu0 %v1246, 126
  %v1327 = vpop.permute.xlu0 %1326
  %1328 = vrot.lane.b32.xlu0 %v1248, 126
  %v1329 = vpop.permute.xlu0 %1328
  %1330 = vrot.lane.b32.xlu0 %v1250, 126
  %v1331 = vpop.permute.xlu0 %1330
  %1332 = vrot.lane.b32.xlu0 %v1252, 126
  %v1333 = vpop.permute.xlu0 %1332
  %1334 = vrot.lane.b32.xlu0 %v1247, 126
  %v1335 = vpop.permute.xlu0 %1334
  %1336 = vrot.lane.b32.xlu0 %v1249, 126
  %v1337 = vpop.permute.xlu0 %1336
  %1338 = vrot.lane.b32.xlu0 %v1251, 126
  %v1339 = vpop.permute.xlu0 %1338
  %1340 = vrot.lane.b32.xlu0 %v1253, 126
  %v1341 = vpop.permute.xlu0 %1340
  %v1342 = vsel %vm61, %v1327, %v1335
  %v1343 = vsel %vm61, %v1329, %v1337
  %v1344 = vsel %vm61, %v1331, %v1339
  %v1345 = vsel %vm61, %v1333, %v1341
  %v1346 = vsel %vm61, %v1319, %v1327
  %v1347 = vsel %vm61, %v1321, %v1329
  %v1348 = vsel %vm61, %v1323, %v1331
  %v1349 = vsel %vm61, %v1325, %v1333
  %v1350 = vsel %vm61, %v1311, %v1319
  %v1351 = vsel %vm61, %v1313, %v1321
  %v1352 = vsel %vm61, %v1315, %v1323
  %v1353 = vsel %vm61, %v1317, %v1325
  %v1354 = vsel %vm61, %v1335, %v1311
  %v1355 = vsel %vm61, %v1337, %v1313
  %v1356 = vsel %vm61, %v1339, %v1315
  %v1357 = vsel %vm61, %v1341, %v1317
  %v1358 = vpack.c.bf16 %v1031, %v1029
  %v1359 = vpack.c.bf16 %v1032, %v1030
  %v1360 = vpack.c.bf16 %v1035, %v1033
  %v1361 = vpack.c.bf16 %v1036, %v1034
  %v1362 = vpack.c.bf16 %v1303, %v1302
  %v1363 = vpack.c.bf16 %v1299, %v1298
  %v1364 = vpack.c.bf16 %v1305, %v1304
  %v1365 = vpack.c.bf16 %v1301, %v1300
  %v1366 = vpack.c.bf16 %v1351, %v1350
  %v1367 = vpack.c.bf16 %v1347, %v1346
  %v1368 = vpack.c.bf16 %v1353, %v1352
  %v1369 = vpack.c.bf16 %v1349, %v1348
  %v1370 = vld [vmem:[%s7] sm:$0xf]
  %v1371 = vld [vmem:[%s7 + $0x4] sm:$0xf]
  %v1372 = vld [vmem:[%s7 + $0x8] sm:$0xf]
  %v1373 = vld [vmem:[%s7 + $0xc] sm:$0xf]
  %v1374 = vld [vmem:[%s7 + $0x10] sm:$0xf]
  %v1375 = vld [vmem:[%s7 + $0x14] sm:$0xf]
  %v1376 = vld [vmem:[%s7 + $0x18] sm:$0xf]
  %v1377 = vld [vmem:[%s7 + $0x1c] sm:$0xf]
  %1378 = vrot.lane.b32.xlu0 %v1029, 112
  %v1379 = vpop.permute.xlu0 %1378
  %1380 = vrot.lane.b32.xlu0 %v1031, 112
  %v1381 = vpop.permute.xlu0 %1380
  %1382 = vrot.lane.b32.xlu0 %v1033, 112
  %v1383 = vpop.permute.xlu0 %1382
  %1384 = vrot.lane.b32.xlu0 %v1035, 112
  %v1385 = vpop.permute.xlu0 %1384
  %1386 = vrot.lane.b32.xlu0 %v1030, 112
  %v1387 = vpop.permute.xlu0 %1386
  %1388 = vrot.lane.b32.xlu0 %v1032, 112
  %v1389 = vpop.permute.xlu0 %1388
  %1390 = vrot.lane.b32.xlu0 %v1034, 112
  %v1391 = vpop.permute.xlu0 %1390
  %1392 = vrot.lane.b32.xlu0 %v1036, 112
  %v1393 = vpop.permute.xlu0 %1392
  %1394 = vrot.lane.b32.xlu0 %v1246, 112
  %v1395 = vpop.permute.xlu0 %1394
  %1396 = vrot.lane.b32.xlu0 %v1248, 112
  %v1397 = vpop.permute.xlu0 %1396
  %1398 = vrot.lane.b32.xlu0 %v1250, 112
  %v1399 = vpop.permute.xlu0 %1398
  %1400 = vrot.lane.b32.xlu0 %v1252, 112
  %v1401 = vpop.permute.xlu0 %1400
  %1402 = vrot.lane.b32.xlu0 %v1247, 112
  %v1403 = vpop.permute.xlu0 %1402
  %1404 = vrot.lane.b32.xlu0 %v1249, 112
  %v1405 = vpop.permute.xlu0 %1404
  %1406 = vrot.lane.b32.xlu0 %v1251, 112
  %v1407 = vpop.permute.xlu0 %1406
  %1408 = vrot.lane.b32.xlu0 %v1253, 112
  %v1409 = vpop.permute.xlu0 %1408
  %v1410 = vsel %vm74, %v1395, %v1403
  %v1411 = vsel %vm74, %v1397, %v1405
  %v1412 = vsel %vm74, %v1399, %v1407
  %v1413 = vsel %vm74, %v1401, %v1409
  %v1414 = vsel %vm74, %v1387, %v1395
  %v1415 = vsel %vm74, %v1389, %v1397
  %v1416 = vsel %vm74, %v1391, %v1399
  %v1417 = vsel %vm74, %v1393, %v1401
  %v1418 = vsel %vm74, %v1379, %v1387
  %v1419 = vsel %vm74, %v1381, %v1389
  %v1420 = vsel %vm74, %v1383, %v1391
  %v1421 = vsel %vm74, %v1385, %v1393
  %v1422 = vsel %vm74, %v1403, %v1379
  %v1423 = vsel %vm74, %v1405, %v1381
  %v1424 = vsel %vm74, %v1407, %v1383
  %v1425 = vsel %vm74, %v1409, %v1385
  %1426 = vrot.lane.b32.xlu0 %v1029, 111
  %v1427 = vpop.permute.xlu0 %1426
  %1428 = vrot.lane.b32.xlu0 %v1031, 111
  %v1429 = vpop.permute.xlu0 %1428
  %1430 = vrot.lane.b32.xlu0 %v1033, 111
  %v1431 = vpop.permute.xlu0 %1430
  %1432 = vrot.lane.b32.xlu0 %v1035, 111
  %v1433 = vpop.permute.xlu0 %1432
  %1434 = vrot.lane.b32.xlu0 %v1030, 111
  %v1435 = vpop.permute.xlu0 %1434
  %1436 = vrot.lane.b32.xlu0 %v1032, 111
  %v1437 = vpop.permute.xlu0 %1436
  %1438 = vrot.lane.b32.xlu0 %v1034, 111
  %v1439 = vpop.permute.xlu0 %1438
  %1440 = vrot.lane.b32.xlu0 %v1036, 111
  %v1441 = vpop.permute.xlu0 %1440
  %1442 = vrot.lane.b32.xlu0 %v1246, 111
  %v1443 = vpop.permute.xlu0 %1442
  %1444 = vrot.lane.b32.xlu0 %v1248, 111
  %v1445 = vpop.permute.xlu0 %1444
  %1446 = vrot.lane.b32.xlu0 %v1250, 111
  %v1447 = vpop.permute.xlu0 %1446
  %1448 = vrot.lane.b32.xlu0 %v1252, 111
  %v1449 = vpop.permute.xlu0 %1448
  %1450 = vrot.lane.b32.xlu0 %v1247, 111
  %v1451 = vpop.permute.xlu0 %1450
  %1452 = vrot.lane.b32.xlu0 %v1249, 111
  %v1453 = vpop.permute.xlu0 %1452
  %1454 = vrot.lane.b32.xlu0 %v1251, 111
  %v1455 = vpop.permute.xlu0 %1454
  %1456 = vrot.lane.b32.xlu0 %v1253, 111
  %v1457 = vpop.permute.xlu0 %1456
  %v1458 = vsel %vm87, %v1443, %v1451
  %v1459 = vsel %vm87, %v1445, %v1453
  %v1460 = vsel %vm87, %v1447, %v1455
  %v1461 = vsel %vm87, %v1449, %v1457
  %v1462 = vsel %vm87, %v1435, %v1443
  %v1463 = vsel %vm87, %v1437, %v1445
  %v1464 = vsel %vm87, %v1439, %v1447
  %v1465 = vsel %vm87, %v1441, %v1449
  %v1466 = vsel %vm87, %v1427, %v1435
  %v1467 = vsel %vm87, %v1429, %v1437
  %v1468 = vsel %vm87, %v1431, %v1439
  %v1469 = vsel %vm87, %v1433, %v1441
  %v1470 = vsel %vm87, %v1451, %v1427
  %v1471 = vsel %vm87, %v1453, %v1429
  %v1472 = vsel %vm87, %v1455, %v1431
  %v1473 = vsel %vm87, %v1457, %v1433
  %1474 = vrot.lane.b32.xlu0 %v1029, 110
  %v1475 = vpop.permute.xlu0 %1474
  %1476 = vrot.lane.b32.xlu0 %v1031, 110
  %v1477 = vpop.permute.xlu0 %1476
  %1478 = vrot.lane.b32.xlu0 %v1033, 110
  %v1479 = vpop.permute.xlu0 %1478
  %1480 = vrot.lane.b32.xlu0 %v1035, 110
  %v1481 = vpop.permute.xlu0 %1480
  %1482 = vrot.lane.b32.xlu0 %v1030, 110
  %v1483 = vpop.permute.xlu0 %1482
  %1484 = vrot.lane.b32.xlu0 %v1032, 110
  %v1485 = vpop.permute.xlu0 %1484
  %1486 = vrot.lane.b32.xlu0 %v1034, 110
  %v1487 = vpop.permute.xlu0 %1486
  %1488 = vrot.lane.b32.xlu0 %v1036, 110
  %v1489 = vpop.permute.xlu0 %1488
  %1490 = vrot.lane.b32.xlu0 %v1246, 110
  %v1491 = vpop.permute.xlu0 %1490
  %1492 = vrot.lane.b32.xlu0 %v1248, 110
  %v1493 = vpop.permute.xlu0 %1492
  %1494 = vrot.lane.b32.xlu0 %v1250, 110
  %v1495 = vpop.permute.xlu0 %1494
  %1496 = vrot.lane.b32.xlu0 %v1252, 110
  %v1497 = vpop.permute.xlu0 %1496
  %1498 = vrot.lane.b32.xlu0 %v1247, 110
  %v1499 = vpop.permute.xlu0 %1498
  %1500 = vrot.lane.b32.xlu0 %v1249, 110
  %v1501 = vpop.permute.xlu0 %1500
  %1502 = vrot.lane.b32.xlu0 %v1251, 110
  %v1503 = vpop.permute.xlu0 %1502
  %1504 = vrot.lane.b32.xlu0 %v1253, 110
  %v1505 = vpop.permute.xlu0 %1504
  %v1506 = vsel %vm100, %v1491, %v1499
  %v1507 = vsel %vm100, %v1493, %v1501
  %v1508 = vsel %vm100, %v1495, %v1503
  %v1509 = vsel %vm100, %v1497, %v1505
  %v1510 = vsel %vm100, %v1483, %v1491
  %v1511 = vsel %vm100, %v1485, %v1493
  %v1512 = vsel %vm100, %v1487, %v1495
  %v1513 = vsel %vm100, %v1489, %v1497
  %v1514 = vsel %vm100, %v1475, %v1483
  %v1515 = vsel %vm100, %v1477, %v1485
  %v1516 = vsel %vm100, %v1479, %v1487
  %v1517 = vsel %vm100, %v1481, %v1489
  %v1518 = vsel %vm100, %v1499, %v1475
  %v1519 = vsel %vm100, %v1501, %v1477
  %v1520 = vsel %vm100, %v1503, %v1479
  %v1521 = vsel %vm100, %v1505, %v1481
  %v1522 = vpack.c.bf16 %v1419, %v1418
  %v1523 = vpack.c.bf16 %v1415, %v1414
  %v1524 = vpack.c.bf16 %v1421, %v1420
  %v1525 = vpack.c.bf16 %v1417, %v1416
  %v1526 = vpack.c.bf16 %v1467, %v1466
  %v1527 = vpack.c.bf16 %v1463, %v1462
  %v1528 = vpack.c.bf16 %v1469, %v1468
  %v1529 = vpack.c.bf16 %v1465, %v1464
  %v1530 = vpack.c.bf16 %v1515, %v1514
  %v1531 = vpack.c.bf16 %v1511, %v1510
  %v1532 = vpack.c.bf16 %v1517, %v1516
  %v1533 = vpack.c.bf16 %v1513, %v1512
  %s1534 = scalar_lea.vmem %s7, 32
  %v1535 = vld [vmem:[%s1534] sm:$0xf]
  %v1536 = vld [vmem:[%s1534 + $0x4] sm:$0xf]
  %v1537 = vld [vmem:[%s1534 + $0x8] sm:$0xf]
  %v1538 = vld [vmem:[%s1534 + $0xc] sm:$0xf]
  %v1539 = vld [vmem:[%s1534 + $0x10] sm:$0xf]
  %v1540 = vld [vmem:[%s1534 + $0x14] sm:$0xf]
  %v1541 = vld [vmem:[%s1534 + $0x18] sm:$0xf]
  %v1542 = vld [vmem:[%s1534 + $0x1c] sm:$0xf]
  %v1551 = vunpack.c.l.b16 %v1535
  %v1552 = vunpack.c.l.b16 %v1536
  %v1553 = vunpack.c.l.b16 %v1537
  %v1554 = vunpack.c.l.b16 %v1538
  %v1555 = vunpack.c.l.b16 %v1539
  %v1556 = vunpack.c.l.b16 %v1540
  %v1557 = vunpack.c.l.b16 %v1541
  %v1558 = vunpack.c.l.b16 %v1542
  %v1559 = vpack.c.b16 %v1552, %v1551
  %v1560 = vpack.c.b16 %v1554, %v1553
  %v1561 = vpack.c.b16 %v1556, %v1555
  %v1562 = vpack.c.b16 %v1558, %v1557
  %vm1563 = vcmask 785408
  %v1565 = vsel %vm1563, %v1559, 0
  %v1568 = vsel %vm1563, %v1560, 0
  %v1571 = vsel %vm1563, %v1561, 0
  %v1574 = vsel %vm1563, %v1562, 0
  %1576 = vmatprep.subr.bf16.mxu0 %v1523
  %1577 = vmatpush1.bf16.msra.mxu0 %v1522
  %1578 = vmatprep.subr.bf16.mxu0 %v1525
  %1579 = vmatpush1.bf16.msra.mxu0 %v1524
  %1580 = vmatprep.subr.bf16.mxu0 %v1527
  %1581 = vmatpush1.bf16.msra.mxu0 %v1526
  %1582 = vmatprep.subr.bf16.mxu0 %v1529
  %1583 = vmatpush1.bf16.msra.mxu0 %v1528
  %1584 = vmatprep.subr.bf16.mxu0 %v1531
  %1585 = vmatpush1.bf16.msra.mxu0 %v1530
  %1586 = vmatprep.subr.bf16.mxu0 %v1533
  %1587 = vmatpush1.bf16.msra.mxu0 %v1532
  %1588 = vmatprep.subr.bf16.mxu0 0
  %1589 = vmatpush1.bf16.msra.mxu0 0
  %1590 = vmatprep.subr.bf16.mxu0 0
  %1591 = vmatpush1.bf16.msra.mxu0 0
  %1592 = vmatprep.subr.bf16.mxu0 0
  %1593 = vmatpush1.bf16.msra.mxu0 0
  %1594 = vmatprep.subr.bf16.mxu0 0
  %1595 = vmatpush1.bf16.msra.mxu0 0
  %1596 = vmatprep.subr.bf16.mxu0 0
  %1597 = vmatpush1.bf16.msra.mxu0 0
  %1598 = vmatprep.subr.bf16.mxu0 0
  %1599 = vmatpush1.bf16.msra.mxu0 0
  %1600 = vmatprep.subr.bf16.mxu0 0
  %1601 = vmatpush1.bf16.msra.mxu0 0
  %1602 = vmatprep.subr.bf16.mxu0 0
  %1603 = vmatpush1.bf16.msra.mxu0 0
  %1604 = vmatprep.subr.bf16.mxu0 0
  %1605 = vmatpush1.bf16.msra.mxu0 0
  %1606 = vmatprep.subr.bf16.mxu0 0
  %1607 = vmatpush1.bf16.msra.mxu0 0
  %1608 = vmatprep.mubr.bf16.mxu0 0
  %1609 = vmatmul.mubr.bf16.gmra.mrb[0].mxu0 %v1565
  %v1610 = vpop.f32.mrb[0].mxu0
  %v1611 = vadd.f32 0.0, %v1610
  %v1612 = vpop.f32.mrb[0].mxu0
  %v1613 = vadd.f32 0.0, %v1612
  %v1614 = vpop.f32.mrb[0].mxu0
  %v1615 = vadd.f32 0.0, %v1614
  %v1616 = vpop.f32.mrb[0].mxu0
  %v1617 = vadd.f32 0.0, %v1616
  %1618 = vmatprep.mubr.bf16.mxu0 0
  %1619 = vmatmul.mubr.bf16.gmra.mrb[0].mxu0 %v1568
  %v1620 = vpop.f32.mrb[0].mxu0
  %v1621 = vadd.f32 0.0, %v1620
  %v1622 = vpop.f32.mrb[0].mxu0
  %v1623 = vadd.f32 0.0, %v1622
  %v1624 = vpop.f32.mrb[0].mxu0
  %v1625 = vadd.f32 0.0, %v1624
  %v1626 = vpop.f32.mrb[0].mxu0
  %v1627 = vadd.f32 0.0, %v1626
  %1628 = vmatprep.mubr.bf16.mxu0 0
  %1629 = vmatmul.mubr.bf16.gmra.mrb[0].mxu0 %v1571
  %v1630 = vpop.f32.mrb[0].mxu0
  %v1631 = vadd.f32 0.0, %v1630
  %v1632 = vpop.f32.mrb[0].mxu0
  %v1633 = vadd.f32 0.0, %v1632
  %v1634 = vpop.f32.mrb[0].mxu0
  %v1635 = vadd.f32 0.0, %v1634
  %v1636 = vpop.f32.mrb[0].mxu0
  %v1637 = vadd.f32 0.0, %v1636
  %1638 = vmatprep.mubr.bf16.mxu0 0
  %1639 = vmatmul.mubr.bf16.gmra.mrb[0].mxu0 %v1574
  %v1640 = vpop.f32.mrb[0].mxu0
  %v1641 = vadd.f32 0.0, %v1640
  %v1642 = vpop.f32.mrb[0].mxu0
  %v1643 = vadd.f32 0.0, %v1642
  %v1644 = vpop.f32.mrb[0].mxu0
  %v1645 = vadd.f32 0.0, %v1644
  %v1646 = vpop.f32.mrb[0].mxu0
  %v1647 = vadd.f32 0.0, %v1646
  %1648 = vdwg.mxu0
  %v1657 = vunpack.c.l.b16 %v1370
  %v1658 = vunpack.c.l.b16 %v1371
  %v1659 = vunpack.c.l.b16 %v1372
  %v1660 = vunpack.c.l.b16 %v1373
  %v1661 = vunpack.c.l.b16 %v1374
  %v1662 = vunpack.c.l.b16 %v1375
  %v1663 = vunpack.c.l.b16 %v1376
  %v1664 = vunpack.c.l.b16 %v1377
  %v1665 = vpack.c.b16 %v1658, %v1657
  %v1666 = vpack.c.b16 %v1660, %v1659
  %v1667 = vpack.c.b16 %v1662, %v1661
  %v1668 = vpack.c.b16 %v1664, %v1663
  %v1670 = vsel %vm1563, %v1665, 0
  %v1673 = vsel %vm1563, %v1666, 0
  %v1676 = vsel %vm1563, %v1667, 0
  %v1679 = vsel %vm1563, %v1668, 0
  %1681 = vmatprep.subr.bf16.mxu0 %v1359
  %1682 = vmatpush1.bf16.msra.mxu0 %v1358
  %1683 = vmatprep.subr.bf16.mxu0 %v1361
  %1684 = vmatpush1.bf16.msra.mxu0 %v1360
  %1685 = vmatprep.subr.bf16.mxu0 %v1363
  %1686 = vmatpush1.bf16.msra.mxu0 %v1362
  %1687 = vmatprep.subr.bf16.mxu0 %v1365
  %1688 = vmatpush1.bf16.msra.mxu0 %v1364
  %1689 = vmatprep.subr.bf16.mxu0 %v1367
  %1690 = vmatpush1.bf16.msra.mxu0 %v1366
  %1691 = vmatprep.subr.bf16.mxu0 %v1369
  %1692 = vmatpush1.bf16.msra.mxu0 %v1368
  %1693 = vmatprep.subr.bf16.mxu0 0
  %1694 = vmatpush1.bf16.msra.mxu0 0
  %1695 = vmatprep.subr.bf16.mxu0 0
  %1696 = vmatpush1.bf16.msra.mxu0 0
  %1697 = vmatprep.subr.bf16.mxu0 0
  %1698 = vmatpush1.bf16.msra.mxu0 0
  %1699 = vmatprep.subr.bf16.mxu0 0
  %1700 = vmatpush1.bf16.msra.mxu0 0
  %1701 = vmatprep.subr.bf16.mxu0 0
  %1702 = vmatpush1.bf16.msra.mxu0 0
  %1703 = vmatprep.subr.bf16.mxu0 0
  %1704 = vmatpush1.bf16.msra.mxu0 0
  %1705 = vmatprep.subr.bf16.mxu0 0
  %1706 = vmatpush1.bf16.msra.mxu0 0
  %1707 = vmatprep.subr.bf16.mxu0 0
  %1708 = vmatpush1.bf16.msra.mxu0 0
  %1709 = vmatprep.subr.bf16.mxu0 0
  %1710 = vmatpush1.bf16.msra.mxu0 0
  %1711 = vmatprep.subr.bf16.mxu0 0
  %1712 = vmatpush1.bf16.msra.mxu0 0
  %1713 = vmatprep.mubr.bf16.mxu0 0
  %1714 = vmatmul.mubr.bf16.gmra.mrb[0].mxu0 %v1670
  %v1715 = vpop.f32.mrb[0].mxu0
  %v1716 = vadd.f32 %v1611, %v1715
  %v1717 = vpop.f32.mrb[0].mxu0
  %v1718 = vadd.f32 %v1613, %v1717
  %v1719 = vpop.f32.mrb[0].mxu0
  %v1720 = vadd.f32 %v1615, %v1719
  %v1721 = vpop.f32.mrb[0].mxu0
  %v1722 = vadd.f32 %v1617, %v1721
  %1723 = vmatprep.mubr.bf16.mxu0 0
  %1724 = vmatmul.mubr.bf16.gmra.mrb[0].mxu0 %v1673
  %v1725 = vpop.f32.mrb[0].mxu0
  %v1726 = vadd.f32 %v1621, %v1725
  %v1727 = vpop.f32.mrb[0].mxu0
  %v1728 = vadd.f32 %v1623, %v1727
  %v1729 = vpop.f32.mrb[0].mxu0
  %v1730 = vadd.f32 %v1625, %v1729
  %v1731 = vpop.f32.mrb[0].mxu0
  %v1732 = vadd.f32 %v1627, %v1731
  %1733 = vmatprep.mubr.bf16.mxu0 0
  %1734 = vmatmul.mubr.bf16.gmra.mrb[0].mxu0 %v1676
  %v1735 = vpop.f32.mrb[0].mxu0
  %v1736 = vadd.f32 %v1631, %v1735
  %v1737 = vpop.f32.mrb[0].mxu0
  %v1738 = vadd.f32 %v1633, %v1737
  %v1739 = vpop.f32.mrb[0].mxu0
  %v1740 = vadd.f32 %v1635, %v1739
  %v1741 = vpop.f32.mrb[0].mxu0
  %v1742 = vadd.f32 %v1637, %v1741
  %1743 = vmatprep.mubr.bf16.mxu0 0
  %1744 = vmatmul.mubr.bf16.gmra.mrb[0].mxu0 %v1679
  %v1745 = vpop.f32.mrb[0].mxu0
  %v1746 = vadd.f32 %v1641, %v1745
  %v1747 = vpop.f32.mrb[0].mxu0
  %v1748 = vadd.f32 %v1643, %v1747
  %v1749 = vpop.f32.mrb[0].mxu0
  %v1750 = vadd.f32 %v1645, %v1749
  %v1751 = vpop.f32.mrb[0].mxu0
  %v1752 = vadd.f32 %v1647, %v1751
  %1753 = vdwg.mxu0
  %1754 = vrot.lane.b32.xlu0 %v1029, 96
  %v1755 = vpop.permute.xlu0 %1754
  %1756 = vrot.lane.b32.xlu0 %v1031, 96
  %v1757 = vpop.permute.xlu0 %1756
  %1758 = vrot.lane.b32.xlu0 %v1033, 96
  %v1759 = vpop.permute.xlu0 %1758
  %1760 = vrot.lane.b32.xlu0 %v1035, 96
  %v1761 = vpop.permute.xlu0 %1760
  %1762 = vrot.lane.b32.xlu0 %v1030, 96
  %v1763 = vpop.permute.xlu0 %1762
  %1764 = vrot.lane.b32.xlu0 %v1032, 96
  %v1765 = vpop.permute.xlu0 %1764
  %1766 = vrot.lane.b32.xlu0 %v1034, 96
  %v1767 = vpop.permute.xlu0 %1766
  %1768 = vrot.lane.b32.xlu0 %v1036, 96
  %v1769 = vpop.permute.xlu0 %1768
  %1770 = vrot.lane.b32.xlu0 %v1246, 96
  %v1771 = vpop.permute.xlu0 %1770
  %1772 = vrot.lane.b32.xlu0 %v1248, 96
  %v1773 = vpop.permute.xlu0 %1772
  %1774 = vrot.lane.b32.xlu0 %v1250, 96
  %v1775 = vpop.permute.xlu0 %1774
  %1776 = vrot.lane.b32.xlu0 %v1252, 96
  %v1777 = vpop.permute.xlu0 %1776
  %1778 = vrot.lane.b32.xlu0 %v1247, 96
  %v1779 = vpop.permute.xlu0 %1778
  %1780 = vrot.lane.b32.xlu0 %v1249, 96
  %v1781 = vpop.permute.xlu0 %1780
  %1782 = vrot.lane.b32.xlu0 %v1251, 96
  %v1783 = vpop.permute.xlu0 %1782
  %1784 = vrot.lane.b32.xlu0 %v1253, 96
  %v1785 = vpop.permute.xlu0 %1784
  %v1786 = vsel %vm113, %v1771, %v1779
  %v1787 = vsel %vm113, %v1773, %v1781
  %v1788 = vsel %vm113, %v1775, %v1783
  %v1789 = vsel %vm113, %v1777, %v1785
  %v1790 = vsel %vm113, %v1763, %v1771
  %v1791 = vsel %vm113, %v1765, %v1773
  %v1792 = vsel %vm113, %v1767, %v1775
  %v1793 = vsel %vm113, %v1769, %v1777
  %v1794 = vsel %vm113, %v1755, %v1763
  %v1795 = vsel %vm113, %v1757, %v1765
  %v1796 = vsel %vm113, %v1759, %v1767
  %v1797 = vsel %vm113, %v1761, %v1769
  %v1798 = vsel %vm113, %v1779, %v1755
  %v1799 = vsel %vm113, %v1781, %v1757
  %v1800 = vsel %vm113, %v1783, %v1759
  %v1801 = vsel %vm113, %v1785, %v1761
  %1802 = vrot.lane.b32.xlu0 %v1029, 95
  %v1803 = vpop.permute.xlu0 %1802
  %1804 = vrot.lane.b32.xlu0 %v1031, 95
  %v1805 = vpop.permute.xlu0 %1804
  %1806 = vrot.lane.b32.xlu0 %v1033, 95
  %v1807 = vpop.permute.xlu0 %1806
  %1808 = vrot.lane.b32.xlu0 %v1035, 95
  %v1809 = vpop.permute.xlu0 %1808
  %1810 = vrot.lane.b32.xlu0 %v1030, 95
  %v1811 = vpop.permute.xlu0 %1810
  %1812 = vrot.lane.b32.xlu0 %v1032, 95
  %v1813 = vpop.permute.xlu0 %1812
  %1814 = vrot.lane.b32.xlu0 %v1034, 95
  %v1815 = vpop.permute.xlu0 %1814
  %1816 = vrot.lane.b32.xlu0 %v1036, 95
  %v1817 = vpop.permute.xlu0 %1816
  %1818 = vrot.lane.b32.xlu0 %v1246, 95
  %v1819 = vpop.permute.xlu0 %1818
  %1820 = vrot.lane.b32.xlu0 %v1248, 95
  %v1821 = vpop.permute.xlu0 %1820
  %1822 = vrot.lane.b32.xlu0 %v1250, 95
  %v1823 = vpop.permute.xlu0 %1822
  %1824 = vrot.lane.b32.xlu0 %v1252, 95
  %v1825 = vpop.permute.xlu0 %1824
  %1826 = vrot.lane.b32.xlu0 %v1247, 95
  %v1827 = vpop.permute.xlu0 %1826
  %1828 = vrot.lane.b32.xlu0 %v1249, 95
  %v1829 = vpop.permute.xlu0 %1828
  %1830 = vrot.lane.b32.xlu0 %v1251, 95
  %v1831 = vpop.permute.xlu0 %1830
  %1832 = vrot.lane.b32.xlu0 %v1253, 95
  %v1833 = vpop.permute.xlu0 %1832
  %v1834 = vsel %vm126, %v1819, %v1827
  %v1835 = vsel %vm126, %v1821, %v1829
  %v1836 = vsel %vm126, %v1823, %v1831
  %v1837 = vsel %vm126, %v1825, %v1833
  %v1838 = vsel %vm126, %v1811, %v1819
  %v1839 = vsel %vm126, %v1813, %v1821
  %v1840 = vsel %vm126, %v1815, %v1823
  %v1841 = vsel %vm126, %v1817, %v1825
  %v1842 = vsel %vm126, %v1803, %v1811
  %v1843 = vsel %vm126, %v1805, %v1813
  %v1844 = vsel %vm126, %v1807, %v1815
  %v1845 = vsel %vm126, %v1809, %v1817
  %v1846 = vsel %vm126, %v1827, %v1803
  %v1847 = vsel %vm126, %v1829, %v1805
  %v1848 = vsel %vm126, %v1831, %v1807
  %v1849 = vsel %vm126, %v1833, %v1809
  %1850 = vrot.lane.b32.xlu0 %v1029, 94
  %v1851 = vpop.permute.xlu0 %1850
  %1852 = vrot.lane.b32.xlu0 %v1031, 94
  %v1853 = vpop.permute.xlu0 %1852
  %1854 = vrot.lane.b32.xlu0 %v1033, 94
  %v1855 = vpop.permute.xlu0 %1854
  %1856 = vrot.lane.b32.xlu0 %v1035, 94
  %v1857 = vpop.permute.xlu0 %1856
  %1858 = vrot.lane.b32.xlu0 %v1030, 94
  %v1859 = vpop.permute.xlu0 %1858
  %1860 = vrot.lane.b32.xlu0 %v1032, 94
  %v1861 = vpop.permute.xlu0 %1860
  %1862 = vrot.lane.b32.xlu0 %v1034, 94
  %v1863 = vpop.permute.xlu0 %1862
  %1864 = vrot.lane.b32.xlu0 %v1036, 94
  %v1865 = vpop.permute.xlu0 %1864
  %1866 = vrot.lane.b32.xlu0 %v1246, 94
  %v1867 = vpop.permute.xlu0 %1866
  %1868 = vrot.lane.b32.xlu0 %v1248, 94
  %v1869 = vpop.permute.xlu0 %1868
  %1870 = vrot.lane.b32.xlu0 %v1250, 94
  %v1871 = vpop.permute.xlu0 %1870
  %1872 = vrot.lane.b32.xlu0 %v1252, 94
  %v1873 = vpop.permute.xlu0 %1872
  %1874 = vrot.lane.b32.xlu0 %v1247, 94
  %v1875 = vpop.permute.xlu0 %1874
  %1876 = vrot.lane.b32.xlu0 %v1249, 94
  %v1877 = vpop.permute.xlu0 %1876
  %1878 = vrot.lane.b32.xlu0 %v1251, 94
  %v1879 = vpop.permute.xlu0 %1878
  %1880 = vrot.lane.b32.xlu0 %v1253, 94
  %v1881 = vpop.permute.xlu0 %1880
  %v1882 = vsel %vm139, %v1867, %v1875
  %v1883 = vsel %vm139, %v1869, %v1877
  %v1884 = vsel %vm139, %v1871, %v1879
  %v1885 = vsel %vm139, %v1873, %v1881
  %v1886 = vsel %vm139, %v1859, %v1867
  %v1887 = vsel %vm139, %v1861, %v1869
  %v1888 = vsel %vm139, %v1863, %v1871
  %v1889 = vsel %vm139, %v1865, %v1873
  %v1890 = vsel %vm139, %v1851, %v1859
  %v1891 = vsel %vm139, %v1853, %v1861
  %v1892 = vsel %vm139, %v1855, %v1863
  %v1893 = vsel %vm139, %v1857, %v1865
  %v1894 = vsel %vm139, %v1875, %v1851
  %v1895 = vsel %vm139, %v1877, %v1853
  %v1896 = vsel %vm139, %v1879, %v1855
  %v1897 = vsel %vm139, %v1881, %v1857
  %v1898 = vpack.c.bf16 %v1795, %v1794
  %v1899 = vpack.c.bf16 %v1791, %v1790
  %v1900 = vpack.c.bf16 %v1797, %v1796
  %v1901 = vpack.c.bf16 %v1793, %v1792
  %v1902 = vpack.c.bf16 %v1843, %v1842
  %v1903 = vpack.c.bf16 %v1839, %v1838
  %v1904 = vpack.c.bf16 %v1845, %v1844
  %v1905 = vpack.c.bf16 %v1841, %v1840
  %v1906 = vpack.c.bf16 %v1891, %v1890
  %v1907 = vpack.c.bf16 %v1887, %v1886
  %v1908 = vpack.c.bf16 %v1893, %v1892
  %v1909 = vpack.c.bf16 %v1889, %v1888
  %s1910 = scalar_lea.vmem %s7, 64
  %v1911 = vld [vmem:[%s1910] sm:$0xf]
  %v1912 = vld [vmem:[%s1910 + $0x4] sm:$0xf]
  %v1913 = vld [vmem:[%s1910 + $0x8] sm:$0xf]
  %v1914 = vld [vmem:[%s1910 + $0xc] sm:$0xf]
  %v1915 = vld [vmem:[%s1910 + $0x10] sm:$0xf]
  %v1916 = vld [vmem:[%s1910 + $0x14] sm:$0xf]
  %v1917 = vld [vmem:[%s1910 + $0x18] sm:$0xf]
  %v1918 = vld [vmem:[%s1910 + $0x1c] sm:$0xf]
  %v1927 = vunpack.c.l.b16 %v1911
  %v1928 = vunpack.c.l.b16 %v1912
  %v1929 = vunpack.c.l.b16 %v1913
  %v1930 = vunpack.c.l.b16 %v1914
  %v1931 = vunpack.c.l.b16 %v1915
  %v1932 = vunpack.c.l.b16 %v1916
  %v1933 = vunpack.c.l.b16 %v1917
  %v1934 = vunpack.c.l.b16 %v1918
  %v1935 = vpack.c.b16 %v1928, %v1927
  %v1936 = vpack.c.b16 %v1930, %v1929
  %v1937 = vpack.c.b16 %v1932, %v1931
  %v1938 = vpack.c.b16 %v1934, %v1933
  %v1940 = vsel %vm1563, %v1935, 0
  %v1943 = vsel %vm1563, %v1936, 0
  %v1946 = vsel %vm1563, %v1937, 0
  %v1949 = vsel %vm1563, %v1938, 0
  %1951 = vmatprep.subr.bf16.mxu0 %v1899
  %1952 = vmatpush1.bf16.msra.mxu0 %v1898
  %1953 = vmatprep.subr.bf16.mxu0 %v1901
  %1954 = vmatpush1.bf16.msra.mxu0 %v1900
  %1955 = vmatprep.subr.bf16.mxu0 %v1903
  %1956 = vmatpush1.bf16.msra.mxu0 %v1902
  %1957 = vmatprep.subr.bf16.mxu0 %v1905
  %1958 = vmatpush1.bf16.msra.mxu0 %v1904
  %1959 = vmatprep.subr.bf16.mxu0 %v1907
  %1960 = vmatpush1.bf16.msra.mxu0 %v1906
  %1961 = vmatprep.subr.bf16.mxu0 %v1909
  %1962 = vmatpush1.bf16.msra.mxu0 %v1908
  %1963 = vmatprep.subr.bf16.mxu0 0
  %1964 = vmatpush1.bf16.msra.mxu0 0
  %1965 = vmatprep.subr.bf16.mxu0 0
  %1966 = vmatpush1.bf16.msra.mxu0 0
  %1967 = vmatprep.subr.bf16.mxu0 0
  %1968 = vmatpush1.bf16.msra.mxu0 0
  %1969 = vmatprep.subr.bf16.mxu0 0
  %1970 = vmatpush1.bf16.msra.mxu0 0
  %1971 = vmatprep.subr.bf16.mxu0 0
  %1972 = vmatpush1.bf16.msra.mxu0 0
  %1973 = vmatprep.subr.bf16.mxu0 0
  %1974 = vmatpush1.bf16.msra.mxu0 0
  %1975 = vmatprep.subr.bf16.mxu0 0
  %1976 = vmatpush1.bf16.msra.mxu0 0
  %1977 = vmatprep.subr.bf16.mxu0 0
  %1978 = vmatpush1.bf16.msra.mxu0 0
  %1979 = vmatprep.subr.bf16.mxu0 0
  %1980 = vmatpush1.bf16.msra.mxu0 0
  %1981 = vmatprep.subr.bf16.mxu0 0
  %1982 = vmatpush1.bf16.msra.mxu0 0
  %1983 = vmatprep.mubr.bf16.mxu0 0
  %1984 = vmatmul.mubr.bf16.gmra.mrb[0].mxu0 %v1940
  %v1985 = vpop.f32.mrb[0].mxu0
  %v1986 = vadd.f32 0.0, %v1985
  %v1987 = vpop.f32.mrb[0].mxu0
  %v1988 = vadd.f32 0.0, %v1987
  %v1989 = vpop.f32.mrb[0].mxu0
  %v1990 = vadd.f32 0.0, %v1989
  %v1991 = vpop.f32.mrb[0].mxu0
  %v1992 = vadd.f32 0.0, %v1991
  %1993 = vmatprep.mubr.bf16.mxu0 0
  %1994 = vmatmul.mubr.bf16.gmra.mrb[0].mxu0 %v1943
  %v1995 = vpop.f32.mrb[0].mxu0
  %v1996 = vadd.f32 0.0, %v1995
  %v1997 = vpop.f32.mrb[0].mxu0
  %v1998 = vadd.f32 0.0, %v1997
  %v1999 = vpop.f32.mrb[0].mxu0
  %v2000 = vadd.f32 0.0, %v1999
  %v2001 = vpop.f32.mrb[0].mxu0
  %v2002 = vadd.f32 0.0, %v2001
  %2003 = vmatprep.mubr.bf16.mxu0 0
  %2004 = vmatmul.mubr.bf16.gmra.mrb[0].mxu0 %v1946
  %v2005 = vpop.f32.mrb[0].mxu0
  %v2006 = vadd.f32 0.0, %v2005
  %v2007 = vpop.f32.mrb[0].mxu0
  %v2008 = vadd.f32 0.0, %v2007
  %v2009 = vpop.f32.mrb[0].mxu0
  %v2010 = vadd.f32 0.0, %v2009
  %v2011 = vpop.f32.mrb[0].mxu0
  %v2012 = vadd.f32 0.0, %v2011
  %2013 = vmatprep.mubr.bf16.mxu0 0
  %2014 = vmatmul.mubr.bf16.gmra.mrb[0].mxu0 %v1949
  %v2015 = vpop.f32.mrb[0].mxu0
  %v2016 = vadd.f32 0.0, %v2015
  %v2017 = vpop.f32.mrb[0].mxu0
  %v2018 = vadd.f32 0.0, %v2017
  %v2019 = vpop.f32.mrb[0].mxu0
  %v2020 = vadd.f32 0.0, %v2019
  %v2021 = vpop.f32.mrb[0].mxu0
  %v2022 = vadd.f32 0.0, %v2021
  %2023 = vdwg.mxu0
  %v2024 = vadd.f32 %v1716, %v1986
  %v2025 = vadd.f32 %v1718, %v1988
  %v2026 = vadd.f32 %v1720, %v1990
  %v2027 = vadd.f32 %v1722, %v1992
  %v2028 = vadd.f32 %v1726, %v1996
  %v2029 = vadd.f32 %v1728, %v1998
  %v2030 = vadd.f32 %v1730, %v2000
  %v2031 = vadd.f32 %v1732, %v2002
  %v2032 = vadd.f32 %v1736, %v2006
  %v2033 = vadd.f32 %v1738, %v2008
  %v2034 = vadd.f32 %v1740, %v2010
  %v2035 = vadd.f32 %v1742, %v2012
  %v2036 = vadd.f32 %v1746, %v2016
  %v2037 = vadd.f32 %v1748, %v2018
  %v2038 = vadd.f32 %v1750, %v2020
  %v2039 = vadd.f32 %v1752, %v2022
  %2041 = vset.pattern.permute.xlu0 0
  %2042 = vperm.xlu0 %2041, %v1254
  %v2043 = vpop.permute.xlu0 %2042
  %2046 = vset.pattern.permute.xlu0 0
  %2047 = vperm.xlu0 %2046, %v1255
  %v2048 = vpop.permute.xlu0 %2047
  %2051 = vset.pattern.permute.xlu0 0
  %2052 = vperm.xlu0 %2051, %v1256
  %v2053 = vpop.permute.xlu0 %2052
  %2056 = vset.pattern.permute.xlu0 0
  %2057 = vperm.xlu0 %2056, %v1257
  %v2058 = vpop.permute.xlu0 %2057
  %2061 = vset.pattern.permute.xlu0 0
  %2062 = vperm.xlu0 %2061, %v1258
  %v2063 = vpop.permute.xlu0 %2062
  %2066 = vset.pattern.permute.xlu0 0
  %2067 = vperm.xlu0 %2066, %v1259
  %v2068 = vpop.permute.xlu0 %2067
  %2071 = vset.pattern.permute.xlu0 0
  %2072 = vperm.xlu0 %2071, %v1260
  %v2073 = vpop.permute.xlu0 %2072
  %2076 = vset.pattern.permute.xlu0 0
  %2077 = vperm.xlu0 %2076, %v1261
  %v2078 = vpop.permute.xlu0 %2077
  %v2080 = vadd.f32 %v2024, %v2043
  %v2081 = vadd.f32 %v2025, %v2043
  %v2082 = vadd.f32 %v2026, %v2048
  %v2083 = vadd.f32 %v2027, %v2048
  %v2084 = vadd.f32 %v2028, %v2053
  %v2085 = vadd.f32 %v2029, %v2053
  %v2086 = vadd.f32 %v2030, %v2058
  %v2087 = vadd.f32 %v2031, %v2058
  %v2088 = vadd.f32 %v2032, %v2063
  %v2089 = vadd.f32 %v2033, %v2063
  %v2090 = vadd.f32 %v2034, %v2068
  %v2091 = vadd.f32 %v2035, %v2068
  %v2092 = vadd.f32 %v2036, %v2073
  %v2093 = vadd.f32 %v2037, %v2073
  %v2094 = vadd.f32 %v2038, %v2078
  %v2095 = vadd.f32 %v2039, %v2078
  %vm2096 = vcmp.ge.f32.partialorder %v2080, 0.0
  %vm2097 = vcmp.ge.f32.partialorder %v2081, 0.0
  %vm2098 = vcmp.ge.f32.partialorder %v2082, 0.0
  %vm2099 = vcmp.ge.f32.partialorder %v2083, 0.0
  %vm2100 = vcmp.ge.f32.partialorder %v2084, 0.0
  %vm2101 = vcmp.ge.f32.partialorder %v2085, 0.0
  %vm2102 = vcmp.ge.f32.partialorder %v2086, 0.0
  %vm2103 = vcmp.ge.f32.partialorder %v2087, 0.0
  %vm2104 = vcmp.ge.f32.partialorder %v2088, 0.0
  %vm2105 = vcmp.ge.f32.partialorder %v2089, 0.0
  %vm2106 = vcmp.ge.f32.partialorder %v2090, 0.0
  %vm2107 = vcmp.ge.f32.partialorder %v2091, 0.0
  %vm2108 = vcmp.ge.f32.partialorder %v2092, 0.0
  %vm2109 = vcmp.ge.f32.partialorder %v2093, 0.0
  %vm2110 = vcmp.ge.f32.partialorder %v2094, 0.0
  %vm2111 = vcmp.ge.f32.partialorder %v2095, 0.0
  %v2112 = vmul.f32 %v2080, 0.2
  %v2113 = vmul.f32 %v2081, 0.2
  %v2114 = vmul.f32 %v2082, 0.2
  %v2115 = vmul.f32 %v2083, 0.2
  %v2116 = vmul.f32 %v2084, 0.2
  %v2117 = vmul.f32 %v2085, 0.2
  %v2118 = vmul.f32 %v2086, 0.2
  %v2119 = vmul.f32 %v2087, 0.2
  %v2120 = vmul.f32 %v2088, 0.2
  %v2121 = vmul.f32 %v2089, 0.2
  %v2122 = vmul.f32 %v2090, 0.2
  %v2123 = vmul.f32 %v2091, 0.2
  %v2124 = vmul.f32 %v2092, 0.2
  %v2125 = vmul.f32 %v2093, 0.2
  %v2126 = vmul.f32 %v2094, 0.2
  %v2127 = vmul.f32 %v2095, 0.2
  %v2128 = vsel %vm2096, %v2080, %v2112
  %v2129 = vsel %vm2097, %v2081, %v2113
  %v2130 = vsel %vm2098, %v2082, %v2114
  %v2131 = vsel %vm2099, %v2083, %v2115
  %v2132 = vsel %vm2100, %v2084, %v2116
  %v2133 = vsel %vm2101, %v2085, %v2117
  %v2134 = vsel %vm2102, %v2086, %v2118
  %v2135 = vsel %vm2103, %v2087, %v2119
  %v2136 = vsel %vm2104, %v2088, %v2120
  %v2137 = vsel %vm2105, %v2089, %v2121
  %v2138 = vsel %vm2106, %v2090, %v2122
  %v2139 = vsel %vm2107, %v2091, %v2123
  %v2140 = vsel %vm2108, %v2092, %v2124
  %v2141 = vsel %vm2109, %v2093, %v2125
  %v2142 = vsel %vm2110, %v2094, %v2126
  %v2143 = vsel %vm2111, %v2095, %v2127
  %2144 = vst [vmem:[%s9] sm:$0xff] %v2128
  %2145 = vst [vmem:[%s9 + $0x8] sm:$0xff] %v2129
  %2146 = vst [vmem:[%s9 + $0x20] sm:$0xff] %v2130
  %2147 = vst [vmem:[%s9 + $0x28] sm:$0xff] %v2131
  %2148 = vst [vmem:[%s9 + $0x40] sm:$0xff] %v2132
  %2149 = vst [vmem:[%s9 + $0x48] sm:$0xff] %v2133
  %2150 = vst [vmem:[%s9 + $0x60] sm:$0xff] %v2134
  %2151 = vst [vmem:[%s9 + $0x68] sm:$0xff] %v2135
  %2152 = vst [vmem:[%s9 + $0x80] sm:$0xff] %v2136
  %2153 = vst [vmem:[%s9 + $0x88] sm:$0xff] %v2137
  %2154 = vst [vmem:[%s9 + $0xa0] sm:$0xff] %v2138
  %2155 = vst [vmem:[%s9 + $0xa8] sm:$0xff] %v2139
  %2156 = vst [vmem:[%s9 + $0xc0] sm:$0xff] %v2140
  %2157 = vst [vmem:[%s9 + $0xc8] sm:$0xff] %v2141
  %2158 = vst [vmem:[%s9 + $0xe0] sm:$0xff] %v2142
  %2159 = vst [vmem:[%s9 + $0xe8] sm:$0xff] %v2143
  %v2160 = vpack.c.bf16 %v1248, %v1246
  %v2161 = vpack.c.bf16 %v1249, %v1247
  %v2162 = vpack.c.bf16 %v1252, %v1250
  %v2163 = vpack.c.bf16 %v1253, %v1251
  %v2164 = vpack.c.bf16 %v1295, %v1294
  %v2165 = vpack.c.bf16 %v1307, %v1306
  %v2166 = vpack.c.bf16 %v1297, %v1296
  %v2167 = vpack.c.bf16 %v1309, %v1308
  %v2168 = vpack.c.bf16 %v1343, %v1342
  %v2169 = vpack.c.bf16 %v1355, %v1354
  %v2170 = vpack.c.bf16 %v1345, %v1344
  %v2171 = vpack.c.bf16 %v1357, %v1356
  %v2172 = vld [vmem:[%s7] sm:$0xf]
  %v2173 = vld [vmem:[%s7 + $0x4] sm:$0xf]
  %v2174 = vld [vmem:[%s7 + $0x8] sm:$0xf]
  %v2175 = vld [vmem:[%s7 + $0xc] sm:$0xf]
  %v2176 = vld [vmem:[%s7 + $0x10] sm:$0xf]
  %v2177 = vld [vmem:[%s7 + $0x14] sm:$0xf]
  %v2178 = vld [vmem:[%s7 + $0x18] sm:$0xf]
  %v2179 = vld [vmem:[%s7 + $0x1c] sm:$0xf]
  %v2180 = vpack.c.bf16 %v1411, %v1410
  %v2181 = vpack.c.bf16 %v1423, %v1422
  %v2182 = vpack.c.bf16 %v1413, %v1412
  %v2183 = vpack.c.bf16 %v1425, %v1424
  %v2184 = vpack.c.bf16 %v1459, %v1458
  %v2185 = vpack.c.bf16 %v1471, %v1470
  %v2186 = vpack.c.bf16 %v1461, %v1460
  %v2187 = vpack.c.bf16 %v1473, %v1472
  %v2188 = vpack.c.bf16 %v1507, %v1506
  %v2189 = vpack.c.bf16 %v1519, %v1518
  %v2190 = vpack.c.bf16 %v1509, %v1508
  %v2191 = vpack.c.bf16 %v1521, %v1520
  %v2192 = vld [vmem:[%s1534] sm:$0xf]
  %v2193 = vld [vmem:[%s1534 + $0x4] sm:$0xf]
  %v2194 = vld [vmem:[%s1534 + $0x8] sm:$0xf]
  %v2195 = vld [vmem:[%s1534 + $0xc] sm:$0xf]
  %v2196 = vld [vmem:[%s1534 + $0x10] sm:$0xf]
  %v2197 = vld [vmem:[%s1534 + $0x14] sm:$0xf]
  %v2198 = vld [vmem:[%s1534 + $0x18] sm:$0xf]
  %v2199 = vld [vmem:[%s1534 + $0x1c] sm:$0xf]
  %v2208 = vunpack.c.l.b16 %v2192
  %v2209 = vunpack.c.l.b16 %v2193
  %v2210 = vunpack.c.l.b16 %v2194
  %v2211 = vunpack.c.l.b16 %v2195
  %v2212 = vunpack.c.l.b16 %v2196
  %v2213 = vunpack.c.l.b16 %v2197
  %v2214 = vunpack.c.l.b16 %v2198
  %v2215 = vunpack.c.l.b16 %v2199
  %v2216 = vpack.c.b16 %v2209, %v2208
  %v2217 = vpack.c.b16 %v2211, %v2210
  %v2218 = vpack.c.b16 %v2213, %v2212
  %v2219 = vpack.c.b16 %v2215, %v2214
  %v2221 = vsel %vm1563, %v2216, 0
  %v2224 = vsel %vm1563, %v2217, 0
  %v2227 = vsel %vm1563, %v2218, 0
  %v2230 = vsel %vm1563, %v2219, 0
  %2232 = vmatprep.subr.bf16.mxu0 %v2181
  %2233 = vmatpush1.bf16.msra.mxu0 %v2180
  %2234 = vmatprep.subr.bf16.mxu0 %v2183
  %2235 = vmatpush1.bf16.msra.mxu0 %v2182
  %2236 = vmatprep.subr.bf16.mxu0 %v2185
  %2237 = vmatpush1.bf16.msra.mxu0 %v2184
  %2238 = vmatprep.subr.bf16.mxu0 %v2187
  %2239 = vmatpush1.bf16.msra.mxu0 %v2186
  %2240 = vmatprep.subr.bf16.mxu0 %v2189
  %2241 = vmatpush1.bf16.msra.mxu0 %v2188
  %2242 = vmatprep.subr.bf16.mxu0 %v2191
  %2243 = vmatpush1.bf16.msra.mxu0 %v2190
  %2244 = vmatprep.subr.bf16.mxu0 0
  %2245 = vmatpush1.bf16.msra.mxu0 0
  %2246 = vmatprep.subr.bf16.mxu0 0
  %2247 = vmatpush1.bf16.msra.mxu0 0
  %2248 = vmatprep.subr.bf16.mxu0 0
  %2249 = vmatpush1.bf16.msra.mxu0 0
  %2250 = vmatprep.subr.bf16.mxu0 0
  %2251 = vmatpush1.bf16.msra.mxu0 0
  %2252 = vmatprep.subr.bf16.mxu0 0
  %2253 = vmatpush1.bf16.msra.mxu0 0
  %2254 = vmatprep.subr.bf16.mxu0 0
  %2255 = vmatpush1.bf16.msra.mxu0 0
  %2256 = vmatprep.subr.bf16.mxu0 0
  %2257 = vmatpush1.bf16.msra.mxu0 0
  %2258 = vmatprep.subr.bf16.mxu0 0
  %2259 = vmatpush1.bf16.msra.mxu0 0
  %2260 = vmatprep.subr.bf16.mxu0 0
  %2261 = vmatpush1.bf16.msra.mxu0 0
  %2262 = vmatprep.subr.bf16.mxu0 0
  %2263 = vmatpush1.bf16.msra.mxu0 0
  %2264 = vmatprep.mubr.bf16.mxu0 0
  %2265 = vmatmul.mubr.bf16.gmra.mrb[0].mxu0 %v2221
  %v2266 = vpop.f32.mrb[0].mxu0
  %v2267 = vadd.f32 0.0, %v2266
  %v2268 = vpop.f32.mrb[0].mxu0
  %v2269 = vadd.f32 0.0, %v2268
  %v2270 = vpop.f32.mrb[0].mxu0
  %v2271 = vadd.f32 0.0, %v2270
  %v2272 = vpop.f32.mrb[0].mxu0
  %v2273 = vadd.f32 0.0, %v2272
  %2274 = vmatprep.mubr.bf16.mxu0 0
  %2275 = vmatmul.mubr.bf16.gmra.mrb[0].mxu0 %v2224
  %v2276 = vpop.f32.mrb[0].mxu0
  %v2277 = vadd.f32 0.0, %v2276
  %v2278 = vpop.f32.mrb[0].mxu0
  %v2279 = vadd.f32 0.0, %v2278
  %v2280 = vpop.f32.mrb[0].mxu0
  %v2281 = vadd.f32 0.0, %v2280
  %v2282 = vpop.f32.mrb[0].mxu0
  %v2283 = vadd.f32 0.0, %v2282
  %2284 = vmatprep.mubr.bf16.mxu0 0
  %2285 = vmatmul.mubr.bf16.gmra.mrb[0].mxu0 %v2227
  %v2286 = vpop.f32.mrb[0].mxu0
  %v2287 = vadd.f32 0.0, %v2286
  %v2288 = vpop.f32.mrb[0].mxu0
  %v2289 = vadd.f32 0.0, %v2288
  %v2290 = vpop.f32.mrb[0].mxu0
  %v2291 = vadd.f32 0.0, %v2290
  %v2292 = vpop.f32.mrb[0].mxu0
  %v2293 = vadd.f32 0.0, %v2292
  %2294 = vmatprep.mubr.bf16.mxu0 0
  %2295 = vmatmul.mubr.bf16.gmra.mrb[0].mxu0 %v2230
  %v2296 = vpop.f32.mrb[0].mxu0
  %v2297 = vadd.f32 0.0, %v2296
  %v2298 = vpop.f32.mrb[0].mxu0
  %v2299 = vadd.f32 0.0, %v2298
  %v2300 = vpop.f32.mrb[0].mxu0
  %v2301 = vadd.f32 0.0, %v2300
  %v2302 = vpop.f32.mrb[0].mxu0
  %v2303 = vadd.f32 0.0, %v2302
  %2304 = vdwg.mxu0
  %v2313 = vunpack.c.l.b16 %v2172
  %v2314 = vunpack.c.l.b16 %v2173
  %v2315 = vunpack.c.l.b16 %v2174
  %v2316 = vunpack.c.l.b16 %v2175
  %v2317 = vunpack.c.l.b16 %v2176
  %v2318 = vunpack.c.l.b16 %v2177
  %v2319 = vunpack.c.l.b16 %v2178
  %v2320 = vunpack.c.l.b16 %v2179
  %v2321 = vpack.c.b16 %v2314, %v2313
  %v2322 = vpack.c.b16 %v2316, %v2315
  %v2323 = vpack.c.b16 %v2318, %v2317
  %v2324 = vpack.c.b16 %v2320, %v2319
  %v2326 = vsel %vm1563, %v2321, 0
  %v2329 = vsel %vm1563, %v2322, 0
  %v2332 = vsel %vm1563, %v2323, 0
  %v2335 = vsel %vm1563, %v2324, 0
  %2337 = vmatprep.subr.bf16.mxu0 %v2161
  %2338 = vmatpush1.bf16.msra.mxu0 %v2160
  %2339 = vmatprep.subr.bf16.mxu0 %v2163
  %2340 = vmatpush1.bf16.msra.mxu0 %v2162
  %2341 = vmatprep.subr.bf16.mxu0 %v2165
  %2342 = vmatpush1.bf16.msra.mxu0 %v2164
  %2343 = vmatprep.subr.bf16.mxu0 %v2167
  %2344 = vmatpush1.bf16.msra.mxu0 %v2166
  %2345 = vmatprep.subr.bf16.mxu0 %v2169
  %2346 = vmatpush1.bf16.msra.mxu0 %v2168
  %2347 = vmatprep.subr.bf16.mxu0 %v2171
  %2348 = vmatpush1.bf16.msra.mxu0 %v2170
  %2349 = vmatprep.subr.bf16.mxu0 0
  %2350 = vmatpush1.bf16.msra.mxu0 0
  %2351 = vmatprep.subr.bf16.mxu0 0
  %2352 = vmatpush1.bf16.msra.mxu0 0
  %2353 = vmatprep.subr.bf16.mxu0 0
  %2354 = vmatpush1.bf16.msra.mxu0 0
  %2355 = vmatprep.subr.bf16.mxu0 0
  %2356 = vmatpush1.bf16.msra.mxu0 0
  %2357 = vmatprep.subr.bf16.mxu0 0
  %2358 = vmatpush1.bf16.msra.mxu0 0
  %2359 = vmatprep.subr.bf16.mxu0 0
  %2360 = vmatpush1.bf16.msra.mxu0 0
  %2361 = vmatprep.subr.bf16.mxu0 0
  %2362 = vmatpush1.bf16.msra.mxu0 0
  %2363 = vmatprep.subr.bf16.mxu0 0
  %2364 = vmatpush1.bf16.msra.mxu0 0
  %2365 = vmatprep.subr.bf16.mxu0 0
  %2366 = vmatpush1.bf16.msra.mxu0 0
  %2367 = vmatprep.subr.bf16.mxu0 0
  %2368 = vmatpush1.bf16.msra.mxu0 0
  %2369 = vmatprep.mubr.bf16.mxu0 0
  %2370 = vmatmul.mubr.bf16.gmra.mrb[0].mxu0 %v2326
  %v2371 = vpop.f32.mrb[0].mxu0
  %v2372 = vadd.f32 %v2267, %v2371
  %v2373 = vpop.f32.mrb[0].mxu0
  %v2374 = vadd.f32 %v2269, %v2373
  %v2375 = vpop.f32.mrb[0].mxu0
  %v2376 = vadd.f32 %v2271, %v2375
  %v2377 = vpop.f32.mrb[0].mxu0
  %v2378 = vadd.f32 %v2273, %v2377
  %2379 = vmatprep.mubr.bf16.mxu0 0
  %2380 = vmatmul.mubr.bf16.gmra.mrb[0].mxu0 %v2329
  %v2381 = vpop.f32.mrb[0].mxu0
  %v2382 = vadd.f32 %v2277, %v2381
  %v2383 = vpop.f32.mrb[0].mxu0
  %v2384 = vadd.f32 %v2279, %v2383
  %v2385 = vpop.f32.mrb[0].mxu0
  %v2386 = vadd.f32 %v2281, %v2385
  %v2387 = vpop.f32.mrb[0].mxu0
  %v2388 = vadd.f32 %v2283, %v2387
  %2389 = vmatprep.mubr.bf16.mxu0 0
  %2390 = vmatmul.mubr.bf16.gmra.mrb[0].mxu0 %v2332
  %v2391 = vpop.f32.mrb[0].mxu0
  %v2392 = vadd.f32 %v2287, %v2391
  %v2393 = vpop.f32.mrb[0].mxu0
  %v2394 = vadd.f32 %v2289, %v2393
  %v2395 = vpop.f32.mrb[0].mxu0
  %v2396 = vadd.f32 %v2291, %v2395
  %v2397 = vpop.f32.mrb[0].mxu0
  %v2398 = vadd.f32 %v2293, %v2397
  %2399 = vmatprep.mubr.bf16.mxu0 0
  %2400 = vmatmul.mubr.bf16.gmra.mrb[0].mxu0 %v2335
  %v2401 = vpop.f32.mrb[0].mxu0
  %v2402 = vadd.f32 %v2297, %v2401
  %v2403 = vpop.f32.mrb[0].mxu0
  %v2404 = vadd.f32 %v2299, %v2403
  %v2405 = vpop.f32.mrb[0].mxu0
  %v2406 = vadd.f32 %v2301, %v2405
  %v2407 = vpop.f32.mrb[0].mxu0
  %v2408 = vadd.f32 %v2303, %v2407
  %2409 = vdwg.mxu0
  %v2410 = vpack.c.bf16 %v1787, %v1786
  %v2411 = vpack.c.bf16 %v1799, %v1798
  %v2412 = vpack.c.bf16 %v1789, %v1788
  %v2413 = vpack.c.bf16 %v1801, %v1800
  %v2414 = vpack.c.bf16 %v1835, %v1834
  %v2415 = vpack.c.bf16 %v1847, %v1846
  %v2416 = vpack.c.bf16 %v1837, %v1836
  %v2417 = vpack.c.bf16 %v1849, %v1848
  %v2418 = vpack.c.bf16 %v1883, %v1882
  %v2419 = vpack.c.bf16 %v1895, %v1894
  %v2420 = vpack.c.bf16 %v1885, %v1884
  %v2421 = vpack.c.bf16 %v1897, %v1896
  %v2422 = vld [vmem:[%s1910] sm:$0xf]
  %v2423 = vld [vmem:[%s1910 + $0x4] sm:$0xf]
  %v2424 = vld [vmem:[%s1910 + $0x8] sm:$0xf]
  %v2425 = vld [vmem:[%s1910 + $0xc] sm:$0xf]
  %v2426 = vld [vmem:[%s1910 + $0x10] sm:$0xf]
  %v2427 = vld [vmem:[%s1910 + $0x14] sm:$0xf]
  %v2428 = vld [vmem:[%s1910 + $0x18] sm:$0xf]
  %v2429 = vld [vmem:[%s1910 + $0x1c] sm:$0xf]
  %v2438 = vunpack.c.l.b16 %v2422
  %v2439 = vunpack.c.l.b16 %v2423
  %v2440 = vunpack.c.l.b16 %v2424
  %v2441 = vunpack.c.l.b16 %v2425
  %v2442 = vunpack.c.l.b16 %v2426
  %v2443 = vunpack.c.l.b16 %v2427
  %v2444 = vunpack.c.l.b16 %v2428
  %v2445 = vunpack.c.l.b16 %v2429
  %v2446 = vpack.c.b16 %v2439, %v2438
  %v2447 = vpack.c.b16 %v2441, %v2440
  %v2448 = vpack.c.b16 %v2443, %v2442
  %v2449 = vpack.c.b16 %v2445, %v2444
  %v2451 = vsel %vm1563, %v2446, 0
  %v2454 = vsel %vm1563, %v2447, 0
  %v2457 = vsel %vm1563, %v2448, 0
  %v2460 = vsel %vm1563, %v2449, 0
  %2462 = vmatprep.subr.bf16.mxu0 %v2411
  %2463 = vmatpush1.bf16.msra.mxu0 %v2410
  %2464 = vmatprep.subr.bf16.mxu0 %v2413
  %2465 = vmatpush1.bf16.msra.mxu0 %v2412
  %2466 = vmatprep.subr.bf16.mxu0 %v2415
  %2467 = vmatpush1.bf16.msra.mxu0 %v2414
  %2468 = vmatprep.subr.bf16.mxu0 %v2417
  %2469 = vmatpush1.bf16.msra.mxu0 %v2416
  %2470 = vmatprep.subr.bf16.mxu0 %v2419
  %2471 = vmatpush1.bf16.msra.mxu0 %v2418
  %2472 = vmatprep.subr.bf16.mxu0 %v2421
  %2473 = vmatpush1.bf16.msra.mxu0 %v2420
  %2474 = vmatprep.subr.bf16.mxu0 0
  %2475 = vmatpush1.bf16.msra.mxu0 0
  %2476 = vmatprep.subr.bf16.mxu0 0
  %2477 = vmatpush1.bf16.msra.mxu0 0
  %2478 = vmatprep.subr.bf16.mxu0 0
  %2479 = vmatpush1.bf16.msra.mxu0 0
  %2480 = vmatprep.subr.bf16.mxu0 0
  %2481 = vmatpush1.bf16.msra.mxu0 0
  %2482 = vmatprep.subr.bf16.mxu0 0
  %2483 = vmatpush1.bf16.msra.mxu0 0
  %2484 = vmatprep.subr.bf16.mxu0 0
  %2485 = vmatpush1.bf16.msra.mxu0 0
  %2486 = vmatprep.subr.bf16.mxu0 0
  %2487 = vmatpush1.bf16.msra.mxu0 0
  %2488 = vmatprep.subr.bf16.mxu0 0
  %2489 = vmatpush1.bf16.msra.mxu0 0
  %2490 = vmatprep.subr.bf16.mxu0 0
  %2491 = vmatpush1.bf16.msra.mxu0 0
  %2492 = vmatprep.subr.bf16.mxu0 0
  %2493 = vmatpush1.bf16.msra.mxu0 0
  %2494 = vmatprep.mubr.bf16.mxu0 0
  %2495 = vmatmul.mubr.bf16.gmra.mrb[0].mxu0 %v2451
  %v2496 = vpop.f32.mrb[0].mxu0
  %v2497 = vadd.f32 0.0, %v2496
  %v2498 = vpop.f32.mrb[0].mxu0
  %v2499 = vadd.f32 0.0, %v2498
  %v2500 = vpop.f32.mrb[0].mxu0
  %v2501 = vadd.f32 0.0, %v2500
  %v2502 = vpop.f32.mrb[0].mxu0
  %v2503 = vadd.f32 0.0, %v2502
  %2504 = vmatprep.mubr.bf16.mxu0 0
  %2505 = vmatmul.mubr.bf16.gmra.mrb[0].mxu0 %v2454
  %v2506 = vpop.f32.mrb[0].mxu0
  %v2507 = vadd.f32 0.0, %v2506
  %v2508 = vpop.f32.mrb[0].mxu0
  %v2509 = vadd.f32 0.0, %v2508
  %v2510 = vpop.f32.mrb[0].mxu0
  %v2511 = vadd.f32 0.0, %v2510
  %v2512 = vpop.f32.mrb[0].mxu0
  %v2513 = vadd.f32 0.0, %v2512
  %2514 = vmatprep.mubr.bf16.mxu0 0
  %2515 = vmatmul.mubr.bf16.gmra.mrb[0].mxu0 %v2457
  %v2516 = vpop.f32.mrb[0].mxu0
  %v2517 = vadd.f32 0.0, %v2516
  %v2518 = vpop.f32.mrb[0].mxu0
  %v2519 = vadd.f32 0.0, %v2518
  %v2520 = vpop.f32.mrb[0].mxu0
  %v2521 = vadd.f32 0.0, %v2520
  %v2522 = vpop.f32.mrb[0].mxu0
  %v2523 = vadd.f32 0.0, %v2522
  %2524 = vmatprep.mubr.bf16.mxu0 0
  %2525 = vmatmul.mubr.bf16.gmra.mrb[0].mxu0 %v2460
  %v2526 = vpop.f32.mrb[0].mxu0
  %v2527 = vadd.f32 0.0, %v2526
  %v2528 = vpop.f32.mrb[0].mxu0
  %v2529 = vadd.f32 0.0, %v2528
  %v2530 = vpop.f32.mrb[0].mxu0
  %v2531 = vadd.f32 0.0, %v2530
  %v2532 = vpop.f32.mrb[0].mxu0
  %v2533 = vadd.f32 0.0, %v2532
  %2534 = vdwg.mxu0
  %v2535 = vadd.f32 %v2372, %v2497
  %v2536 = vadd.f32 %v2374, %v2499
  %v2537 = vadd.f32 %v2376, %v2501
  %v2538 = vadd.f32 %v2378, %v2503
  %v2539 = vadd.f32 %v2382, %v2507
  %v2540 = vadd.f32 %v2384, %v2509
  %v2541 = vadd.f32 %v2386, %v2511
  %v2542 = vadd.f32 %v2388, %v2513
  %v2543 = vadd.f32 %v2392, %v2517
  %v2544 = vadd.f32 %v2394, %v2519
  %v2545 = vadd.f32 %v2396, %v2521
  %v2546 = vadd.f32 %v2398, %v2523
  %v2547 = vadd.f32 %v2402, %v2527
  %v2548 = vadd.f32 %v2404, %v2529
  %v2549 = vadd.f32 %v2406, %v2531
  %v2550 = vadd.f32 %v2408, %v2533
  %v2551 = vadd.f32 %v2535, %v2043
  %v2552 = vadd.f32 %v2536, %v2043
  %v2553 = vadd.f32 %v2537, %v2048
  %v2554 = vadd.f32 %v2538, %v2048
  %v2555 = vadd.f32 %v2539, %v2053
  %v2556 = vadd.f32 %v2540, %v2053
  %v2557 = vadd.f32 %v2541, %v2058
  %v2558 = vadd.f32 %v2542, %v2058
  %v2559 = vadd.f32 %v2543, %v2063
  %v2560 = vadd.f32 %v2544, %v2063
  %v2561 = vadd.f32 %v2545, %v2068
  %v2562 = vadd.f32 %v2546, %v2068
  %v2563 = vadd.f32 %v2547, %v2073
  %v2564 = vadd.f32 %v2548, %v2073
  %v2565 = vadd.f32 %v2549, %v2078
  %v2566 = vadd.f32 %v2550, %v2078
  %vm2567 = vcmp.ge.f32.partialorder %v2551, 0.0
  %vm2568 = vcmp.ge.f32.partialorder %v2552, 0.0
  %vm2569 = vcmp.ge.f32.partialorder %v2553, 0.0
  %vm2570 = vcmp.ge.f32.partialorder %v2554, 0.0
  %vm2571 = vcmp.ge.f32.partialorder %v2555, 0.0
  %vm2572 = vcmp.ge.f32.partialorder %v2556, 0.0
  %vm2573 = vcmp.ge.f32.partialorder %v2557, 0.0
  %vm2574 = vcmp.ge.f32.partialorder %v2558, 0.0
  %vm2575 = vcmp.ge.f32.partialorder %v2559, 0.0
  %vm2576 = vcmp.ge.f32.partialorder %v2560, 0.0
  %vm2577 = vcmp.ge.f32.partialorder %v2561, 0.0
  %vm2578 = vcmp.ge.f32.partialorder %v2562, 0.0
  %vm2579 = vcmp.ge.f32.partialorder %v2563, 0.0
  %vm2580 = vcmp.ge.f32.partialorder %v2564, 0.0
  %vm2581 = vcmp.ge.f32.partialorder %v2565, 0.0
  %vm2582 = vcmp.ge.f32.partialorder %v2566, 0.0
  %v2583 = vmul.f32 %v2551, 0.2
  %v2584 = vmul.f32 %v2552, 0.2
  %v2585 = vmul.f32 %v2553, 0.2
  %v2586 = vmul.f32 %v2554, 0.2
  %v2587 = vmul.f32 %v2555, 0.2
  %v2588 = vmul.f32 %v2556, 0.2
  %v2589 = vmul.f32 %v2557, 0.2
  %v2590 = vmul.f32 %v2558, 0.2
  %v2591 = vmul.f32 %v2559, 0.2
  %v2592 = vmul.f32 %v2560, 0.2
  %v2593 = vmul.f32 %v2561, 0.2
  %v2594 = vmul.f32 %v2562, 0.2
  %v2595 = vmul.f32 %v2563, 0.2
  %v2596 = vmul.f32 %v2564, 0.2
  %v2597 = vmul.f32 %v2565, 0.2
  %v2598 = vmul.f32 %v2566, 0.2
  %v2599 = vsel %vm2567, %v2551, %v2583
  %v2600 = vsel %vm2568, %v2552, %v2584
  %v2601 = vsel %vm2569, %v2553, %v2585
  %v2602 = vsel %vm2570, %v2554, %v2586
  %v2603 = vsel %vm2571, %v2555, %v2587
  %v2604 = vsel %vm2572, %v2556, %v2588
  %v2605 = vsel %vm2573, %v2557, %v2589
  %v2606 = vsel %vm2574, %v2558, %v2590
  %v2607 = vsel %vm2575, %v2559, %v2591
  %v2608 = vsel %vm2576, %v2560, %v2592
  %v2609 = vsel %vm2577, %v2561, %v2593
  %v2610 = vsel %vm2578, %v2562, %v2594
  %v2611 = vsel %vm2579, %v2563, %v2595
  %v2612 = vsel %vm2580, %v2564, %v2596
  %v2613 = vsel %vm2581, %v2565, %v2597
  %v2614 = vsel %vm2582, %v2566, %v2598
  %2615 = vst [vmem:[%s9 + $0x10] sm:$0xff] %v2599
  %2616 = vst [vmem:[%s9 + $0x18] sm:$0xff] %v2600
  %2617 = vst [vmem:[%s9 + $0x30] sm:$0xff] %v2601
  %2618 = vst [vmem:[%s9 + $0x38] sm:$0xff] %v2602
  %2619 = vst [vmem:[%s9 + $0x50] sm:$0xff] %v2603
  %2620 = vst [vmem:[%s9 + $0x58] sm:$0xff] %v2604
  %2621 = vst [vmem:[%s9 + $0x70] sm:$0xff] %v2605
  %2622 = vst [vmem:[%s9 + $0x78] sm:$0xff] %v2606
  %2623 = vst [vmem:[%s9 + $0x90] sm:$0xff] %v2607
  %2624 = vst [vmem:[%s9 + $0x98] sm:$0xff] %v2608
  %2625 = vst [vmem:[%s9 + $0xb0] sm:$0xff] %v2609
  %2626 = vst [vmem:[%s9 + $0xb8] sm:$0xff] %v2610
  %2627 = vst [vmem:[%s9 + $0xd0] sm:$0xff] %v2611
  %2628 = vst [vmem:[%s9 + $0xd8] sm:$0xff] %v2612
  %2629 = vst [vmem:[%s9 + $0xf0] sm:$0xff] %v2613
  %2630 = vst [vmem:[%s9 + $0xf8] sm:$0xff] %v2614
  // Predicated region
  $region38: #{latent4lsnd_forward.1} parent=0 // pred_check
    _
  $region39: #{latent4lsnd_forward.1} parent=0 // pred_check_branch
    %2632 = sbr.rel (0) target = $region41
  $region40: #{latent4lsnd_forward.1} parent=0 // pred_region
    _
  $region41: #{latent4lsnd_forward.1} parent=0 // pred_fallthru
    _
  // Predicated region
  $region42: #{latent4lsnd_forward.1} parent=0 // pred_check
    _
  $region43: #{latent4lsnd_forward.1} parent=0 // pred_check_branch
    %2634 = sbr.rel (0) target = $region45
  $region44: #{latent4lsnd_forward.1} parent=0 // pred_region
    _
  $region45: #{latent4lsnd_forward.1} parent=0 // pred_fallthru
    _

</llo_original>
